<compile_context>
chip_gen: v7x
topology: tpu7x:2x2x1
jax: 0.10.0
libtpu: 0.0.40
codegen_flags: <defaults>
</compile_context>

<pallas_src>
import functools

import jax
import jax.numpy as jnp
import numpy as np
from jax.experimental import pallas as pl
from jax.experimental.pallas import tpu as pltpu

LATENT_DIM = 64
POSE_PAD = 128          # pose/embedding outputs lane-padded to 128 (full vst)
PW = 256                # uniform pad width for the small-layer weight/bias slabs
MAX_TILE = 16384        # feat tile cap (encoder K tile == decoder N tile)

# Small-layer slab order (weights stored pre-transposed as (in, out)).
_W_NAMES = ("wpd1", "wpd2", "wpe1", "wpe2", "wh1", "wh2", "wh3", "wh4", "wfa")
_B_NAMES = ("bie", "bpd1", "bpd2", "bpe1", "bpe2",
            "bh1", "bh2", "bh3", "bh4", "bfa")


def _round_up(a, m):
    return ((a + m - 1) // m) * m


@functools.lru_cache(maxsize=1)
def _vmem_limit_bytes():
    """~100 MiB on 128-MiB-VMEM chips (v5e/v6e), safe 48 MiB otherwise (v7x)."""
    try:
        cap = int(getattr(pltpu.get_tpu_info(), "vmem_capacity_bytes", 0))
    except Exception:
        cap = 0
    return (100 << 20) if cap >= (128 << 20) else (48 << 20)


# --------------------------------------------------------------------------
# Fused kernel: K-tiled encoder reduction + full pose chain + streamed decoder
# --------------------------------------------------------------------------
def _make_kernel(*, B, L, T, n_dec, wslots, oslots):
    def kernel(x_ref, wie_ref, wslab_ref, bslab_ref, wid_hbm, bid_hbm,
               final_ref, img_emb_ref, pose_emb_ref, rec_hbm,
               acc_ref, wid_buf, rec_buf, bid_buf, wid_sem, out_sem, bid_sem):

        def wid_copy(n):            # HBM wid N-tile n  ->  VMEM slot n%wslots
            s = n % wslots
            return pltpu.make_async_copy(
                wid_hbm.at[:, n * T:(n + 1) * T], wid_buf.at[s], wid_sem.at[s])

        def rec_copy(n):            # VMEM rec slot n%oslots  ->  HBM tile n
            s = n % oslots
            return pltpu.make_async_copy(
                rec_buf.at[s], rec_hbm.at[:, n * T:(n + 1) * T], out_sem.at[s])

        k = pl.program_id(0)

        @pl.when(k == 0)
        def _():
            acc_ref[...] = jnp.zeros_like(acc_ref)
            # Decoder prefetches overlap the entire encoder reduction.
            pltpu.make_async_copy(bid_hbm, bid_buf, bid_sem.at[0]).start()
            wid_copy(0).start()

        # Encoder partial matmul for this K tile (bf16 MXU, f32 accumulation).
        acc_ref[...] += jnp.dot(x_ref[...].astype(jnp.bfloat16), wie_ref[...],
                                preferred_element_type=jnp.float32)

        @pl.when(k == pl.num_programs(0) - 1)
        def _():
            # Issue the 2nd decoder weight tile before the serial pose chain
            # so its DMA hides behind the ~10 dependent tiny matmuls.
            if n_dec > 1:
                wid_copy(1).start()

            def lin(h, wi, bi, act):
                # Small layers are float32 (precision of final_poses); all
                # slab entries are zero-padded to (PW, PW) / (1, PW) so padded
                # lanes stay exactly 0 through the whole chain.
                y = (jnp.dot(h, wslab_ref[wi],
                             preferred_element_type=jnp.float32)
                     + bslab_ref[bi])
                return jnp.maximum(y, 0.0) if act else y

            # imgs_ae.encoder: bias + ReLU on the full-K accumulator, padded
            # out to the slab width PW.
            zpad = jnp.zeros((B, PW - L), jnp.float32)
            img_embeds = jnp.maximum(
                jnp.concatenate([acc_ref[...], zpad], axis=1) + bslab_ref[0],
                0.0)                                              # (B, PW)

            # pose_ae.decoder -> pred_poses (only first 6 lanes non-zero)
            h = lin(img_embeds, 0, 1, True)
            pred_poses = lin(h, 1, 2, False)
            # pose_ae.encoder -> pose_embeds
            h = lin(pred_poses, 2, 3, True)
            pose_embeds = lin(h, 3, 4, False)
            # poses_adjust_header (ReLU after the first three layers only)
            h = lin(pose_embeds, 4, 5, True)
            h = lin(h, 5, 6, True)
            h = lin(h, 6, 7, True)
            delta = lin(h, 7, 8, False)
            adjust_poses = pred_poses + delta
            # pose_final_adjust
            final_poses = lin(adjust_poses, 8, 9, False)

            final_ref[...] = final_poses[:, :POSE_PAD]
            img_emb_ref[...] = img_embeds[:, :POSE_PAD]
            pose_emb_ref[...] = pose_embeds[:, :POSE_PAD]

            # ---- fused imgs_ae.decoder: stream wid N-tiles from HBM ----
            emb16 = img_embeds[:, :L].astype(jnp.bfloat16)        # (B, L)
            pltpu.make_async_copy(bid_hbm, bid_buf, bid_sem.at[0]).wait()

            for n in range(n_dec):                # n_dec is static (unrolled)
                os_ = n % oslots
                wid_copy(n).wait()
                if n + 2 < n_dec:                 # keep 2 tiles in flight
                    wid_copy(n + 2).start()
                if n >= 2:                        # out-slot reuse: wait writeback
                    rec_copy(n - 2).wait()
                rec_buf[os_] = (
                    jnp.dot(emb16, wid_buf[n % wslots],
                            preferred_element_type=jnp.float32)
                    + bid_buf[:, n * T:(n + 1) * T])
                rec_copy(n).start()

            for n in range(max(0, n_dec - 2), n_dec):   # drain out DMAs
                rec_copy(n).wait()

    return kernel


# --------------------------------------------------------------------------
# Parameter construction / preparation
# --------------------------------------------------------------------------
def _make_linear(key, fan_in, fan_out):
    """Deterministic synthetic nn.Linear params; weight stored as (in, out)."""
    kw, kb = jax.random.split(key)
    w = jax.random.normal(kw, (fan_in, fan_out), jnp.float32) / jnp.sqrt(
        jnp.float32(fan_in))
    b = jax.random.normal(kb, (1, fan_out), jnp.float32) * 0.01
    return w, b


def init_params(key, in_features, latent_dim=LATENT_DIM):
    keys = jax.random.split(key, 12)
    p = {}
    p["wie"], p["bie"] = _make_linear(keys[0], in_features, latent_dim)
    p["wpd1"], p["bpd1"] = _make_linear(keys[1], latent_dim, latent_dim)
    p["wpd2"], p["bpd2"] = _make_linear(keys[2], latent_dim, 6)
    p["wpe1"], p["bpe1"] = _make_linear(keys[3], 6, latent_dim)
    p["wpe2"], p["bpe2"] = _make_linear(keys[4], latent_dim, latent_dim)
    p["wh1"], p["bh1"] = _make_linear(keys[5], latent_dim, latent_dim * 4)
    p["wh2"], p["bh2"] = _make_linear(keys[6], latent_dim * 4, latent_dim * 2)
    p["wh3"], p["bh3"] = _make_linear(keys[7], latent_dim * 2, latent_dim)
    p["wh4"], p["bh4"] = _make_linear(keys[8], latent_dim, 6)
    p["wfa"], p["bfa"] = _make_linear(keys[9], 6, 6)
    p["wid"], p["bid"] = _make_linear(keys[10], latent_dim, in_features)
    return p


def _pad2(a, rows, cols):
    # Zero padding only -- required so padded lanes stay exactly 0 through the
    # pose chain (pred_poses / delta / final_poses invariance).
    return jnp.pad(a, ((0, rows - a.shape[0]), (0, cols - a.shape[1])))


def prepare_params(params, featp, latent_dim):
    """bf16 feat-sized weights + two f32 slabs for all small layers."""
    for n in _W_NAMES + _B_NAMES:
        assert params[n].shape[0] <= PW and params[n].shape[1] <= PW
    wie = _pad2(params["wie"], featp, latent_dim).astype(jnp.bfloat16)
    wid = _pad2(params["wid"], latent_dim, featp).astype(jnp.bfloat16)
    bid = _pad2(params["bid"], 1, featp).astype(jnp.float32)
    wslab = jnp.stack([_pad2(params[n].astype(jnp.float32), PW, PW)
                       for n in _W_NAMES])                     # (9, PW, PW)
    bslab = jnp.stack([_pad2(params[n].astype(jnp.float32), 1, PW)
                       for n in _B_NAMES])                     # (10, 1, PW)
    return wie, wid, bid, wslab, bslab


# --------------------------------------------------------------------------
# Forward wrapper
# --------------------------------------------------------------------------
@functools.partial(jax.jit, static_argnames=("latent_dim",))
def pose_adjust_forward(images, params, latent_dim=LATENT_DIM):
    """images: (B, C, H, W) float32 (NCHW). Returns
    (final_poses, (img_embeds, pose_embeds, rec_image)) like the PyTorch module."""
    B, C, H, W = images.shape
    L = latent_dim
    assert L <= POSE_PAD and 4 * L <= PW
    feat = C * H * W

    # One tile size for both the encoder K-reduction and the decoder N-stream;
    # feat is zero-padded to a multiple of the tile (no-op at the test shape).
    T = min(MAX_TILE, _round_up(feat, 128))
    featp = _round_up(feat, T)
    nk = featp // T           # encoder grid steps
    n_dec = featp // T        # decoder tiles streamed inside the epilogue
    wslots = min(3, n_dec)
    oslots = min(2, n_dec)

    x = images.reshape(B, feat).astype(jnp.float32)
    if featp != feat:
        x = jnp.pad(x, ((0, 0), (0, featp - feat)))

    wie, wid, bid, wslab, bslab = prepare_params(params, featp, L)

    kernel = _make_kernel(B=B, L=L, T=T, n_dec=n_dec,
                          wslots=wslots, oslots=oslots)

    out_shape = (
        jax.ShapeDtypeStruct((B, POSE_PAD), jnp.float32),   # final_poses (pad)
        jax.ShapeDtypeStruct((B, POSE_PAD), jnp.float32),   # img_embeds  (pad)
        jax.ShapeDtypeStruct((B, POSE_PAD), jnp.float32),   # pose_embeds (pad)
        jax.ShapeDtypeStruct((B, featp), jnp.float32),      # rec image (flat)
    )
    out_specs = (
        pl.BlockSpec((B, POSE_PAD), lambda k: (0, 0)),
        pl.BlockSpec((B, POSE_PAD), lambda k: (0, 0)),
        pl.BlockSpec((B, POSE_PAD), lambda k: (0, 0)),
        pl.BlockSpec(memory_space=pl.ANY),                  # written via DMA
    )
    in_specs = [
        pl.BlockSpec((B, T), lambda k: (0, k)),             # x K-tile (f32)
        pl.BlockSpec((T, L), lambda k: (k, 0)),             # wie K-tile (bf16)
        pl.BlockSpec((len(_W_NAMES), PW, PW), lambda k: (0, 0, 0)),  # w slab
        pl.BlockSpec((len(_B_NAMES), 1, PW), lambda k: (0, 0, 0)),   # b slab
        pl.BlockSpec(memory_space=pl.ANY),                  # wid (HBM, bf16)
        pl.BlockSpec(memory_space=pl.ANY),                  # bid (HBM, f32)
    ]
    scratch_shapes = [
        pltpu.VMEM((B, L), jnp.float32),                    # encoder accumulator
        pltpu.VMEM((wslots, L, T), jnp.bfloat16),           # wid stream buffers
        pltpu.VMEM((oslots, B, T), jnp.float32),            # rec out buffers
        pltpu.VMEM((1, featp), jnp.float32),                # full decoder bias
        pltpu.SemaphoreType.DMA((wslots,)),                 # wid in sems
        pltpu.SemaphoreType.DMA((oslots,)),                 # rec out sems
        pltpu.SemaphoreType.DMA((1,)),                      # bid sem
    ]

    cost = pl.CostEstimate(
        flops=4 * B * featp * L + 2 * B * len(_W_NAMES) * PW * PW,
        transcendentals=0,
        bytes_accessed=(2 * featp * L * 2            # wie + wid (bf16)
                        + 2 * B * featp * 4          # x in + rec out (f32)
                        + featp * 4                  # bid
                        + (len(_W_NAMES) * PW * PW + len(_B_NAMES) * PW) * 4),
    )

    final_p, img_p, pose_p, rec_flat = pl.pallas_call(
        kernel,
        grid=(nk,),
        in_specs=in_specs,
        out_specs=out_specs,
        out_shape=out_shape,
        scratch_shapes=scratch_shapes,
        compiler_params=pltpu.CompilerParams(
            dimension_semantics=("arbitrary",),      # K-reduction axis
            vmem_limit_bytes=_vmem_limit_bytes(),
        ),
        cost_estimate=cost,
    )(x, wie, wslab, bslab, wid, bid)

    final_poses = final_p[:, :6]
    img_embeds = img_p[:, :L]
    pose_embeds = pose_p[:, :L]
    rec = rec_flat if featp == feat else rec_flat[:, :feat]
    rec_image = rec.reshape(B, C, H, W)
    return final_poses, (img_embeds, pose_embeds, rec_image)


# --------------------------------------------------------------------------
# Pure-JAX reference mirroring the kernel math (bf16 feat weights, f32 chain)
# --------------------------------------------------------------------------
def _reference_forward(images, params):
    B = images.shape[0]
    feat = int(np.prod(images.shape[1:]))
    x = images.reshape(B, feat).astype(jnp.float32)
    bf16 = jnp.bfloat16
    hi = jax.lax.Precision.HIGHEST

    def lin(h, w, b):
        return jnp.dot(h, w, precision=hi,
                       preferred_element_type=jnp.float32) + b

    relu = lambda v: jnp.maximum(v, 0.0)
    img_embeds = relu(
        jnp.dot(x.astype(bf16), params["wie"].astype(bf16),
                preferred_element_type=jnp.float32) + params["bie"])
    h = relu(lin(img_embeds, params["wpd1"], params["bpd1"]))
    pred_poses = lin(h, params["wpd2"], params["bpd2"])
    h = relu(lin(pred_poses, params["wpe1"], params["bpe1"]))
    pose_embeds = lin(h, params["wpe2"], params["bpe2"])
    h = relu(lin(pose_embeds, params["wh1"], params["bh1"]))
    h = relu(lin(h, params["wh2"], params["bh2"]))
    h = relu(lin(h, params["wh3"], params["bh3"]))
    delta = lin(h, params["wh4"], params["bh4"])
    adjust = pred_poses + delta
    final = lin(adjust, params["wfa"], params["bfa"])
    rec = (jnp.dot(img_embeds.astype(bf16), params["wid"].astype(bf16),
                   preferred_element_type=jnp.float32)
           + params["bid"]).reshape(images.shape)
    return final, (img_embeds, pose_embeds, rec)


if __name__ == "__main__":
    B, C, H, W = 2, 4, 16, 16
    key = jax.random.PRNGKey(0)
    k_img, k_par = jax.random.split(key)

    images = jax.random.normal(k_img, (B, C, H, W), jnp.float32)
    params = init_params(k_par, in_features=C * H * W, latent_dim=LATENT_DIM)

    final_poses, (img_embeds, pose_embeds, rec_image) = pose_adjust_forward(
        images, params)
    jax.block_until_ready((final_poses, img_embeds, pose_embeds, rec_image))

    assert final_poses.shape == (B, 6)
    assert img_embeds.shape == (B, LATENT_DIM)
    assert pose_embeds.shape == (B, LATENT_DIM)
    assert rec_image.shape == (B, C, H, W)

    # Correctness check against a pure-JAX reference using matching dtypes
    # (bf16 feat-sized weights, f32 pose chain).
    ref_final, (ref_img, ref_pose, ref_rec) = _reference_forward(images, params)
    np.testing.assert_allclose(np.asarray(final_poses), np.asarray(ref_final),
                               rtol=1e-2, atol=1e-2)
    np.testing.assert_allclose(np.asarray(img_embeds), np.asarray(ref_img),
                               rtol=1e-2, atol=1e-2)
    np.testing.assert_allclose(np.asarray(pose_embeds), np.asarray(ref_pose),
                               rtol=1e-2, atol=1e-2)
    np.testing.assert_allclose(np.asarray(rec_image), np.asarray(ref_rec),
                               rtol=1e-2, atol=1e-2)

    print("KERNEL_OK")
</pallas_src>

<mosaic_0001>
module attributes {stable_mosaic.version = 11 : i64} {
  func.func @kernel(%arg0: i32, %arg1: memref<2x1024xf32, #tpu.memory_space<vmem>>, %arg2: memref<1024x64xbf16, #tpu.memory_space<vmem>>, %arg3: memref<9x256x256xf32, #tpu.memory_space<vmem>>, %arg4: memref<10x1x256xf32, #tpu.memory_space<vmem>>, %arg5: memref<64x1024xbf16, #tpu.memory_space<any>>, %arg6: memref<1x1024xf32, #tpu.memory_space<any>>, %arg7: memref<2x128xf32, #tpu.memory_space<vmem>>, %arg8: memref<2x128xf32, #tpu.memory_space<vmem>>, %arg9: memref<2x128xf32, #tpu.memory_space<vmem>>, %arg10: memref<2x1024xf32, #tpu.memory_space<any>>, %arg11: memref<2x64xf32, #tpu.memory_space<vmem>>, %arg12: memref<1x64x1024xbf16, #tpu.memory_space<vmem>>, %arg13: memref<1x2x1024xf32, #tpu.memory_space<vmem>>, %arg14: memref<1x1024xf32, #tpu.memory_space<vmem>>, %arg15: memref<1x!tpu.dma_semaphore, #tpu.memory_space<semaphore_mem>>, %arg16: memref<1x!tpu.dma_semaphore, #tpu.memory_space<semaphore_mem>>, %arg17: memref<1x!tpu.dma_semaphore, #tpu.memory_space<semaphore_mem>>) attributes {dimension_semantics = [#tpu.dimension_semantics<arbitrary>], iteration_bounds = array<i64: 1>, scalar_prefetch = 0 : i64, scratch_operands = 7 : i64, tpu.core_type = #tpu.core_type<tc>, window_params = [{transform_indices = @transform_0, window_bounds = array<i64: 2, 1024>}, {transform_indices = @transform_1, window_bounds = array<i64: 1024, 64>}, {pipeline_mode = #tpu.pipeline_mode<synchronous>, transform_indices = @transform_2, window_bounds = array<i64: 9, 256, 256>}, {pipeline_mode = #tpu.pipeline_mode<synchronous>, transform_indices = @transform_3, window_bounds = array<i64: 10, 1, 256>}, {}, {}, {pipeline_mode = #tpu.pipeline_mode<synchronous>, transform_indices = @transform_6, window_bounds = array<i64: 2, 128>}, {pipeline_mode = #tpu.pipeline_mode<synchronous>, transform_indices = @transform_7, window_bounds = array<i64: 2, 128>}, {pipeline_mode = #tpu.pipeline_mode<synchronous>, transform_indices = @transform_8, window_bounds = array<i64: 2, 128>}, {}]} {
    %c0_i32 = arith.constant 0 : i32
    %0 = arith.cmpi eq, %arg0, %c0_i32 : i32
    %1 = arith.extui %0 : i1 to i32
    %c0_i32_0 = arith.constant 0 : i32
    %2 = arith.cmpi ne, %1, %c0_i32_0 : i32
    scf.if %2 {
      %cst_10 = arith.constant 0.000000e+00 : f32
      %13 = vector.broadcast %cst_10 : f32 to vector<2x64xf32>
      %c0_11 = arith.constant 0 : index
      %c0_12 = arith.constant 0 : index
      %14 = vector.load %arg11[%c0_11, %c0_12] : memref<2x64xf32, #tpu.memory_space<vmem>>, vector<2x64xf32>
      tpu.vector_store %arg11[%c0_11, %c0_12], %13 {strides = array<i32>} : memref<2x64xf32, #tpu.memory_space<vmem>>, vector<2x64xf32>,
      %c0_i32_13 = arith.constant 0 : i32
      %15 = tpu.memref_slice %arg17[%c0_i32_13] : memref<1x!tpu.dma_semaphore, #tpu.memory_space<semaphore_mem>> -> memref<1x!tpu.dma_semaphore, #tpu.memory_space<semaphore_mem>>
      %16 = tpu.memref_squeeze %15 : memref<1x!tpu.dma_semaphore, #tpu.memory_space<semaphore_mem>> -> memref<!tpu.dma_semaphore, #tpu.memory_space<semaphore_mem>>
      tpu.enqueue_dma source(%arg6 : memref<1x1024xf32, #tpu.memory_space<any>>) target(%arg14 : memref<1x1024xf32, #tpu.memory_space<vmem>>) target_semaphore(%16 : memref<!tpu.dma_semaphore, #tpu.memory_space<semaphore_mem>>)
      %c0_i32_14 = arith.constant 0 : i32
      %c0_i32_15 = arith.constant 0 : i32
      %c0_i32_16 = arith.constant 0 : i32
      %c0_i32_17 = arith.constant 0 : i32
      %17 = tpu.memref_slice %arg5[%c0_i32_16, %c0_i32_17] : memref<64x1024xbf16, #tpu.memory_space<any>> -> memref<64x1024xbf16, #tpu.memory_space<any>>
      %c0_i32_18 = arith.constant 0 : i32
      %c0_i32_19 = arith.constant 0 : i32
      %18 = tpu.memref_slice %arg12[%c0_i32_14, %c0_i32_18, %c0_i32_19] : memref<1x64x1024xbf16, #tpu.memory_space<vmem>> -> memref<1x64x1024xbf16, #tpu.memory_space<vmem>>
      %19 = tpu.memref_squeeze %18 : memref<1x64x1024xbf16, #tpu.memory_space<vmem>> -> memref<64x1024xbf16, #tpu.memory_space<vmem>>
      %20 = tpu.memref_slice %arg15[%c0_i32_15] : memref<1x!tpu.dma_semaphore, #tpu.memory_space<semaphore_mem>> -> memref<1x!tpu.dma_semaphore, #tpu.memory_space<semaphore_mem>>
      %21 = tpu.memref_squeeze %20 : memref<1x!tpu.dma_semaphore, #tpu.memory_space<semaphore_mem>> -> memref<!tpu.dma_semaphore, #tpu.memory_space<semaphore_mem>>
      tpu.enqueue_dma source(%17 : memref<64x1024xbf16, #tpu.memory_space<any>>) target(%19 : memref<64x1024xbf16, #tpu.memory_space<vmem>>) target_semaphore(%21 : memref<!tpu.dma_semaphore, #tpu.memory_space<semaphore_mem>>)
    } else {
    }
    %c0 = arith.constant 0 : index
    %c0_1 = arith.constant 0 : index
    %3 = vector.load %arg11[%c0, %c0_1] : memref<2x64xf32, #tpu.memory_space<vmem>>, vector<2x64xf32>
    %c0_2 = arith.constant 0 : index
    %c0_3 = arith.constant 0 : index
    %4 = vector.load %arg1[%c0_2, %c0_3] : memref<2x1024xf32, #tpu.memory_space<vmem>>, vector<2x1024xf32>
    %5 = arith.truncf %4 : vector<2x1024xf32> to vector<2x1024xbf16>
    %c0_4 = arith.constant 0 : index
    %c0_5 = arith.constant 0 : index
    %6 = vector.load %arg2[%c0_4, %c0_5] : memref<1024x64xbf16, #tpu.memory_space<vmem>>, vector<1024x64xbf16>
    %cst = arith.constant dense<0.000000e+00> : vector<2x64xf32>
    %7 = tpu.matmul %5, %6, %cst {dimension_numbers = #tpu.dot_dimension_numbers<[1], [0], [0], [1], [0, 0, 1, 1], [], []>} : vector<2x1024xbf16>, vector<1024x64xbf16>, vector<2x64xf32> -> vector<2x64xf32>
    %8 = arith.addf %3, %7 : vector<2x64xf32>
    %c0_6 = arith.constant 0 : index
    %c0_7 = arith.constant 0 : index
    %9 = vector.load %arg11[%c0_6, %c0_7] : memref<2x64xf32, #tpu.memory_space<vmem>>, vector<2x64xf32>
    tpu.vector_store %arg11[%c0_6, %c0_7], %8 {strides = array<i32>} : memref<2x64xf32, #tpu.memory_space<vmem>>, vector<2x64xf32>,
    %c0_i32_8 = arith.constant 0 : i32
    %10 = arith.cmpi eq, %arg0, %c0_i32_8 : i32
    %11 = arith.extui %10 : i1 to i32
    %c0_i32_9 = arith.constant 0 : i32
    %12 = arith.cmpi ne, %11, %c0_i32_9 : i32
    scf.if %12 {
      %cst_10 = arith.constant 0.000000e+00 : f32
      %13 = vector.broadcast %cst_10 : f32 to vector<2x192xf32>
      %c0_11 = arith.constant 0 : index
      %c0_12 = arith.constant 0 : index
      %14 = vector.load %arg11[%c0_11, %c0_12] : memref<2x64xf32, #tpu.memory_space<vmem>>, vector<2x64xf32>
      %15 = tpu.concatenate %14, %13 in 1 : vector<2x64xf32>, vector<2x192xf32> -> vector<2x256xf32>
      %c0_13 = arith.constant 0 : index
      %c0_14 = arith.constant 0 : index
      %c0_15 = arith.constant 0 : index
      %16 = vector.load %arg4[%c0_13, %c0_14, %c0_15] : memref<10x1x256xf32, #tpu.memory_space<vmem>>, vector<1x1x256xf32>
      %17 = vector.shape_cast %16 : vector<1x1x256xf32> to vector<1x256xf32>
      %18 = vector.broadcast %17 : vector<1x256xf32> to vector<2x256xf32>
      %19 = arith.addf %15, %18 : vector<2x256xf32>
      %cst_16 = arith.constant 0.000000e+00 : f32
      %20 = vector.broadcast %cst_16 : f32 to vector<2x256xf32>
      %21 = arith.maximumf %19, %20 : vector<2x256xf32>
      %c0_17 = arith.constant 0 : index
      %c0_18 = arith.constant 0 : index
      %c0_19 = arith.constant 0 : index
      %22 = vector.load %arg3[%c0_17, %c0_18, %c0_19] : memref<9x256x256xf32, #tpu.memory_space<vmem>>, vector<1x256x256xf32>
      %23 = vector.shape_cast %22 : vector<1x256x256xf32> to vector<256x256xf32>
      %cst_20 = arith.constant dense<0.000000e+00> : vector<2x256xf32>
      %24 = tpu.matmul %21, %23, %cst_20 {dimension_numbers = #tpu.dot_dimension_numbers<[1], [0], [0], [1], [0, 0, 1, 1], [], []>} : vector<2x256xf32>, vector<256x256xf32>, vector<2x256xf32> -> vector<2x256xf32>
      %c1 = arith.constant 1 : index
      %c0_21 = arith.constant 0 : index
      %c0_22 = arith.constant 0 : index
      %25 = vector.load %arg4[%c1, %c0_21, %c0_22] : memref<10x1x256xf32, #tpu.memory_space<vmem>>, vector<1x1x256xf32>
      %26 = vector.shape_cast %25 : vector<1x1x256xf32> to vector<1x256xf32>
      %27 = vector.broadcast %26 : vector<1x256xf32> to vector<2x256xf32>
      %28 = arith.addf %24, %27 : vector<2x256xf32>
      %cst_23 = arith.constant 0.000000e+00 : f32
      %29 = vector.broadcast %cst_23 : f32 to vector<2x256xf32>
      %30 = arith.maximumf %28, %29 : vector<2x256xf32>
      %c1_24 = arith.constant 1 : index
      %c0_25 = arith.constant 0 : index
      %c0_26 = arith.constant 0 : index
      %31 = vector.load %arg3[%c1_24, %c0_25, %c0_26] : memref<9x256x256xf32, #tpu.memory_space<vmem>>, vector<1x256x256xf32>
      %32 = vector.shape_cast %31 : vector<1x256x256xf32> to vector<256x256xf32>
      %cst_27 = arith.constant dense<0.000000e+00> : vector<2x256xf32>
      %33 = tpu.matmul %30, %32, %cst_27 {dimension_numbers = #tpu.dot_dimension_numbers<[1], [0], [0], [1], [0, 0, 1, 1], [], []>} : vector<2x256xf32>, vector<256x256xf32>, vector<2x256xf32> -> vector<2x256xf32>
      %c2 = arith.constant 2 : index
      %c0_28 = arith.constant 0 : index
      %c0_29 = arith.constant 0 : index
      %34 = vector.load %arg4[%c2, %c0_28, %c0_29] : memref<10x1x256xf32, #tpu.memory_space<vmem>>, vector<1x1x256xf32>
      %35 = vector.shape_cast %34 : vector<1x1x256xf32> to vector<1x256xf32>
      %36 = vector.broadcast %35 : vector<1x256xf32> to vector<2x256xf32>
      %37 = arith.addf %33, %36 : vector<2x256xf32>
      %c2_30 = arith.constant 2 : index
      %c0_31 = arith.constant 0 : index
      %c0_32 = arith.constant 0 : index
      %38 = vector.load %arg3[%c2_30, %c0_31, %c0_32] : memref<9x256x256xf32, #tpu.memory_space<vmem>>, vector<1x256x256xf32>
      %39 = vector.shape_cast %38 : vector<1x256x256xf32> to vector<256x256xf32>
      %cst_33 = arith.constant dense<0.000000e+00> : vector<2x256xf32>
      %40 = tpu.matmul %37, %39, %cst_33 {dimension_numbers = #tpu.dot_dimension_numbers<[1], [0], [0], [1], [0, 0, 1, 1], [], []>} : vector<2x256xf32>, vector<256x256xf32>, vector<2x256xf32> -> vector<2x256xf32>
      %c3 = arith.constant 3 : index
      %c0_34 = arith.constant 0 : index
      %c0_35 = arith.constant 0 : index
      %41 = vector.load %arg4[%c3, %c0_34, %c0_35] : memref<10x1x256xf32, #tpu.memory_space<vmem>>, vector<1x1x256xf32>
      %42 = vector.shape_cast %41 : vector<1x1x256xf32> to vector<1x256xf32>
      %43 = vector.broadcast %42 : vector<1x256xf32> to vector<2x256xf32>
      %44 = arith.addf %40, %43 : vector<2x256xf32>
      %cst_36 = arith.constant 0.000000e+00 : f32
      %45 = vector.broadcast %cst_36 : f32 to vector<2x256xf32>
      %46 = arith.maximumf %44, %45 : vector<2x256xf32>
      %c3_37 = arith.constant 3 : index
      %c0_38 = arith.constant 0 : index
      %c0_39 = arith.constant 0 : index
      %47 = vector.load %arg3[%c3_37, %c0_38, %c0_39] : memref<9x256x256xf32, #tpu.memory_space<vmem>>, vector<1x256x256xf32>
      %48 = vector.shape_cast %47 : vector<1x256x256xf32> to vector<256x256xf32>
      %cst_40 = arith.constant dense<0.000000e+00> : vector<2x256xf32>
      %49 = tpu.matmul %46, %48, %cst_40 {dimension_numbers = #tpu.dot_dimension_numbers<[1], [0], [0], [1], [0, 0, 1, 1], [], []>} : vector<2x256xf32>, vector<256x256xf32>, vector<2x256xf32> -> vector<2x256xf32>
      %c4 = arith.constant 4 : index
      %c0_41 = arith.constant 0 : index
      %c0_42 = arith.constant 0 : index
      %50 = vector.load %arg4[%c4, %c0_41, %c0_42] : memref<10x1x256xf32, #tpu.memory_space<vmem>>, vector<1x1x256xf32>
      %51 = vector.shape_cast %50 : vector<1x1x256xf32> to vector<1x256xf32>
      %52 = vector.broadcast %51 : vector<1x256xf32> to vector<2x256xf32>
      %53 = arith.addf %49, %52 : vector<2x256xf32>
      %c4_43 = arith.constant 4 : index
      %c0_44 = arith.constant 0 : index
      %c0_45 = arith.constant 0 : index
      %54 = vector.load %arg3[%c4_43, %c0_44, %c0_45] : memref<9x256x256xf32, #tpu.memory_space<vmem>>, vector<1x256x256xf32>
      %55 = vector.shape_cast %54 : vector<1x256x256xf32> to vector<256x256xf32>
      %cst_46 = arith.constant dense<0.000000e+00> : vector<2x256xf32>
      %56 = tpu.matmul %53, %55, %cst_46 {dimension_numbers = #tpu.dot_dimension_numbers<[1], [0], [0], [1], [0, 0, 1, 1], [], []>} : vector<2x256xf32>, vector<256x256xf32>, vector<2x256xf32> -> vector<2x256xf32>
      %c5 = arith.constant 5 : index
      %c0_47 = arith.constant 0 : index
      %c0_48 = arith.constant 0 : index
      %57 = vector.load %arg4[%c5, %c0_47, %c0_48] : memref<10x1x256xf32, #tpu.memory_space<vmem>>, vector<1x1x256xf32>
      %58 = vector.shape_cast %57 : vector<1x1x256xf32> to vector<1x256xf32>
      %59 = vector.broadcast %58 : vector<1x256xf32> to vector<2x256xf32>
      %60 = arith.addf %56, %59 : vector<2x256xf32>
      %cst_49 = arith.constant 0.000000e+00 : f32
      %61 = vector.broadcast %cst_49 : f32 to vector<2x256xf32>
      %62 = arith.maximumf %60, %61 : vector<2x256xf32>
      %c5_50 = arith.constant 5 : index
      %c0_51 = arith.constant 0 : index
      %c0_52 = arith.constant 0 : index
      %63 = vector.load %arg3[%c5_50, %c0_51, %c0_52] : memref<9x256x256xf32, #tpu.memory_space<vmem>>, vector<1x256x256xf32>
      %64 = vector.shape_cast %63 : vector<1x256x256xf32> to vector<256x256xf32>
      %cst_53 = arith.constant dense<0.000000e+00> : vector<2x256xf32>
      %65 = tpu.matmul %62, %64, %cst_53 {dimension_numbers = #tpu.dot_dimension_numbers<[1], [0], [0], [1], [0, 0, 1, 1], [], []>} : vector<2x256xf32>, vector<256x256xf32>, vector<2x256xf32> -> vector<2x256xf32>
      %c6 = arith.constant 6 : index
      %c0_54 = arith.constant 0 : index
      %c0_55 = arith.constant 0 : index
      %66 = vector.load %arg4[%c6, %c0_54, %c0_55] : memref<10x1x256xf32, #tpu.memory_space<vmem>>, vector<1x1x256xf32>
      %67 = vector.shape_cast %66 : vector<1x1x256xf32> to vector<1x256xf32>
      %68 = vector.broadcast %67 : vector<1x256xf32> to vector<2x256xf32>
      %69 = arith.addf %65, %68 : vector<2x256xf32>
      %cst_56 = arith.constant 0.000000e+00 : f32
      %70 = vector.broadcast %cst_56 : f32 to vector<2x256xf32>
      %71 = arith.maximumf %69, %70 : vector<2x256xf32>
      %c6_57 = arith.constant 6 : index
      %c0_58 = arith.constant 0 : index
      %c0_59 = arith.constant 0 : index
      %72 = vector.load %arg3[%c6_57, %c0_58, %c0_59] : memref<9x256x256xf32, #tpu.memory_space<vmem>>, vector<1x256x256xf32>
      %73 = vector.shape_cast %72 : vector<1x256x256xf32> to vector<256x256xf32>
      %cst_60 = arith.constant dense<0.000000e+00> : vector<2x256xf32>
      %74 = tpu.matmul %71, %73, %cst_60 {dimension_numbers = #tpu.dot_dimension_numbers<[1], [0], [0], [1], [0, 0, 1, 1], [], []>} : vector<2x256xf32>, vector<256x256xf32>, vector<2x256xf32> -> vector<2x256xf32>
      %c7 = arith.constant 7 : index
      %c0_61 = arith.constant 0 : index
      %c0_62 = arith.constant 0 : index
      %75 = vector.load %arg4[%c7, %c0_61, %c0_62] : memref<10x1x256xf32, #tpu.memory_space<vmem>>, vector<1x1x256xf32>
      %76 = vector.shape_cast %75 : vector<1x1x256xf32> to vector<1x256xf32>
      %77 = vector.broadcast %76 : vector<1x256xf32> to vector<2x256xf32>
      %78 = arith.addf %74, %77 : vector<2x256xf32>
      %cst_63 = arith.constant 0.000000e+00 : f32
      %79 = vector.broadcast %cst_63 : f32 to vector<2x256xf32>
      %80 = arith.maximumf %78, %79 : vector<2x256xf32>
      %c7_64 = arith.constant 7 : index
      %c0_65 = arith.constant 0 : index
      %c0_66 = arith.constant 0 : index
      %81 = vector.load %arg3[%c7_64, %c0_65, %c0_66] : memref<9x256x256xf32, #tpu.memory_space<vmem>>, vector<1x256x256xf32>
      %82 = vector.shape_cast %81 : vector<1x256x256xf32> to vector<256x256xf32>
      %cst_67 = arith.constant dense<0.000000e+00> : vector<2x256xf32>
      %83 = tpu.matmul %80, %82, %cst_67 {dimension_numbers = #tpu.dot_dimension_numbers<[1], [0], [0], [1], [0, 0, 1, 1], [], []>} : vector<2x256xf32>, vector<256x256xf32>, vector<2x256xf32> -> vector<2x256xf32>
      %c8 = arith.constant 8 : index
      %c0_68 = arith.constant 0 : index
      %c0_69 = arith.constant 0 : index
      %84 = vector.load %arg4[%c8, %c0_68, %c0_69] : memref<10x1x256xf32, #tpu.memory_space<vmem>>, vector<1x1x256xf32>
      %85 = vector.shape_cast %84 : vector<1x1x256xf32> to vector<1x256xf32>
      %86 = vector.broadcast %85 : vector<1x256xf32> to vector<2x256xf32>
      %87 = arith.addf %83, %86 : vector<2x256xf32>
      %88 = arith.addf %37, %87 : vector<2x256xf32>
      %c8_70 = arith.constant 8 : index
      %c0_71 = arith.constant 0 : index
      %c0_72 = arith.constant 0 : index
      %89 = vector.load %arg3[%c8_70, %c0_71, %c0_72] : memref<9x256x256xf32, #tpu.memory_space<vmem>>, vector<1x256x256xf32>
      %90 = vector.shape_cast %89 : vector<1x256x256xf32> to vector<256x256xf32>
      %cst_73 = arith.constant dense<0.000000e+00> : vector<2x256xf32>
      %91 = tpu.matmul %88, %90, %cst_73 {dimension_numbers = #tpu.dot_dimension_numbers<[1], [0], [0], [1], [0, 0, 1, 1], [], []>} : vector<2x256xf32>, vector<256x256xf32>, vector<2x256xf32> -> vector<2x256xf32>
      %c9 = arith.constant 9 : index
      %c0_74 = arith.constant 0 : index
      %c0_75 = arith.constant 0 : index
      %92 = vector.load %arg4[%c9, %c0_74, %c0_75] : memref<10x1x256xf32, #tpu.memory_space<vmem>>, vector<1x1x256xf32>
      %93 = vector.shape_cast %92 : vector<1x1x256xf32> to vector<1x256xf32>
      %94 = vector.broadcast %93 : vector<1x256xf32> to vector<2x256xf32>
      %95 = arith.addf %91, %94 : vector<2x256xf32>
      %96 = vector.extract_strided_slice %95 {offsets = [0, 0], sizes = [2, 128], strides = [1, 1]} : vector<2x256xf32> to vector<2x128xf32>
      %c0_76 = arith.constant 0 : index
      %c0_77 = arith.constant 0 : index
      %97 = vector.load %arg7[%c0_76, %c0_77] : memref<2x128xf32, #tpu.memory_space<vmem>>, vector<2x128xf32>
      tpu.vector_store %arg7[%c0_76, %c0_77], %96 {strides = array<i32>} : memref<2x128xf32, #tpu.memory_space<vmem>>, vector<2x128xf32>,
      %98 = vector.extract_strided_slice %21 {offsets = [0, 0], sizes = [2, 128], strides = [1, 1]} : vector<2x256xf32> to vector<2x128xf32>
      %c0_78 = arith.constant 0 : index
      %c0_79 = arith.constant 0 : index
      %99 = vector.load %arg8[%c0_78, %c0_79] : memref<2x128xf32, #tpu.memory_space<vmem>>, vector<2x128xf32>
      tpu.vector_store %arg8[%c0_78, %c0_79], %98 {strides = array<i32>} : memref<2x128xf32, #tpu.memory_space<vmem>>, vector<2x128xf32>,
      %100 = vector.extract_strided_slice %53 {offsets = [0, 0], sizes = [2, 128], strides = [1, 1]} : vector<2x256xf32> to vector<2x128xf32>
      %c0_80 = arith.constant 0 : index
      %c0_81 = arith.constant 0 : index
      %101 = vector.load %arg9[%c0_80, %c0_81] : memref<2x128xf32, #tpu.memory_space<vmem>>, vector<2x128xf32>
      tpu.vector_store %arg9[%c0_80, %c0_81], %100 {strides = array<i32>} : memref<2x128xf32, #tpu.memory_space<vmem>>, vector<2x128xf32>,
      %102 = vector.extract_strided_slice %21 {offsets = [0, 0], sizes = [2, 64], strides = [1, 1]} : vector<2x256xf32> to vector<2x64xf32>
      %103 = arith.truncf %102 : vector<2x64xf32> to vector<2x64xbf16>
      %c0_i32_82 = arith.constant 0 : i32
      %104 = tpu.memref_slice %arg17[%c0_i32_82] : memref<1x!tpu.dma_semaphore, #tpu.memory_space<semaphore_mem>> -> memref<1x!tpu.dma_semaphore, #tpu.memory_space<semaphore_mem>>
      %105 = tpu.memref_squeeze %104 : memref<1x!tpu.dma_semaphore, #tpu.memory_space<semaphore_mem>> -> memref<!tpu.dma_semaphore, #tpu.memory_space<semaphore_mem>>
      tpu.wait_dma2 semaphore(%105 : memref<!tpu.dma_semaphore, #tpu.memory_space<semaphore_mem>>) src(%arg6 : memref<1x1024xf32, #tpu.memory_space<any>>) dst(%arg14 : memref<1x1024xf32, #tpu.memory_space<vmem>>)
      %c0_i32_83 = arith.constant 0 : i32
      %c0_i32_84 = arith.constant 0 : i32
      %c0_i32_85 = arith.constant 0 : i32
      %c0_i32_86 = arith.constant 0 : i32
      %106 = tpu.memref_slice %arg5[%c0_i32_85, %c0_i32_86] : memref<64x1024xbf16, #tpu.memory_space<any>> -> memref<64x1024xbf16, #tpu.memory_space<any>>
      %c0_i32_87 = arith.constant 0 : i32
      %c0_i32_88 = arith.constant 0 : i32
      %107 = tpu.memref_slice %arg12[%c0_i32_83, %c0_i32_87, %c0_i32_88] : memref<1x64x1024xbf16, #tpu.memory_space<vmem>> -> memref<1x64x1024xbf16, #tpu.memory_space<vmem>>
      %108 = tpu.memref_squeeze %107 : memref<1x64x1024xbf16, #tpu.memory_space<vmem>> -> memref<64x1024xbf16, #tpu.memory_space<vmem>>
      %109 = tpu.memref_slice %arg15[%c0_i32_84] : memref<1x!tpu.dma_semaphore, #tpu.memory_space<semaphore_mem>> -> memref<1x!tpu.dma_semaphore, #tpu.memory_space<semaphore_mem>>
      %110 = tpu.memref_squeeze %109 : memref<1x!tpu.dma_semaphore, #tpu.memory_space<semaphore_mem>> -> memref<!tpu.dma_semaphore, #tpu.memory_space<semaphore_mem>>
      tpu.wait_dma2 semaphore(%110 : memref<!tpu.dma_semaphore, #tpu.memory_space<semaphore_mem>>) src(%106 : memref<64x1024xbf16, #tpu.memory_space<any>>) dst(%108 : memref<64x1024xbf16, #tpu.memory_space<vmem>>)
      %c0_89 = arith.constant 0 : index
      %c0_90 = arith.constant 0 : index
      %c0_91 = arith.constant 0 : index
      %111 = vector.load %arg12[%c0_89, %c0_90, %c0_91] : memref<1x64x1024xbf16, #tpu.memory_space<vmem>>, vector<1x64x1024xbf16>
      %112 = vector.shape_cast %111 : vector<1x64x1024xbf16> to vector<64x1024xbf16>
      %cst_92 = arith.constant dense<0.000000e+00> : vector<2x1024xf32>
      %113 = tpu.matmul %103, %112, %cst_92 {dimension_numbers = #tpu.dot_dimension_numbers<[1], [0], [0], [1], [0, 0, 1, 1], [], []>} : vector<2x64xbf16>, vector<64x1024xbf16>, vector<2x1024xf32> -> vector<2x1024xf32>
      %c0_93 = arith.constant 0 : index
      %c0_94 = arith.constant 0 : index
      %114 = vector.load %arg14[%c0_93, %c0_94] : memref<1x1024xf32, #tpu.memory_space<vmem>>, vector<1x1024xf32>
      %115 = vector.broadcast %114 : vector<1x1024xf32> to vector<2x1024xf32>
      %116 = arith.addf %113, %115 : vector<2x1024xf32>
      %c0_95 = arith.constant 0 : index
      %c0_96 = arith.constant 0 : index
      %c0_97 = arith.constant 0 : index
      %117 = vector.load %arg13[%c0_95, %c0_96, %c0_97] : memref<1x2x1024xf32, #tpu.memory_space<vmem>>, vector<1x2x1024xf32>
      %118 = vector.shape_cast %117 : vector<1x2x1024xf32> to vector<2x1024xf32>
      %119 = vector.shape_cast %116 : vector<2x1024xf32> to vector<1x2x1024xf32>
      tpu.vector_store %arg13[%c0_95, %c0_96, %c0_97], %119 {strides = array<i32>} : memref<1x2x1024xf32, #tpu.memory_space<vmem>>, vector<1x2x1024xf32>,
      %c0_i32_98 = arith.constant 0 : i32
      %c0_i32_99 = arith.constant 0 : i32
      %c0_i32_100 = arith.constant 0 : i32
      %c0_i32_101 = arith.constant 0 : i32
      %120 = tpu.memref_slice %arg13[%c0_i32_98, %c0_i32_100, %c0_i32_101] : memref<1x2x1024xf32, #tpu.memory_space<vmem>> -> memref<1x2x1024xf32, #tpu.memory_space<vmem>>
      %121 = tpu.memref_squeeze %120 : memref<1x2x1024xf32, #tpu.memory_space<vmem>> -> memref<2x1024xf32, #tpu.memory_space<vmem>>
      %c0_i32_102 = arith.constant 0 : i32
      %c0_i32_103 = arith.constant 0 : i32
      %122 = tpu.memref_slice %arg10[%c0_i32_102, %c0_i32_103] : memref<2x1024xf32, #tpu.memory_space<any>> -> memref<2x1024xf32, #tpu.memory_space<any>>
      %123 = tpu.memref_slice %arg16[%c0_i32_99] : memref<1x!tpu.dma_semaphore, #tpu.memory_space<semaphore_mem>> -> memref<1x!tpu.dma_semaphore, #tpu.memory_space<semaphore_mem>>
      %124 = tpu.memref_squeeze %123 : memref<1x!tpu.dma_semaphore, #tpu.memory_space<semaphore_mem>> -> memref<!tpu.dma_semaphore, #tpu.memory_space<semaphore_mem>>
      tpu.enqueue_dma source(%121 : memref<2x1024xf32, #tpu.memory_space<vmem>>) target(%122 : memref<2x1024xf32, #tpu.memory_space<any>>) target_semaphore(%124 : memref<!tpu.dma_semaphore, #tpu.memory_space<semaphore_mem>>)
      %c0_i32_104 = arith.constant 0 : i32
      %c0_i32_105 = arith.constant 0 : i32
      %c0_i32_106 = arith.constant 0 : i32
      %c0_i32_107 = arith.constant 0 : i32
      %125 = tpu.memref_slice %arg13[%c0_i32_104, %c0_i32_106, %c0_i32_107] : memref<1x2x1024xf32, #tpu.memory_space<vmem>> -> memref<1x2x1024xf32, #tpu.memory_space<vmem>>
      %126 = tpu.memref_squeeze %125 : memref<1x2x1024xf32, #tpu.memory_space<vmem>> -> memref<2x1024xf32, #tpu.memory_space<vmem>>
      %c0_i32_108 = arith.constant 0 : i32
      %c0_i32_109 = arith.constant 0 : i32
      %127 = tpu.memref_slice %arg10[%c0_i32_108, %c0_i32_109] : memref<2x1024xf32, #tpu.memory_space<any>> -> memref<2x1024xf32, #tpu.memory_space<any>>
      %128 = tpu.memref_slice %arg16[%c0_i32_105] : memref<1x!tpu.dma_semaphore, #tpu.memory_space<semaphore_mem>> -> memref<1x!tpu.dma_semaphore, #tpu.memory_space<semaphore_mem>>
      %129 = tpu.memref_squeeze %128 : memref<1x!tpu.dma_semaphore, #tpu.memory_space<semaphore_mem>> -> memref<!tpu.dma_semaphore, #tpu.memory_space<semaphore_mem>>
      tpu.wait_dma2 semaphore(%129 : memref<!tpu.dma_semaphore, #tpu.memory_space<semaphore_mem>>) src(%126 : memref<2x1024xf32, #tpu.memory_space<vmem>>) dst(%127 : memref<2x1024xf32, #tpu.memory_space<any>>)
    } else {
    }
    return
  }
  func.func @transform_0(%arg0: i32) -> (i32, i32) {
    %c0_i32 = arith.constant 0 : i32
    %c0_i32_0 = arith.constant 0 : i32
    return %c0_i32, %arg0 : i32, i32
  }
  func.func @transform_1(%arg0: i32) -> (i32, i32) {
    %c0_i32 = arith.constant 0 : i32
    %c0_i32_0 = arith.constant 0 : i32
    return %arg0, %c0_i32 : i32, i32
  }
  func.func @transform_2(%arg0: i32) -> (i32, i32, i32) {
    %c0_i32 = arith.constant 0 : i32
    %c0_i32_0 = arith.constant 0 : i32
    %c0_i32_1 = arith.constant 0 : i32
    %c0_i32_2 = arith.constant 0 : i32
    return %c0_i32, %c0_i32_0, %c0_i32_1 : i32, i32, i32
  }
  func.func @transform_3(%arg0: i32) -> (i32, i32, i32) {
    %c0_i32 = arith.constant 0 : i32
    %c0_i32_0 = arith.constant 0 : i32
    %c0_i32_1 = arith.constant 0 : i32
    %c0_i32_2 = arith.constant 0 : i32
    return %c0_i32, %c0_i32_0, %c0_i32_1 : i32, i32, i32
  }
  func.func @transform_6(%arg0: i32) -> (i32, i32) {
    %c0_i32 = arith.constant 0 : i32
    %c0_i32_0 = arith.constant 0 : i32
    %c0_i32_1 = arith.constant 0 : i32
    return %c0_i32, %c0_i32_0 : i32, i32
  }
  func.func @transform_7(%arg0: i32) -> (i32, i32) {
    %c0_i32 = arith.constant 0 : i32
    %c0_i32_0 = arith.constant 0 : i32
    %c0_i32_1 = arith.constant 0 : i32
    return %c0_i32, %c0_i32_0 : i32, i32
  }
  func.func @transform_8(%arg0: i32) -> (i32, i32) {
    %c0_i32 = arith.constant 0 : i32
    %c0_i32_0 = arith.constant 0 : i32
    %c0_i32_1 = arith.constant 0 : i32
    return %c0_i32, %c0_i32_0 : i32, i32
  }
}

</mosaic_0001>

<llo_original>
// kernel: pose_adjust_forward.1
$region0: #{pose_adjust_forward.1}
  #allocation0 [shape = 'u32[]', space=smem, size = 0x4, offset = 0x4, fixed_abs, tag = 'smem constant byte address 0x4 - core index']
  #allocation1 [shape = 'u32[144,128]{1,0:T(1,128)}', space=vmem, size = 0x12000, scoped, tag = 'internal scratch']
  #allocation2 [shape = 'f32[2,64]{1,0:T(2,128)}', space=vmem, size = 0x400, scoped, tag = 'scratch operand']
  #allocation3 [shape = 'bf16[1,64,1024]{2,1,0:T(16,128)(2,1)}', space=vmem, size = 0x20000, scoped, tag = 'scratch operand']
  #allocation4 [shape = 'f32[1,2,1024]{2,1,0:T(2,128)}', space=vmem, size = 0x2000, scoped, tag = 'scratch operand']
  #allocation5 [shape = 'f32[1,1024]{1,0:T(1,128)}', space=vmem, size = 0x1000, scoped, tag = 'scratch operand']
  #allocation6 [shape = 's32[1]{0}', space=sflag, size = 0x4, scoped, tag = 'scratch operand']
  #allocation7 [shape = 's32[1]{0}', space=sflag, size = 0x4, scoped, tag = 'scratch operand']
  #allocation8 [shape = 's32[1]{0}', space=sflag, size = 0x4, scoped, tag = 'scratch operand']
  #allocation14 [shape = 's32[]', space=sflag, size = 0x4, offset = 0, fixed_abs, tag = 'sflag constant byte address 0x0 - dummy sync flag']
  #allocation15 [shape = 's32[]', space=sflag, size = 0x4, offset = 0, fixed_abs, tag = 'sflag constant byte address 0x0 - dummy sync flag']
  #allocation16 [shape = 's32[]', space=sflag, size = 0x4, offset = 0, fixed_abs, tag = 'sflag constant byte address 0x0 - dummy sync flag']
  %s0 = inlined_call_operand.vmem [shape: f32[2,1024], index: 0, kind: input, shape index: {}]
  %s1 = inlined_call_operand.vmem [shape: bf16[1024,64], index: 1, kind: input, shape index: {}]
  %s2 = inlined_call_operand.vmem [shape: f32[9,256,256], index: 2, kind: input, shape index: {}]
  %s3 = inlined_call_operand.vmem [shape: f32[10,1,256], index: 3, kind: input, shape index: {}]
  %s4 = inlined_call_operand.vmem [shape: bf16[64,1024], index: 4, kind: input, shape index: {}]
  %s5 = inlined_call_operand.vmem [shape: f32[1,1024], index: 5, kind: input, shape index: {}]
  %s6 = inlined_call_operand.hbm [shape: f32[2,128], index: 6, kind: output, shape index: {0}]
  %s7 = inlined_call_operand.hbm [shape: f32[2,128], index: 7, kind: output, shape index: {1}]
  %s8 = inlined_call_operand.hbm [shape: f32[2,128], index: 8, kind: output, shape index: {2}]
  %s9 = inlined_call_operand.vmem [shape: f32[2,1024], index: 9, kind: output, shape index: {3}]
  %10 = xla_tuple %s6, %s7, %s8, %s9
  %s11 = sld [smem:[#allocation0]]
  $region155: #{pose_adjust_forward.1} parent=0
    _
  %s13 = ssub.s32 1, %s11
  %s14 = scalar_select 0, %s13, %s11
  $region1: #{pose_adjust_forward.1} parent=0
    #allocation9 [shape = 'u8[1024]{0}', space=vmem, size = 0x400, scoped, tag = 'output window, operand 0, single buffered']
    #allocation10 [shape = 's32[1]{0}', space=sflag, size = 0x4, scoped, tag = 'scoped memory for pose_adjust_forward.1']
    #allocation11 [shape = 'u8[1024]{0}', space=vmem, size = 0x400, scoped, tag = 'output window, operand 1, single buffered']
    #allocation12 [shape = 's32[1]{0}', space=sflag, size = 0x4, scoped, tag = 'scoped memory for pose_adjust_forward.1']
    #allocation13 [shape = 'u8[1024]{0}', space=vmem, size = 0x400, scoped, tag = 'output window, operand 2, single buffered']
    %15 = vsyncpa [#allocation10], 0
    %16 = vsyncpa [#allocation12], 0
    // Predicated region
    $region2: #{pose_adjust_forward.1} parent=1 // pred_check
      _
    $region3: #{pose_adjust_forward.1} parent=1 // pred_check_branch
      %18 = sbr.rel (0) target = $region5
    $region4: #{pose_adjust_forward.1} parent=1 // pred_region
      _
    $region5: #{pose_adjust_forward.1} parent=1 // pred_fallthru
      _
    // Predicated region
    $region6: #{pose_adjust_forward.1} parent=1 // pred_check
      _
    $region7: #{pose_adjust_forward.1} parent=1 // pred_check_branch
      %20 = sbr.rel (0) target = $region9
    $region8: #{pose_adjust_forward.1} parent=1 // pred_region
      _
    $region9: #{pose_adjust_forward.1} parent=1 // pred_fallthru
      _
    // Predicated region
    $region10: #{pose_adjust_forward.1} parent=1 // pred_check
      _
    $region11: #{pose_adjust_forward.1} parent=1 // pred_check_branch
      %22 = sbr.rel (0) target = $region13
    $region12: #{pose_adjust_forward.1} parent=1 // pred_region
      _
    $region13: #{pose_adjust_forward.1} parent=1 // pred_fallthru
      _
    // Predicated region
    $region14: #{pose_adjust_forward.1} parent=1 // pred_check
      _
    $region15: #{pose_adjust_forward.1} parent=1 // pred_check_branch
      %24 = sbr.rel (0) target = $region17
    $region16: #{pose_adjust_forward.1} parent=1 // pred_region
      _
    $region17: #{pose_adjust_forward.1} parent=1 // pred_fallthru
      _
    %p26 = scmp.eq.s32.totalorder 0, 0
    // Predicated region
    $region18: #{pose_adjust_forward.1} parent=1 // pred_check
      %p27 = pneg %p26
    $region19: #{pose_adjust_forward.1} parent=1 // pred_check_branch
      %29 = sbr.rel (%p27) target = $region21
    $region20: #{pose_adjust_forward.1} parent=1 // pred_region
      %vm30 = vcmask 517120
      %31 = vst.msk [vmem:[#allocation2] sm:$0x3] %vm30, 0.0
      %p33 = scmp.lt.u32.totalorder 8, 8
      %p34 = pneg %p33
      // Predicated region
      $region22: #{pose_adjust_forward.1} parent=20 // pred_check
        _
      $region23: #{pose_adjust_forward.1} parent=20 // pred_check_branch
        %36 = sbr.rel (%p33) target = $region25
      $region24: #{pose_adjust_forward.1} parent=20 // pred_region
        %s51 = sand.u32 8, 7
        %p52 = scmp.eq.s32.totalorder %s51, 0
        // Predicated region
        $region37: #{pose_adjust_forward.1} parent=24 // pred_check
          %p53 = pneg %p52
        $region38: #{pose_adjust_forward.1} parent=24 // pred_check_branch
          %55 = sbr.rel (%p53) target = $region40
        $region39: #{pose_adjust_forward.1} parent=24 // pred_region
          loop: start=0, step=1, limit=1
          $region41: #{pose_adjust_forward.1} parent=39 // loop_pre_header
            _
          $region42: #{pose_adjust_forward.1} parent=39 // loop_header
            %s57 = sphi 0, %s61
            %p58 = scmp.ge.s32.totalorder %s57, 1
            %s62 = sphi %s5, %s5
            %s63 = sphi [#allocation5], [#allocation5]
          $region43: #{pose_adjust_forward.1} parent=39 // loop_header_branch
            %60 = sbr.rel (%p58) target = $region47
          $region44: #{pose_adjust_forward.1} parent=39 // loop_body
            %v64 = vld [vmem:[%s62] sm:$0xff]
            %65 = vst [vmem:[%s63] sm:$0xff] %v64
          $region45: #{pose_adjust_forward.1} parent=39 // loop_footer
            %s61 = sadd.s32 1, %s57
          $region46: #{pose_adjust_forward.1} parent=39 // loop_footer_branch
            %56 = sbr.rel target = $region42
          $region47: #{pose_adjust_forward.1} parent=39 // loop_exit
            _
        $region40: #{pose_adjust_forward.1} parent=24 // pred_fallthru
          _
        %p66 = pneg %p52
        // Predicated region
        $region48: #{pose_adjust_forward.1} parent=24 // pred_check
          _
        $region49: #{pose_adjust_forward.1} parent=24 // pred_check_branch
          %68 = sbr.rel (%p52) target = $region51
        $region50: #{pose_adjust_forward.1} parent=24 // pred_region
          %s69 = sand.u32 8, 7
        $region51: #{pose_adjust_forward.1} parent=24 // pred_fallthru
          _
      $region25: #{pose_adjust_forward.1} parent=20 // pred_fallthru
        _
      // Predicated region
      $region26: #{pose_adjust_forward.1} parent=20 // pred_check
        %p37 = pneg %p33
      $region27: #{pose_adjust_forward.1} parent=20 // pred_check_branch
        %39 = sbr.rel (%p37) target = $region29
      $region28: #{pose_adjust_forward.1} parent=20 // pred_region
        %s40 = sshllo.u32 0, 8
        loop: start=0, step=1, limit=1
        $region30: #{pose_adjust_forward.1} parent=28 // loop_pre_header
          _
        $region31: #{pose_adjust_forward.1} parent=28 // loop_header
          %s42 = sphi 0, %s46
          %p43 = scmp.ge.s32.totalorder %s42, 1
          %s47 = sphi %s5, %s5
          %s48 = sphi [#allocation5], [#allocation5]
        $region32: #{pose_adjust_forward.1} parent=28 // loop_header_branch
          %45 = sbr.rel (%p43) target = $region36
        $region33: #{pose_adjust_forward.1} parent=28 // loop_body
          %v49 = vld [vmem:[%s47] sm:%s40]
          %50 = vst [vmem:[%s48] sm:%s40] %v49
        $region34: #{pose_adjust_forward.1} parent=28 // loop_footer
          %s46 = sadd.s32 1, %s42
        $region35: #{pose_adjust_forward.1} parent=28 // loop_footer_branch
          %41 = sbr.rel target = $region31
        $region36: #{pose_adjust_forward.1} parent=28 // loop_exit
          _
      $region29: #{pose_adjust_forward.1} parent=20 // pred_fallthru
        _
      // Predicated region
      $region52: #{pose_adjust_forward.1} parent=20 // pred_check
        _
      $region53: #{pose_adjust_forward.1} parent=20 // pred_check_branch
        %72 = sbr.rel (0) target = $region55
      $region54: #{pose_adjust_forward.1} parent=20 // pred_region
        %73 = vsyncadd [#allocation8], 128
      $region55: #{pose_adjust_forward.1} parent=20 // pred_fallthru
        _
      %p75 = scmp.lt.u32.totalorder 4, 8
      %p76 = pneg %p75
      // Predicated region
      $region56: #{pose_adjust_forward.1} parent=20 // pred_check
        _
      $region57: #{pose_adjust_forward.1} parent=20 // pred_check_branch
        %78 = sbr.rel (%p75) target = $region59
      $region58: #{pose_adjust_forward.1} parent=20 // pred_region
        %s219 = sand.u32 4, 7
        %p220 = scmp.eq.s32.totalorder %s219, 0
        %p221 = pneg %p220
        // Predicated region
        $region71: #{pose_adjust_forward.1} parent=58 // pred_check
          _
        $region72: #{pose_adjust_forward.1} parent=58 // pred_check_branch
          %223 = sbr.rel (%p220) target = $region74
        $region73: #{pose_adjust_forward.1} parent=58 // pred_region
          %s224 = sand.u32 4, 7
          %s225 = ssub.s32 4, %s224
          %s226 = scalar_lea.vmem %s4, %s225
          %s227 = ssub.s32 4, %s224
          %s228 = scalar_lea.vmem [#allocation3], %s227
          loop: start=0, step=1, limit=1
          $region75: #{pose_adjust_forward.1} parent=73 // loop_pre_header
            _
          $region76: #{pose_adjust_forward.1} parent=73 // loop_header
            %s230 = sphi 0, %s234
            %p231 = scmp.ge.s32.totalorder %s230, 1
            %s235 = sphi %s4, %s4
            %s236 = sphi [#allocation3], [#allocation3]
          $region77: #{pose_adjust_forward.1} parent=73 // loop_header_branch
            %233 = sbr.rel (%p231) target = $region81
          $region78: #{pose_adjust_forward.1} parent=73 // loop_body
            _
          $region79: #{pose_adjust_forward.1} parent=73 // loop_footer
            %s234 = sadd.s32 1, %s230
          $region80: #{pose_adjust_forward.1} parent=73 // loop_footer_branch
            %229 = sbr.rel target = $region76
          $region81: #{pose_adjust_forward.1} parent=73 // loop_exit
            _
          %s237 = sshllo.u32 0, %s224
          loop: start=0, step=1, limit=1
          $region82: #{pose_adjust_forward.1} parent=73 // loop_pre_header
            _
          $region83: #{pose_adjust_forward.1} parent=73 // loop_header
            %s239 = sphi 0, %s243
            %p240 = scmp.ge.s32.totalorder %s239, 1
            %s244 = sphi %s226, %s226
            %s245 = sphi %s228, %s228
          $region84: #{pose_adjust_forward.1} parent=73 // loop_header_branch
            %242 = sbr.rel (%p240) target = $region88
          $region85: #{pose_adjust_forward.1} parent=73 // loop_body
            %v246 = vld [vmem:[%s244] sm:%s237]
            %247 = vst [vmem:[%s245] sm:%s237] %v246
            %v248 = vld [vmem:[%s244 + $0x20] sm:%s237]
            %249 = vst [vmem:[%s245 + $0x4] sm:%s237] %v248
            %v250 = vld [vmem:[%s244 + $0x4] sm:%s237]
            %251 = vst [vmem:[%s245 + $0x8] sm:%s237] %v250
            %v252 = vld [vmem:[%s244 + $0x24] sm:%s237]
            %253 = vst [vmem:[%s245 + $0xc] sm:%s237] %v252
            %v254 = vld [vmem:[%s244 + $0x8] sm:%s237]
            %255 = vst [vmem:[%s245 + $0x10] sm:%s237] %v254
            %v256 = vld [vmem:[%s244 + $0x28] sm:%s237]
            %257 = vst [vmem:[%s245 + $0x14] sm:%s237] %v256
            %v258 = vld [vmem:[%s244 + $0xc] sm:%s237]
            %259 = vst [vmem:[%s245 + $0x18] sm:%s237] %v258
            %v260 = vld [vmem:[%s244 + $0x2c] sm:%s237]
            %261 = vst [vmem:[%s245 + $0x1c] sm:%s237] %v260
            %v262 = vld [vmem:[%s244 + $0x10] sm:%s237]
            %263 = vst [vmem:[%s245 + $0x20] sm:%s237] %v262
            %v264 = vld [vmem:[%s244 + $0x30] sm:%s237]
            %265 = vst [vmem:[%s245 + $0x24] sm:%s237] %v264
            %v266 = vld [vmem:[%s244 + $0x14] sm:%s237]
            %267 = vst [vmem:[%s245 + $0x28] sm:%s237] %v266
            %v268 = vld [vmem:[%s244 + $0x34] sm:%s237]
            %269 = vst [vmem:[%s245 + $0x2c] sm:%s237] %v268
            %v270 = vld [vmem:[%s244 + $0x18] sm:%s237]
            %271 = vst [vmem:[%s245 + $0x30] sm:%s237] %v270
            %v272 = vld [vmem:[%s244 + $0x38] sm:%s237]
            %273 = vst [vmem:[%s245 + $0x34] sm:%s237] %v272
            %v274 = vld [vmem:[%s244 + $0x1c] sm:%s237]
            %275 = vst [vmem:[%s245 + $0x38] sm:%s237] %v274
            %v276 = vld [vmem:[%s244 + $0x3c] sm:%s237]
            %277 = vst [vmem:[%s245 + $0x3c] sm:%s237] %v276
            %v278 = vld [vmem:[%s244 + $0x40] sm:%s237]
            %279 = vst [vmem:[%s245 + $0x40] sm:%s237] %v278
            %v280 = vld [vmem:[%s244 + $0x60] sm:%s237]
            %281 = vst [vmem:[%s245 + $0x44] sm:%s237] %v280
            %v282 = vld [vmem:[%s244 + $0x44] sm:%s237]
            %283 = vst [vmem:[%s245 + $0x48] sm:%s237] %v282
            %v284 = vld [vmem:[%s244 + $0x64] sm:%s237]
            %285 = vst [vmem:[%s245 + $0x4c] sm:%s237] %v284
            %v286 = vld [vmem:[%s244 + $0x48] sm:%s237]
            %287 = vst [vmem:[%s245 + $0x50] sm:%s237] %v286
            %v288 = vld [vmem:[%s244 + $0x68] sm:%s237]
            %289 = vst [vmem:[%s245 + $0x54] sm:%s237] %v288
            %v290 = vld [vmem:[%s244 + $0x4c] sm:%s237]
            %291 = vst [vmem:[%s245 + $0x58] sm:%s237] %v290
            %v292 = vld [vmem:[%s244 + $0x6c] sm:%s237]
            %293 = vst [vmem:[%s245 + $0x5c] sm:%s237] %v292
            %v294 = vld [vmem:[%s244 + $0x50] sm:%s237]
            %295 = vst [vmem:[%s245 + $0x60] sm:%s237] %v294
            %v296 = vld [vmem:[%s244 + $0x70] sm:%s237]
            %297 = vst [vmem:[%s245 + $0x64] sm:%s237] %v296
            %v298 = vld [vmem:[%s244 + $0x54] sm:%s237]
            %299 = vst [vmem:[%s245 + $0x68] sm:%s237] %v298
            %v300 = vld [vmem:[%s244 + $0x74] sm:%s237]
            %301 = vst [vmem:[%s245 + $0x6c] sm:%s237] %v300
            %v302 = vld [vmem:[%s244 + $0x58] sm:%s237]
            %303 = vst [vmem:[%s245 + $0x70] sm:%s237] %v302
            %v304 = vld [vmem:[%s244 + $0x78] sm:%s237]
            %305 = vst [vmem:[%s245 + $0x74] sm:%s237] %v304
            %v306 = vld [vmem:[%s244 + $0x5c] sm:%s237]
            %307 = vst [vmem:[%s245 + $0x78] sm:%s237] %v306
            %v308 = vld [vmem:[%s244 + $0x7c] sm:%s237]
            %309 = vst [vmem:[%s245 + $0x7c] sm:%s237] %v308
            %v310 = vld [vmem:[%s244 + $0x80] sm:%s237]
            %311 = vst [vmem:[%s245 + $0x80] sm:%s237] %v310
            %v312 = vld [vmem:[%s244 + $0xa0] sm:%s237]
            %313 = vst [vmem:[%s245 + $0x84] sm:%s237] %v312
            %v314 = vld [vmem:[%s244 + $0x84] sm:%s237]
            %315 = vst [vmem:[%s245 + $0x88] sm:%s237] %v314
            %v316 = vld [vmem:[%s244 + $0xa4] sm:%s237]
            %317 = vst [vmem:[%s245 + $0x8c] sm:%s237] %v316
            %v318 = vld [vmem:[%s244 + $0x88] sm:%s237]
            %319 = vst [vmem:[%s245 + $0x90] sm:%s237] %v318
            %v320 = vld [vmem:[%s244 + $0xa8] sm:%s237]
            %321 = vst [vmem:[%s245 + $0x94] sm:%s237] %v320
            %v322 = vld [vmem:[%s244 + $0x8c] sm:%s237]
            %323 = vst [vmem:[%s245 + $0x98] sm:%s237] %v322
            %v324 = vld [vmem:[%s244 + $0xac] sm:%s237]
            %325 = vst [vmem:[%s245 + $0x9c] sm:%s237] %v324
            %v326 = vld [vmem:[%s244 + $0x90] sm:%s237]
            %327 = vst [vmem:[%s245 + $0xa0] sm:%s237] %v326
            %v328 = vld [vmem:[%s244 + $0xb0] sm:%s237]
            %329 = vst [vmem:[%s245 + $0xa4] sm:%s237] %v328
            %v330 = vld [vmem:[%s244 + $0x94] sm:%s237]
            %331 = vst [vmem:[%s245 + $0xa8] sm:%s237] %v330
            %v332 = vld [vmem:[%s244 + $0xb4] sm:%s237]
            %333 = vst [vmem:[%s245 + $0xac] sm:%s237] %v332
            %v334 = vld [vmem:[%s244 + $0x98] sm:%s237]
            %335 = vst [vmem:[%s245 + $0xb0] sm:%s237] %v334
            %v336 = vld [vmem:[%s244 + $0xb8] sm:%s237]
            %337 = vst [vmem:[%s245 + $0xb4] sm:%s237] %v336
            %v338 = vld [vmem:[%s244 + $0x9c] sm:%s237]
            %339 = vst [vmem:[%s245 + $0xb8] sm:%s237] %v338
            %v340 = vld [vmem:[%s244 + $0xbc] sm:%s237]
            %341 = vst [vmem:[%s245 + $0xbc] sm:%s237] %v340
            %v342 = vld [vmem:[%s244 + $0xc0] sm:%s237]
            %343 = vst [vmem:[%s245 + $0xc0] sm:%s237] %v342
            %v344 = vld [vmem:[%s244 + $0xe0] sm:%s237]
            %345 = vst [vmem:[%s245 + $0xc4] sm:%s237] %v344
            %v346 = vld [vmem:[%s244 + $0xc4] sm:%s237]
            %347 = vst [vmem:[%s245 + $0xc8] sm:%s237] %v346
            %v348 = vld [vmem:[%s244 + $0xe4] sm:%s237]
            %349 = vst [vmem:[%s245 + $0xcc] sm:%s237] %v348
            %v350 = vld [vmem:[%s244 + $0xc8] sm:%s237]
            %351 = vst [vmem:[%s245 + $0xd0] sm:%s237] %v350
            %v352 = vld [vmem:[%s244 + $0xe8] sm:%s237]
            %353 = vst [vmem:[%s245 + $0xd4] sm:%s237] %v352
            %v354 = vld [vmem:[%s244 + $0xcc] sm:%s237]
            %355 = vst [vmem:[%s245 + $0xd8] sm:%s237] %v354
            %v356 = vld [vmem:[%s244 + $0xec] sm:%s237]
            %357 = vst [vmem:[%s245 + $0xdc] sm:%s237] %v356
            %v358 = vld [vmem:[%s244 + $0xd0] sm:%s237]
            %359 = vst [vmem:[%s245 + $0xe0] sm:%s237] %v358
            %v360 = vld [vmem:[%s244 + $0xf0] sm:%s237]
            %361 = vst [vmem:[%s245 + $0xe4] sm:%s237] %v360
            %v362 = vld [vmem:[%s244 + $0xd4] sm:%s237]
            %363 = vst [vmem:[%s245 + $0xe8] sm:%s237] %v362
            %v364 = vld [vmem:[%s244 + $0xf4] sm:%s237]
            %365 = vst [vmem:[%s245 + $0xec] sm:%s237] %v364
            %v366 = vld [vmem:[%s244 + $0xd8] sm:%s237]
            %367 = vst [vmem:[%s245 + $0xf0] sm:%s237] %v366
            %v368 = vld [vmem:[%s244 + $0xf8] sm:%s237]
            %369 = vst [vmem:[%s245 + $0xf4] sm:%s237] %v368
            %v370 = vld [vmem:[%s244 + $0xdc] sm:%s237]
            %371 = vst [vmem:[%s245 + $0xf8] sm:%s237] %v370
            %v372 = vld [vmem:[%s244 + $0xfc] sm:%s237]
            %373 = vst [vmem:[%s245 + $0xfc] sm:%s237] %v372
          $region86: #{pose_adjust_forward.1} parent=73 // loop_footer
            %s243 = sadd.s32 1, %s239
          $region87: #{pose_adjust_forward.1} parent=73 // loop_footer_branch
            %238 = sbr.rel target = $region83
          $region88: #{pose_adjust_forward.1} parent=73 // loop_exit
            _
        $region74: #{pose_adjust_forward.1} parent=58 // pred_fallthru
          _
      $region59: #{pose_adjust_forward.1} parent=20 // pred_fallthru
        _
      // Predicated region
      $region60: #{pose_adjust_forward.1} parent=20 // pred_check
        %p79 = pneg %p75
      $region61: #{pose_adjust_forward.1} parent=20 // pred_check_branch
        %81 = sbr.rel (%p79) target = $region63
      $region62: #{pose_adjust_forward.1} parent=20 // pred_region
        %s82 = sshllo.u32 0, 4
        loop: start=0, step=1, limit=1
        $region64: #{pose_adjust_forward.1} parent=62 // loop_pre_header
          _
        $region65: #{pose_adjust_forward.1} parent=62 // loop_header
          %s84 = sphi 0, %s88
          %p85 = scmp.ge.s32.totalorder %s84, 1
          %s89 = sphi %s4, %s4
          %s90 = sphi [#allocation3], [#allocation3]
        $region66: #{pose_adjust_forward.1} parent=62 // loop_header_branch
          %87 = sbr.rel (%p85) target = $region70
        $region67: #{pose_adjust_forward.1} parent=62 // loop_body
          %v91 = vld [vmem:[%s89] sm:%s82]
          %92 = vst [vmem:[%s90] sm:%s82] %v91
          %v93 = vld [vmem:[%s89 + $0x20] sm:%s82]
          %94 = vst [vmem:[%s90 + $0x4] sm:%s82] %v93
          %v95 = vld [vmem:[%s89 + $0x4] sm:%s82]
          %96 = vst [vmem:[%s90 + $0x8] sm:%s82] %v95
          %v97 = vld [vmem:[%s89 + $0x24] sm:%s82]
          %98 = vst [vmem:[%s90 + $0xc] sm:%s82] %v97
          %v99 = vld [vmem:[%s89 + $0x8] sm:%s82]
          %100 = vst [vmem:[%s90 + $0x10] sm:%s82] %v99
          %v101 = vld [vmem:[%s89 + $0x28] sm:%s82]
          %102 = vst [vmem:[%s90 + $0x14] sm:%s82] %v101
          %v103 = vld [vmem:[%s89 + $0xc] sm:%s82]
          %104 = vst [vmem:[%s90 + $0x18] sm:%s82] %v103
          %v105 = vld [vmem:[%s89 + $0x2c] sm:%s82]
          %106 = vst [vmem:[%s90 + $0x1c] sm:%s82] %v105
          %v107 = vld [vmem:[%s89 + $0x10] sm:%s82]
          %108 = vst [vmem:[%s90 + $0x20] sm:%s82] %v107
          %v109 = vld [vmem:[%s89 + $0x30] sm:%s82]
          %110 = vst [vmem:[%s90 + $0x24] sm:%s82] %v109
          %v111 = vld [vmem:[%s89 + $0x14] sm:%s82]
          %112 = vst [vmem:[%s90 + $0x28] sm:%s82] %v111
          %v113 = vld [vmem:[%s89 + $0x34] sm:%s82]
          %114 = vst [vmem:[%s90 + $0x2c] sm:%s82] %v113
          %v115 = vld [vmem:[%s89 + $0x18] sm:%s82]
          %116 = vst [vmem:[%s90 + $0x30] sm:%s82] %v115
          %v117 = vld [vmem:[%s89 + $0x38] sm:%s82]
          %118 = vst [vmem:[%s90 + $0x34] sm:%s82] %v117
          %v119 = vld [vmem:[%s89 + $0x1c] sm:%s82]
          %120 = vst [vmem:[%s90 + $0x38] sm:%s82] %v119
          %v121 = vld [vmem:[%s89 + $0x3c] sm:%s82]
          %122 = vst [vmem:[%s90 + $0x3c] sm:%s82] %v121
          %v123 = vld [vmem:[%s89 + $0x40] sm:%s82]
          %124 = vst [vmem:[%s90 + $0x40] sm:%s82] %v123
          %v125 = vld [vmem:[%s89 + $0x60] sm:%s82]
          %126 = vst [vmem:[%s90 + $0x44] sm:%s82] %v125
          %v127 = vld [vmem:[%s89 + $0x44] sm:%s82]
          %128 = vst [vmem:[%s90 + $0x48] sm:%s82] %v127
          %v129 = vld [vmem:[%s89 + $0x64] sm:%s82]
          %130 = vst [vmem:[%s90 + $0x4c] sm:%s82] %v129
          %v131 = vld [vmem:[%s89 + $0x48] sm:%s82]
          %132 = vst [vmem:[%s90 + $0x50] sm:%s82] %v131
          %v133 = vld [vmem:[%s89 + $0x68] sm:%s82]
          %134 = vst [vmem:[%s90 + $0x54] sm:%s82] %v133
          %v135 = vld [vmem:[%s89 + $0x4c] sm:%s82]
          %136 = vst [vmem:[%s90 + $0x58] sm:%s82] %v135
          %v137 = vld [vmem:[%s89 + $0x6c] sm:%s82]
          %138 = vst [vmem:[%s90 + $0x5c] sm:%s82] %v137
          %v139 = vld [vmem:[%s89 + $0x50] sm:%s82]
          %140 = vst [vmem:[%s90 + $0x60] sm:%s82] %v139
          %v141 = vld [vmem:[%s89 + $0x70] sm:%s82]
          %142 = vst [vmem:[%s90 + $0x64] sm:%s82] %v141
          %v143 = vld [vmem:[%s89 + $0x54] sm:%s82]
          %144 = vst [vmem:[%s90 + $0x68] sm:%s82] %v143
          %v145 = vld [vmem:[%s89 + $0x74] sm:%s82]
          %146 = vst [vmem:[%s90 + $0x6c] sm:%s82] %v145
          %v147 = vld [vmem:[%s89 + $0x58] sm:%s82]
          %148 = vst [vmem:[%s90 + $0x70] sm:%s82] %v147
          %v149 = vld [vmem:[%s89 + $0x78] sm:%s82]
          %150 = vst [vmem:[%s90 + $0x74] sm:%s82] %v149
          %v151 = vld [vmem:[%s89 + $0x5c] sm:%s82]
          %152 = vst [vmem:[%s90 + $0x78] sm:%s82] %v151
          %v153 = vld [vmem:[%s89 + $0x7c] sm:%s82]
          %154 = vst [vmem:[%s90 + $0x7c] sm:%s82] %v153
          %v155 = vld [vmem:[%s89 + $0x80] sm:%s82]
          %156 = vst [vmem:[%s90 + $0x80] sm:%s82] %v155
          %v157 = vld [vmem:[%s89 + $0xa0] sm:%s82]
          %158 = vst [vmem:[%s90 + $0x84] sm:%s82] %v157
          %v159 = vld [vmem:[%s89 + $0x84] sm:%s82]
          %160 = vst [vmem:[%s90 + $0x88] sm:%s82] %v159
          %v161 = vld [vmem:[%s89 + $0xa4] sm:%s82]
          %162 = vst [vmem:[%s90 + $0x8c] sm:%s82] %v161
          %v163 = vld [vmem:[%s89 + $0x88] sm:%s82]
          %164 = vst [vmem:[%s90 + $0x90] sm:%s82] %v163
          %v165 = vld [vmem:[%s89 + $0xa8] sm:%s82]
          %166 = vst [vmem:[%s90 + $0x94] sm:%s82] %v165
          %v167 = vld [vmem:[%s89 + $0x8c] sm:%s82]
          %168 = vst [vmem:[%s90 + $0x98] sm:%s82] %v167
          %v169 = vld [vmem:[%s89 + $0xac] sm:%s82]
          %170 = vst [vmem:[%s90 + $0x9c] sm:%s82] %v169
          %v171 = vld [vmem:[%s89 + $0x90] sm:%s82]
          %172 = vst [vmem:[%s90 + $0xa0] sm:%s82] %v171
          %v173 = vld [vmem:[%s89 + $0xb0] sm:%s82]
          %174 = vst [vmem:[%s90 + $0xa4] sm:%s82] %v173
          %v175 = vld [vmem:[%s89 + $0x94] sm:%s82]
          %176 = vst [vmem:[%s90 + $0xa8] sm:%s82] %v175
          %v177 = vld [vmem:[%s89 + $0xb4] sm:%s82]
          %178 = vst [vmem:[%s90 + $0xac] sm:%s82] %v177
          %v179 = vld [vmem:[%s89 + $0x98] sm:%s82]
          %180 = vst [vmem:[%s90 + $0xb0] sm:%s82] %v179
          %v181 = vld [vmem:[%s89 + $0xb8] sm:%s82]
          %182 = vst [vmem:[%s90 + $0xb4] sm:%s82] %v181
          %v183 = vld [vmem:[%s89 + $0x9c] sm:%s82]
          %184 = vst [vmem:[%s90 + $0xb8] sm:%s82] %v183
          %v185 = vld [vmem:[%s89 + $0xbc] sm:%s82]
          %186 = vst [vmem:[%s90 + $0xbc] sm:%s82] %v185
          %v187 = vld [vmem:[%s89 + $0xc0] sm:%s82]
          %188 = vst [vmem:[%s90 + $0xc0] sm:%s82] %v187
          %v189 = vld [vmem:[%s89 + $0xe0] sm:%s82]
          %190 = vst [vmem:[%s90 + $0xc4] sm:%s82] %v189
          %v191 = vld [vmem:[%s89 + $0xc4] sm:%s82]
          %192 = vst [vmem:[%s90 + $0xc8] sm:%s82] %v191
          %v193 = vld [vmem:[%s89 + $0xe4] sm:%s82]
          %194 = vst [vmem:[%s90 + $0xcc] sm:%s82] %v193
          %v195 = vld [vmem:[%s89 + $0xc8] sm:%s82]
          %196 = vst [vmem:[%s90 + $0xd0] sm:%s82] %v195
          %v197 = vld [vmem:[%s89 + $0xe8] sm:%s82]
          %198 = vst [vmem:[%s90 + $0xd4] sm:%s82] %v197
          %v199 = vld [vmem:[%s89 + $0xcc] sm:%s82]
          %200 = vst [vmem:[%s90 + $0xd8] sm:%s82] %v199
          %v201 = vld [vmem:[%s89 + $0xec] sm:%s82]
          %202 = vst [vmem:[%s90 + $0xdc] sm:%s82] %v201
          %v203 = vld [vmem:[%s89 + $0xd0] sm:%s82]
          %204 = vst [vmem:[%s90 + $0xe0] sm:%s82] %v203
          %v205 = vld [vmem:[%s89 + $0xf0] sm:%s82]
          %206 = vst [vmem:[%s90 + $0xe4] sm:%s82] %v205
          %v207 = vld [vmem:[%s89 + $0xd4] sm:%s82]
          %208 = vst [vmem:[%s90 + $0xe8] sm:%s82] %v207
          %v209 = vld [vmem:[%s89 + $0xf4] sm:%s82]
          %210 = vst [vmem:[%s90 + $0xec] sm:%s82] %v209
          %v211 = vld [vmem:[%s89 + $0xd8] sm:%s82]
          %212 = vst [vmem:[%s90 + $0xf0] sm:%s82] %v211
          %v213 = vld [vmem:[%s89 + $0xf8] sm:%s82]
          %214 = vst [vmem:[%s90 + $0xf4] sm:%s82] %v213
          %v215 = vld [vmem:[%s89 + $0xdc] sm:%s82]
          %216 = vst [vmem:[%s90 + $0xf8] sm:%s82] %v215
          %v217 = vld [vmem:[%s89 + $0xfc] sm:%s82]
          %218 = vst [vmem:[%s90 + $0xfc] sm:%s82] %v217
        $region68: #{pose_adjust_forward.1} parent=62 // loop_footer
          %s88 = sadd.s32 1, %s84
        $region69: #{pose_adjust_forward.1} parent=62 // loop_footer_branch
          %83 = sbr.rel target = $region65
        $region70: #{pose_adjust_forward.1} parent=62 // loop_exit
          _
      $region63: #{pose_adjust_forward.1} parent=20 // pred_fallthru
        _
      // Predicated region
      $region89: #{pose_adjust_forward.1} parent=20 // pred_check
        _
      $region90: #{pose_adjust_forward.1} parent=20 // pred_check_branch
        %376 = sbr.rel (0) target = $region92
      $region91: #{pose_adjust_forward.1} parent=20 // pred_region
        %377 = vsyncadd [#allocation6], 4096
      $region92: #{pose_adjust_forward.1} parent=20 // pred_fallthru
        _
    $region21: #{pose_adjust_forward.1} parent=1 // pred_fallthru
      _
    %v378 = vld [vmem:[#allocation2] sm:$0x3]
    %v379 = vld [vmem:[%s0] sm:$0xff]
    %v380 = vld [vmem:[%s0 + $0x8] sm:$0xff]
    %v383 = vcombine.high %v379, %v379
    %v385 = vunpack.c.l.s4 1983009808
    %v386 = vunpack.c.0.s8 %v385
    %v387 = vlaneseq
    %v388 = vshrl.u32 %v387, 7
    %v389 = vsub.s32 %v386, %v388
    %v390 = vrot.slane %v379, %v389
    %v392 = vunpack.c.l.s4 1983009808
    %v393 = vunpack.c.0.s8 %v392
    %v394 = vlaneseq
    %v395 = vshrl.u32 %v394, 7
    %v396 = vsub.s32 %v393, %v395
    %v397 = vrot.slane %v383, %v396
    %v398 = vcombine.high %v390, %v390
    %v399 = vcombine.high %v397, %v397
    %v400 = vcombine.high %v380, %v380
    %v402 = vunpack.c.l.s4 1983009808
    %v403 = vunpack.c.0.s8 %v402
    %v404 = vlaneseq
    %v405 = vshrl.u32 %v404, 7
    %v406 = vsub.s32 %v403, %v405
    %v407 = vrot.slane %v380, %v406
    %v409 = vunpack.c.l.s4 1983009808
    %v410 = vunpack.c.0.s8 %v409
    %v411 = vlaneseq
    %v412 = vshrl.u32 %v411, 7
    %v413 = vsub.s32 %v410, %v412
    %v414 = vrot.slane %v400, %v413
    %v415 = vcombine.high %v407, %v407
    %v416 = vcombine.high %v414, %v414
    %v425 = vpack.c.bf16 %v390, %v390
    %v426 = vpack.c.bf16 %v398, %v398
    %v427 = vpack.c.bf16 %v397, %v397
    %v428 = vpack.c.bf16 %v399, %v399
    %v429 = vpack.c.bf16 %v407, %v407
    %v430 = vpack.c.bf16 %v415, %v415
    %v431 = vpack.c.bf16 %v414, %v414
    %v432 = vpack.c.bf16 %v416, %v416
    %v433 = vld [vmem:[%s1] sm:$0xf]
    %v434 = vld [vmem:[%s1 + $0x4] sm:$0xf]
    %v435 = vld [vmem:[%s1 + $0x8] sm:$0xf]
    %v436 = vld [vmem:[%s1 + $0xc] sm:$0xf]
    %v437 = vld [vmem:[%s1 + $0x10] sm:$0xf]
    %v438 = vld [vmem:[%s1 + $0x14] sm:$0xf]
    %v439 = vld [vmem:[%s1 + $0x18] sm:$0xf]
    %v440 = vld [vmem:[%s1 + $0x1c] sm:$0xf]
    %v441 = vld [vmem:[%s1 + $0x20] sm:$0xf]
    %v442 = vld [vmem:[%s1 + $0x24] sm:$0xf]
    %v443 = vld [vmem:[%s1 + $0x28] sm:$0xf]
    %v444 = vld [vmem:[%s1 + $0x2c] sm:$0xf]
    %v445 = vld [vmem:[%s1 + $0x30] sm:$0xf]
    %v446 = vld [vmem:[%s1 + $0x34] sm:$0xf]
    %v447 = vld [vmem:[%s1 + $0x38] sm:$0xf]
    %v448 = vld [vmem:[%s1 + $0x3c] sm:$0xf]
    %v449 = vld [vmem:[%s1 + $0x40] sm:$0xf]
    %v450 = vld [vmem:[%s1 + $0x44] sm:$0xf]
    %v451 = vld [vmem:[%s1 + $0x48] sm:$0xf]
    %v452 = vld [vmem:[%s1 + $0x4c] sm:$0xf]
    %v453 = vld [vmem:[%s1 + $0x50] sm:$0xf]
    %v454 = vld [vmem:[%s1 + $0x54] sm:$0xf]
    %v455 = vld [vmem:[%s1 + $0x58] sm:$0xf]
    %v456 = vld [vmem:[%s1 + $0x5c] sm:$0xf]
    %v457 = vld [vmem:[%s1 + $0x60] sm:$0xf]
    %v458 = vld [vmem:[%s1 + $0x64] sm:$0xf]
    %v459 = vld [vmem:[%s1 + $0x68] sm:$0xf]
    %v460 = vld [vmem:[%s1 + $0x6c] sm:$0xf]
    %v461 = vld [vmem:[%s1 + $0x70] sm:$0xf]
    %v462 = vld [vmem:[%s1 + $0x74] sm:$0xf]
    %v463 = vld [vmem:[%s1 + $0x78] sm:$0xf]
    %v464 = vld [vmem:[%s1 + $0x7c] sm:$0xf]
    %v465 = vld [vmem:[%s1 + $0x80] sm:$0xf]
    %v466 = vld [vmem:[%s1 + $0x84] sm:$0xf]
    %v467 = vld [vmem:[%s1 + $0x88] sm:$0xf]
    %v468 = vld [vmem:[%s1 + $0x8c] sm:$0xf]
    %v469 = vld [vmem:[%s1 + $0x90] sm:$0xf]
    %v470 = vld [vmem:[%s1 + $0x94] sm:$0xf]
    %v471 = vld [vmem:[%s1 + $0x98] sm:$0xf]
    %v472 = vld [vmem:[%s1 + $0x9c] sm:$0xf]
    %v473 = vld [vmem:[%s1 + $0xa0] sm:$0xf]
    %v474 = vld [vmem:[%s1 + $0xa4] sm:$0xf]
    %v475 = vld [vmem:[%s1 + $0xa8] sm:$0xf]
    %v476 = vld [vmem:[%s1 + $0xac] sm:$0xf]
    %v477 = vld [vmem:[%s1 + $0xb0] sm:$0xf]
    %v478 = vld [vmem:[%s1 + $0xb4] sm:$0xf]
    %v479 = vld [vmem:[%s1 + $0xb8] sm:$0xf]
    %v480 = vld [vmem:[%s1 + $0xbc] sm:$0xf]
    %v481 = vld [vmem:[%s1 + $0xc0] sm:$0xf]
    %v482 = vld [vmem:[%s1 + $0xc4] sm:$0xf]
    %v483 = vld [vmem:[%s1 + $0xc8] sm:$0xf]
    %v484 = vld [vmem:[%s1 + $0xcc] sm:$0xf]
    %v485 = vld [vmem:[%s1 + $0xd0] sm:$0xf]
    %v486 = vld [vmem:[%s1 + $0xd4] sm:$0xf]
    %v487 = vld [vmem:[%s1 + $0xd8] sm:$0xf]
    %v488 = vld [vmem:[%s1 + $0xdc] sm:$0xf]
    %v489 = vld [vmem:[%s1 + $0xe0] sm:$0xf]
    %v490 = vld [vmem:[%s1 + $0xe4] sm:$0xf]
    %v491 = vld [vmem:[%s1 + $0xe8] sm:$0xf]
    %v492 = vld [vmem:[%s1 + $0xec] sm:$0xf]
    %v493 = vld [vmem:[%s1 + $0xf0] sm:$0xf]
    %v494 = vld [vmem:[%s1 + $0xf4] sm:$0xf]
    %v495 = vld [vmem:[%s1 + $0xf8] sm:$0xf]
    %v496 = vld [vmem:[%s1 + $0xfc] sm:$0xf]
    %v497 = vld [vmem:[%s1 + $0x100] sm:$0xf]
    %v498 = vld [vmem:[%s1 + $0x104] sm:$0xf]
    %v499 = vld [vmem:[%s1 + $0x108] sm:$0xf]
    %v500 = vld [vmem:[%s1 + $0x10c] sm:$0xf]
    %v501 = vld [vmem:[%s1 + $0x110] sm:$0xf]
    %v502 = vld [vmem:[%s1 + $0x114] sm:$0xf]
    %v503 = vld [vmem:[%s1 + $0x118] sm:$0xf]
    %v504 = vld [vmem:[%s1 + $0x11c] sm:$0xf]
    %v505 = vld [vmem:[%s1 + $0x120] sm:$0xf]
    %v506 = vld [vmem:[%s1 + $0x124] sm:$0xf]
    %v507 = vld [vmem:[%s1 + $0x128] sm:$0xf]
    %v508 = vld [vmem:[%s1 + $0x12c] sm:$0xf]
    %v509 = vld [vmem:[%s1 + $0x130] sm:$0xf]
    %v510 = vld [vmem:[%s1 + $0x134] sm:$0xf]
    %v511 = vld [vmem:[%s1 + $0x138] sm:$0xf]
    %v512 = vld [vmem:[%s1 + $0x13c] sm:$0xf]
    %v513 = vld [vmem:[%s1 + $0x140] sm:$0xf]
    %v514 = vld [vmem:[%s1 + $0x144] sm:$0xf]
    %v515 = vld [vmem:[%s1 + $0x148] sm:$0xf]
    %v516 = vld [vmem:[%s1 + $0x14c] sm:$0xf]
    %v517 = vld [vmem:[%s1 + $0x150] sm:$0xf]
    %v518 = vld [vmem:[%s1 + $0x154] sm:$0xf]
    %v519 = vld [vmem:[%s1 + $0x158] sm:$0xf]
    %v520 = vld [vmem:[%s1 + $0x15c] sm:$0xf]
    %v521 = vld [vmem:[%s1 + $0x160] sm:$0xf]
    %v522 = vld [vmem:[%s1 + $0x164] sm:$0xf]
    %v523 = vld [vmem:[%s1 + $0x168] sm:$0xf]
    %v524 = vld [vmem:[%s1 + $0x16c] sm:$0xf]
    %v525 = vld [vmem:[%s1 + $0x170] sm:$0xf]
    %v526 = vld [vmem:[%s1 + $0x174] sm:$0xf]
    %v527 = vld [vmem:[%s1 + $0x178] sm:$0xf]
    %v528 = vld [vmem:[%s1 + $0x17c] sm:$0xf]
    %v529 = vld [vmem:[%s1 + $0x180] sm:$0xf]
    %v530 = vld [vmem:[%s1 + $0x184] sm:$0xf]
    %v531 = vld [vmem:[%s1 + $0x188] sm:$0xf]
    %v532 = vld [vmem:[%s1 + $0x18c] sm:$0xf]
    %v533 = vld [vmem:[%s1 + $0x190] sm:$0xf]
    %v534 = vld [vmem:[%s1 + $0x194] sm:$0xf]
    %v535 = vld [vmem:[%s1 + $0x198] sm:$0xf]
    %v536 = vld [vmem:[%s1 + $0x19c] sm:$0xf]
    %v537 = vld [vmem:[%s1 + $0x1a0] sm:$0xf]
    %v538 = vld [vmem:[%s1 + $0x1a4] sm:$0xf]
    %v539 = vld [vmem:[%s1 + $0x1a8] sm:$0xf]
    %v540 = vld [vmem:[%s1 + $0x1ac] sm:$0xf]
    %v541 = vld [vmem:[%s1 + $0x1b0] sm:$0xf]
    %v542 = vld [vmem:[%s1 + $0x1b4] sm:$0xf]
    %v543 = vld [vmem:[%s1 + $0x1b8] sm:$0xf]
    %v544 = vld [vmem:[%s1 + $0x1bc] sm:$0xf]
    %v545 = vld [vmem:[%s1 + $0x1c0] sm:$0xf]
    %v546 = vld [vmem:[%s1 + $0x1c4] sm:$0xf]
    %v547 = vld [vmem:[%s1 + $0x1c8] sm:$0xf]
    %v548 = vld [vmem:[%s1 + $0x1cc] sm:$0xf]
    %v549 = vld [vmem:[%s1 + $0x1d0] sm:$0xf]
    %v550 = vld [vmem:[%s1 + $0x1d4] sm:$0xf]
    %v551 = vld [vmem:[%s1 + $0x1d8] sm:$0xf]
    %v552 = vld [vmem:[%s1 + $0x1dc] sm:$0xf]
    %v553 = vld [vmem:[%s1 + $0x1e0] sm:$0xf]
    %v554 = vld [vmem:[%s1 + $0x1e4] sm:$0xf]
    %v555 = vld [vmem:[%s1 + $0x1e8] sm:$0xf]
    %v556 = vld [vmem:[%s1 + $0x1ec] sm:$0xf]
    %v557 = vld [vmem:[%s1 + $0x1f0] sm:$0xf]
    %v558 = vld [vmem:[%s1 + $0x1f4] sm:$0xf]
    %v559 = vld [vmem:[%s1 + $0x1f8] sm:$0xf]
    %v560 = vld [vmem:[%s1 + $0x1fc] sm:$0xf]
    %v689 = vunpack.c.l.b16 %v433
    %v690 = vunpack.c.l.b16 %v434
    %v691 = vunpack.c.l.b16 %v435
    %v692 = vunpack.c.l.b16 %v436
    %v693 = vunpack.c.l.b16 %v437
    %v694 = vunpack.c.l.b16 %v438
    %v695 = vunpack.c.l.b16 %v439
    %v696 = vunpack.c.l.b16 %v440
    %v697 = vunpack.c.l.b16 %v441
    %v698 = vunpack.c.l.b16 %v442
    %v699 = vunpack.c.l.b16 %v443
    %v700 = vunpack.c.l.b16 %v444
    %v701 = vunpack.c.l.b16 %v445
    %v702 = vunpack.c.l.b16 %v446
    %v703 = vunpack.c.l.b16 %v447
    %v704 = vunpack.c.l.b16 %v448
    %v705 = vunpack.c.l.b16 %v449
    %v706 = vunpack.c.l.b16 %v450
    %v707 = vunpack.c.l.b16 %v451
    %v708 = vunpack.c.l.b16 %v452
    %v709 = vunpack.c.l.b16 %v453
    %v710 = vunpack.c.l.b16 %v454
    %v711 = vunpack.c.l.b16 %v455
    %v712 = vunpack.c.l.b16 %v456
    %v713 = vunpack.c.l.b16 %v457
    %v714 = vunpack.c.l.b16 %v458
    %v715 = vunpack.c.l.b16 %v459
    %v716 = vunpack.c.l.b16 %v460
    %v717 = vunpack.c.l.b16 %v461
    %v718 = vunpack.c.l.b16 %v462
    %v719 = vunpack.c.l.b16 %v463
    %v720 = vunpack.c.l.b16 %v464
    %v721 = vunpack.c.l.b16 %v465
    %v722 = vunpack.c.l.b16 %v466
    %v723 = vunpack.c.l.b16 %v467
    %v724 = vunpack.c.l.b16 %v468
    %v725 = vunpack.c.l.b16 %v469
    %v726 = vunpack.c.l.b16 %v470
    %v727 = vunpack.c.l.b16 %v471
    %v728 = vunpack.c.l.b16 %v472
    %v729 = vunpack.c.l.b16 %v473
    %v730 = vunpack.c.l.b16 %v474
    %v731 = vunpack.c.l.b16 %v475
    %v732 = vunpack.c.l.b16 %v476
    %v733 = vunpack.c.l.b16 %v477
    %v734 = vunpack.c.l.b16 %v478
    %v735 = vunpack.c.l.b16 %v479
    %v736 = vunpack.c.l.b16 %v480
    %v737 = vunpack.c.l.b16 %v481
    %v738 = vunpack.c.l.b16 %v482
    %v739 = vunpack.c.l.b16 %v483
    %v740 = vunpack.c.l.b16 %v484
    %v741 = vunpack.c.l.b16 %v485
    %v742 = vunpack.c.l.b16 %v486
    %v743 = vunpack.c.l.b16 %v487
    %v744 = vunpack.c.l.b16 %v488
    %v745 = vunpack.c.l.b16 %v489
    %v746 = vunpack.c.l.b16 %v490
    %v747 = vunpack.c.l.b16 %v491
    %v748 = vunpack.c.l.b16 %v492
    %v749 = vunpack.c.l.b16 %v493
    %v750 = vunpack.c.l.b16 %v494
    %v751 = vunpack.c.l.b16 %v495
    %v752 = vunpack.c.l.b16 %v496
    %v753 = vunpack.c.l.b16 %v497
    %v754 = vunpack.c.l.b16 %v498
    %v755 = vunpack.c.l.b16 %v499
    %v756 = vunpack.c.l.b16 %v500
    %v757 = vunpack.c.l.b16 %v501
    %v758 = vunpack.c.l.b16 %v502
    %v759 = vunpack.c.l.b16 %v503
    %v760 = vunpack.c.l.b16 %v504
    %v761 = vunpack.c.l.b16 %v505
    %v762 = vunpack.c.l.b16 %v506
    %v763 = vunpack.c.l.b16 %v507
    %v764 = vunpack.c.l.b16 %v508
    %v765 = vunpack.c.l.b16 %v509
    %v766 = vunpack.c.l.b16 %v510
    %v767 = vunpack.c.l.b16 %v511
    %v768 = vunpack.c.l.b16 %v512
    %v769 = vunpack.c.l.b16 %v513
    %v770 = vunpack.c.l.b16 %v514
    %v771 = vunpack.c.l.b16 %v515
    %v772 = vunpack.c.l.b16 %v516
    %v773 = vunpack.c.l.b16 %v517
    %v774 = vunpack.c.l.b16 %v518
    %v775 = vunpack.c.l.b16 %v519
    %v776 = vunpack.c.l.b16 %v520
    %v777 = vunpack.c.l.b16 %v521
    %v778 = vunpack.c.l.b16 %v522
    %v779 = vunpack.c.l.b16 %v523
    %v780 = vunpack.c.l.b16 %v524
    %v781 = vunpack.c.l.b16 %v525
    %v782 = vunpack.c.l.b16 %v526
    %v783 = vunpack.c.l.b16 %v527
    %v784 = vunpack.c.l.b16 %v528
    %v785 = vunpack.c.l.b16 %v529
    %v786 = vunpack.c.l.b16 %v530
    %v787 = vunpack.c.l.b16 %v531
    %v788 = vunpack.c.l.b16 %v532
    %v789 = vunpack.c.l.b16 %v533
    %v790 = vunpack.c.l.b16 %v534
    %v791 = vunpack.c.l.b16 %v535
    %v792 = vunpack.c.l.b16 %v536
    %v793 = vunpack.c.l.b16 %v537
    %v794 = vunpack.c.l.b16 %v538
    %v795 = vunpack.c.l.b16 %v539
    %v796 = vunpack.c.l.b16 %v540
    %v797 = vunpack.c.l.b16 %v541
    %v798 = vunpack.c.l.b16 %v542
    %v799 = vunpack.c.l.b16 %v543
    %v800 = vunpack.c.l.b16 %v544
    %v801 = vunpack.c.l.b16 %v545
    %v802 = vunpack.c.l.b16 %v546
    %v803 = vunpack.c.l.b16 %v547
    %v804 = vunpack.c.l.b16 %v548
    %v805 = vunpack.c.l.b16 %v549
    %v806 = vunpack.c.l.b16 %v550
    %v807 = vunpack.c.l.b16 %v551
    %v808 = vunpack.c.l.b16 %v552
    %v809 = vunpack.c.l.b16 %v553
    %v810 = vunpack.c.l.b16 %v554
    %v811 = vunpack.c.l.b16 %v555
    %v812 = vunpack.c.l.b16 %v556
    %v813 = vunpack.c.l.b16 %v557
    %v814 = vunpack.c.l.b16 %v558
    %v815 = vunpack.c.l.b16 %v559
    %v816 = vunpack.c.l.b16 %v560
    %v817 = vpack.c.b16 %v690, %v689
    %v818 = vpack.c.b16 %v692, %v691
    %v819 = vpack.c.b16 %v694, %v693
    %v820 = vpack.c.b16 %v696, %v695
    %v821 = vpack.c.b16 %v698, %v697
    %v822 = vpack.c.b16 %v700, %v699
    %v823 = vpack.c.b16 %v702, %v701
    %v824 = vpack.c.b16 %v704, %v703
    %v825 = vpack.c.b16 %v706, %v705
    %v826 = vpack.c.b16 %v708, %v707
    %v827 = vpack.c.b16 %v710, %v709
    %v828 = vpack.c.b16 %v712, %v711
    %v829 = vpack.c.b16 %v714, %v713
    %v830 = vpack.c.b16 %v716, %v715
    %v831 = vpack.c.b16 %v718, %v717
    %v832 = vpack.c.b16 %v720, %v719
    %v833 = vpack.c.b16 %v722, %v721
    %v834 = vpack.c.b16 %v724, %v723
    %v835 = vpack.c.b16 %v726, %v725
    %v836 = vpack.c.b16 %v728, %v727
    %v837 = vpack.c.b16 %v730, %v729
    %v838 = vpack.c.b16 %v732, %v731
    %v839 = vpack.c.b16 %v734, %v733
    %v840 = vpack.c.b16 %v736, %v735
    %v841 = vpack.c.b16 %v738, %v737
    %v842 = vpack.c.b16 %v740, %v739
    %v843 = vpack.c.b16 %v742, %v741
    %v844 = vpack.c.b16 %v744, %v743
    %v845 = vpack.c.b16 %v746, %v745
    %v846 = vpack.c.b16 %v748, %v747
    %v847 = vpack.c.b16 %v750, %v749
    %v848 = vpack.c.b16 %v752, %v751
    %v849 = vpack.c.b16 %v754, %v753
    %v850 = vpack.c.b16 %v756, %v755
    %v851 = vpack.c.b16 %v758, %v757
    %v852 = vpack.c.b16 %v760, %v759
    %v853 = vpack.c.b16 %v762, %v761
    %v854 = vpack.c.b16 %v764, %v763
    %v855 = vpack.c.b16 %v766, %v765
    %v856 = vpack.c.b16 %v768, %v767
    %v857 = vpack.c.b16 %v770, %v769
    %v858 = vpack.c.b16 %v772, %v771
    %v859 = vpack.c.b16 %v774, %v773
    %v860 = vpack.c.b16 %v776, %v775
    %v861 = vpack.c.b16 %v778, %v777
    %v862 = vpack.c.b16 %v780, %v779
    %v863 = vpack.c.b16 %v782, %v781
    %v864 = vpack.c.b16 %v784, %v783
    %v865 = vpack.c.b16 %v786, %v785
    %v866 = vpack.c.b16 %v788, %v787
    %v867 = vpack.c.b16 %v790, %v789
    %v868 = vpack.c.b16 %v792, %v791
    %v869 = vpack.c.b16 %v794, %v793
    %v870 = vpack.c.b16 %v796, %v795
    %v871 = vpack.c.b16 %v798, %v797
    %v872 = vpack.c.b16 %v800, %v799
    %v873 = vpack.c.b16 %v802, %v801
    %v874 = vpack.c.b16 %v804, %v803
    %v875 = vpack.c.b16 %v806, %v805
    %v876 = vpack.c.b16 %v808, %v807
    %v877 = vpack.c.b16 %v810, %v809
    %v878 = vpack.c.b16 %v812, %v811
    %v879 = vpack.c.b16 %v814, %v813
    %v880 = vpack.c.b16 %v816, %v815
    %945 = vmatprep.subr.bf16.mxu0 0
    %946 = vmatpush1.bf16.msra.mxu0 %v817
    %947 = vmatprep.subr.bf16.mxu0 0
    %948 = vmatpush1.bf16.msra.mxu0 %v818
    %949 = vmatprep.subr.bf16.mxu0 0
    %950 = vmatpush1.bf16.msra.mxu0 %v819
    %951 = vmatprep.subr.bf16.mxu0 0
    %952 = vmatpush1.bf16.msra.mxu0 %v820
    %953 = vmatprep.subr.bf16.mxu0 0
    %954 = vmatpush1.bf16.msra.mxu0 %v821
    %955 = vmatprep.subr.bf16.mxu0 0
    %956 = vmatpush1.bf16.msra.mxu0 %v822
    %957 = vmatprep.subr.bf16.mxu0 0
    %958 = vmatpush1.bf16.msra.mxu0 %v823
    %959 = vmatprep.subr.bf16.mxu0 0
    %960 = vmatpush1.bf16.msra.mxu0 %v824
    %961 = vmatprep.subr.bf16.mxu0 0
    %962 = vmatpush1.bf16.msra.mxu0 %v825
    %963 = vmatprep.subr.bf16.mxu0 0
    %964 = vmatpush1.bf16.msra.mxu0 %v826
    %965 = vmatprep.subr.bf16.mxu0 0
    %966 = vmatpush1.bf16.msra.mxu0 %v827
    %967 = vmatprep.subr.bf16.mxu0 0
    %968 = vmatpush1.bf16.msra.mxu0 %v828
    %969 = vmatprep.subr.bf16.mxu0 0
    %970 = vmatpush1.bf16.msra.mxu0 %v829
    %971 = vmatprep.subr.bf16.mxu0 0
    %972 = vmatpush1.bf16.msra.mxu0 %v830
    %973 = vmatprep.subr.bf16.mxu0 0
    %974 = vmatpush1.bf16.msra.mxu0 %v831
    %975 = vmatprep.subr.bf16.mxu0 0
    %976 = vmatpush1.bf16.msra.mxu0 %v832
    %977 = vmatprep.mubr.bf16.mxu0 %v426
    %978 = vmatmul.mubr.bf16.gmra.mrb[0].mxu0 %v425
    %v979 = vpop.f32.mrb[0].mxu0
    %v980 = vadd.f32 0.0, %v979
    %v981 = vpop.f32.mrb[0].mxu0
    %v982 = vpop.f32.mrb[0].mxu0
    %v983 = vpop.f32.mrb[0].mxu0
    %984 = vdwg.mxu0
    %985 = vmatprep.subr.bf16.mxu0 0
    %986 = vmatpush1.bf16.msra.mxu0 %v833
    %987 = vmatprep.subr.bf16.mxu0 0
    %988 = vmatpush1.bf16.msra.mxu0 %v834
    %989 = vmatprep.subr.bf16.mxu0 0
    %990 = vmatpush1.bf16.msra.mxu0 %v835
    %991 = vmatprep.subr.bf16.mxu0 0
    %992 = vmatpush1.bf16.msra.mxu0 %v836
    %993 = vmatprep.subr.bf16.mxu0 0
    %994 = vmatpush1.bf16.msra.mxu0 %v837
    %995 = vmatprep.subr.bf16.mxu0 0
    %996 = vmatpush1.bf16.msra.mxu0 %v838
    %997 = vmatprep.subr.bf16.mxu0 0
    %998 = vmatpush1.bf16.msra.mxu0 %v839
    %999 = vmatprep.subr.bf16.mxu0 0
    %1000 = vmatpush1.bf16.msra.mxu0 %v840
    %1001 = vmatprep.subr.bf16.mxu0 0
    %1002 = vmatpush1.bf16.msra.mxu0 %v841
    %1003 = vmatprep.subr.bf16.mxu0 0
    %1004 = vmatpush1.bf16.msra.mxu0 %v842
    %1005 = vmatprep.subr.bf16.mxu0 0
    %1006 = vmatpush1.bf16.msra.mxu0 %v843
    %1007 = vmatprep.subr.bf16.mxu0 0
    %1008 = vmatpush1.bf16.msra.mxu0 %v844
    %1009 = vmatprep.subr.bf16.mxu0 0
    %1010 = vmatpush1.bf16.msra.mxu0 %v845
    %1011 = vmatprep.subr.bf16.mxu0 0
    %1012 = vmatpush1.bf16.msra.mxu0 %v846
    %1013 = vmatprep.subr.bf16.mxu0 0
    %1014 = vmatpush1.bf16.msra.mxu0 %v847
    %1015 = vmatprep.subr.bf16.mxu0 0
    %1016 = vmatpush1.bf16.msra.mxu0 %v848
    %1017 = vmatprep.mubr.bf16.mxu0 %v428
    %1018 = vmatmul.mubr.bf16.gmra.mrb[0].mxu0 %v427
    %v1019 = vpop.f32.mrb[0].mxu0
    %v1020 = vadd.f32 %v980, %v1019
    %v1021 = vpop.f32.mrb[0].mxu0
    %v1022 = vpop.f32.mrb[0].mxu0
    %v1023 = vpop.f32.mrb[0].mxu0
    %1024 = vdwg.mxu0
    %1025 = vmatprep.subr.bf16.mxu0 0
    %1026 = vmatpush1.bf16.msra.mxu0 %v849
    %1027 = vmatprep.subr.bf16.mxu0 0
    %1028 = vmatpush1.bf16.msra.mxu0 %v850
    %1029 = vmatprep.subr.bf16.mxu0 0
    %1030 = vmatpush1.bf16.msra.mxu0 %v851
    %1031 = vmatprep.subr.bf16.mxu0 0
    %1032 = vmatpush1.bf16.msra.mxu0 %v852
    %1033 = vmatprep.subr.bf16.mxu0 0
    %1034 = vmatpush1.bf16.msra.mxu0 %v853
    %1035 = vmatprep.subr.bf16.mxu0 0
    %1036 = vmatpush1.bf16.msra.mxu0 %v854
    %1037 = vmatprep.subr.bf16.mxu0 0
    %1038 = vmatpush1.bf16.msra.mxu0 %v855
    %1039 = vmatprep.subr.bf16.mxu0 0
    %1040 = vmatpush1.bf16.msra.mxu0 %v856
    %1041 = vmatprep.subr.bf16.mxu0 0
    %1042 = vmatpush1.bf16.msra.mxu0 %v857
    %1043 = vmatprep.subr.bf16.mxu0 0
    %1044 = vmatpush1.bf16.msra.mxu0 %v858
    %1045 = vmatprep.subr.bf16.mxu0 0
    %1046 = vmatpush1.bf16.msra.mxu0 %v859
    %1047 = vmatprep.subr.bf16.mxu0 0
    %1048 = vmatpush1.bf16.msra.mxu0 %v860
    %1049 = vmatprep.subr.bf16.mxu0 0
    %1050 = vmatpush1.bf16.msra.mxu0 %v861
    %1051 = vmatprep.subr.bf16.mxu0 0
    %1052 = vmatpush1.bf16.msra.mxu0 %v862
    %1053 = vmatprep.subr.bf16.mxu0 0
    %1054 = vmatpush1.bf16.msra.mxu0 %v863
    %1055 = vmatprep.subr.bf16.mxu0 0
    %1056 = vmatpush1.bf16.msra.mxu0 %v864
    %1057 = vmatprep.mubr.bf16.mxu0 %v430
    %1058 = vmatmul.mubr.bf16.gmra.mrb[0].mxu0 %v429
    %v1059 = vpop.f32.mrb[0].mxu0
    %v1060 = vadd.f32 %v1020, %v1059
    %v1061 = vpop.f32.mrb[0].mxu0
    %v1062 = vpop.f32.mrb[0].mxu0
    %v1063 = vpop.f32.mrb[0].mxu0
    %1064 = vdwg.mxu0
    %1065 = vmatprep.subr.bf16.mxu0 0
    %1066 = vmatpush1.bf16.msra.mxu0 %v865
    %1067 = vmatprep.subr.bf16.mxu0 0
    %1068 = vmatpush1.bf16.msra.mxu0 %v866
    %1069 = vmatprep.subr.bf16.mxu0 0
    %1070 = vmatpush1.bf16.msra.mxu0 %v867
    %1071 = vmatprep.subr.bf16.mxu0 0
    %1072 = vmatpush1.bf16.msra.mxu0 %v868
    %1073 = vmatprep.subr.bf16.mxu0 0
    %1074 = vmatpush1.bf16.msra.mxu0 %v869
    %1075 = vmatprep.subr.bf16.mxu0 0
    %1076 = vmatpush1.bf16.msra.mxu0 %v870
    %1077 = vmatprep.subr.bf16.mxu0 0
    %1078 = vmatpush1.bf16.msra.mxu0 %v871
    %1079 = vmatprep.subr.bf16.mxu0 0
    %1080 = vmatpush1.bf16.msra.mxu0 %v872
    %1081 = vmatprep.subr.bf16.mxu0 0
    %1082 = vmatpush1.bf16.msra.mxu0 %v873
    %1083 = vmatprep.subr.bf16.mxu0 0
    %1084 = vmatpush1.bf16.msra.mxu0 %v874
    %1085 = vmatprep.subr.bf16.mxu0 0
    %1086 = vmatpush1.bf16.msra.mxu0 %v875
    %1087 = vmatprep.subr.bf16.mxu0 0
    %1088 = vmatpush1.bf16.msra.mxu0 %v876
    %1089 = vmatprep.subr.bf16.mxu0 0
    %1090 = vmatpush1.bf16.msra.mxu0 %v877
    %1091 = vmatprep.subr.bf16.mxu0 0
    %1092 = vmatpush1.bf16.msra.mxu0 %v878
    %1093 = vmatprep.subr.bf16.mxu0 0
    %1094 = vmatpush1.bf16.msra.mxu0 %v879
    %1095 = vmatprep.subr.bf16.mxu0 0
    %1096 = vmatpush1.bf16.msra.mxu0 %v880
    %1097 = vmatprep.mubr.bf16.mxu0 %v432
    %1098 = vmatmul.mubr.bf16.gmra.mrb[0].mxu0 %v431
    %v1099 = vpop.f32.mrb[0].mxu0
    %v1100 = vadd.f32 %v1060, %v1099
    %v1101 = vpop.f32.mrb[0].mxu0
    %v1102 = vpop.f32.mrb[0].mxu0
    %v1103 = vpop.f32.mrb[0].mxu0
    %1104 = vdwg.mxu0
    %v1105 = vadd.f32 %v378, %v1100
    %vm1106 = vcmask 517120
    %1107 = vst.msk [vmem:[#allocation2] sm:$0x3] %vm1106, %v1105
    // Predicated region
    $region93: #{pose_adjust_forward.1} parent=1 // pred_check
      %p1108 = pneg %p26
    $region94: #{pose_adjust_forward.1} parent=1 // pred_check_branch
      %1110 = sbr.rel (%p1108) target = $region96
    $region95: #{pose_adjust_forward.1} parent=1 // pred_region
      %v1111 = vld [vmem:[#allocation2] sm:$0x3]
      %vm1112 = vcmask 523264
      %v1113 = vsel %vm1112, %v1111, 0.0
      %v1114 = vld [vmem:[%s3] sm:$0x3]
      %v1116 = vlaneseq
      %v1117 = vshrl.u32 %v1116, 7
      %v1118 = vsub.s32 0, %v1117
      %v1119 = vrot.slane %v1114, %v1118
      %v1120 = vlaneseq
      %v1121 = vshrl.u32 %v1120, 7
      %v1122 = vsub.s32 1, %v1121
      %v1123 = vrot.slane %v1114, %v1122
      %v1126 = vadd.f32 %v1113, %v1119
      %v1127 = vadd.f32 %v1123, 0.0
      %v1128 = vmax.f32 %v1126, 0.0
      %v1129 = vmax.f32 %v1127, 0.0
      %v1130 = vld [vmem:[%s2] sm:$0xff]
      %v1131 = vld [vmem:[%s2 + $0x8] sm:$0xff]
      %v1132 = vld [vmem:[%s2 + $0x10] sm:$0xff]
      %v1133 = vld [vmem:[%s2 + $0x18] sm:$0xff]
      %v1134 = vld [vmem:[%s2 + $0x20] sm:$0xff]
      %v1135 = vld [vmem:[%s2 + $0x28] sm:$0xff]
      %v1136 = vld [vmem:[%s2 + $0x30] sm:$0xff]
      %v1137 = vld [vmem:[%s2 + $0x38] sm:$0xff]
      %v1138 = vld [vmem:[%s2 + $0x40] sm:$0xff]
      %v1139 = vld [vmem:[%s2 + $0x48] sm:$0xff]
      %v1140 = vld [vmem:[%s2 + $0x50] sm:$0xff]
      %v1141 = vld [vmem:[%s2 + $0x58] sm:$0xff]
      %v1142 = vld [vmem:[%s2 + $0x60] sm:$0xff]
      %v1143 = vld [vmem:[%s2 + $0x68] sm:$0xff]
      %v1144 = vld [vmem:[%s2 + $0x70] sm:$0xff]
      %v1145 = vld [vmem:[%s2 + $0x78] sm:$0xff]
      %v1146 = vld [vmem:[%s2 + $0x80] sm:$0xff]
      %v1147 = vld [vmem:[%s2 + $0x88] sm:$0xff]
      %v1148 = vld [vmem:[%s2 + $0x90] sm:$0xff]
      %v1149 = vld [vmem:[%s2 + $0x98] sm:$0xff]
      %v1150 = vld [vmem:[%s2 + $0xa0] sm:$0xff]
      %v1151 = vld [vmem:[%s2 + $0xa8] sm:$0xff]
      %v1152 = vld [vmem:[%s2 + $0xb0] sm:$0xff]
      %v1153 = vld [vmem:[%s2 + $0xb8] sm:$0xff]
      %v1154 = vld [vmem:[%s2 + $0xc0] sm:$0xff]
      %v1155 = vld [vmem:[%s2 + $0xc8] sm:$0xff]
      %v1156 = vld [vmem:[%s2 + $0xd0] sm:$0xff]
      %v1157 = vld [vmem:[%s2 + $0xd8] sm:$0xff]
      %v1158 = vld [vmem:[%s2 + $0xe0] sm:$0xff]
      %v1159 = vld [vmem:[%s2 + $0xe8] sm:$0xff]
      %v1160 = vld [vmem:[%s2 + $0xf0] sm:$0xff]
      %v1161 = vld [vmem:[%s2 + $0xf8] sm:$0xff]
      %v1162 = vld [vmem:[%s2 + $0x100] sm:$0xff]
      %v1163 = vld [vmem:[%s2 + $0x108] sm:$0xff]
      %v1164 = vld [vmem:[%s2 + $0x110] sm:$0xff]
      %v1165 = vld [vmem:[%s2 + $0x118] sm:$0xff]
      %v1166 = vld [vmem:[%s2 + $0x120] sm:$0xff]
      %v1167 = vld [vmem:[%s2 + $0x128] sm:$0xff]
      %v1168 = vld [vmem:[%s2 + $0x130] sm:$0xff]
      %v1169 = vld [vmem:[%s2 + $0x138] sm:$0xff]
      %v1170 = vld [vmem:[%s2 + $0x140] sm:$0xff]
      %v1171 = vld [vmem:[%s2 + $0x148] sm:$0xff]
      %v1172 = vld [vmem:[%s2 + $0x150] sm:$0xff]
      %v1173 = vld [vmem:[%s2 + $0x158] sm:$0xff]
      %v1174 = vld [vmem:[%s2 + $0x160] sm:$0xff]
      %v1175 = vld [vmem:[%s2 + $0x168] sm:$0xff]
      %v1176 = vld [vmem:[%s2 + $0x170] sm:$0xff]
      %v1177 = vld [vmem:[%s2 + $0x178] sm:$0xff]
      %v1178 = vld [vmem:[%s2 + $0x180] sm:$0xff]
      %v1179 = vld [vmem:[%s2 + $0x188] sm:$0xff]
      %v1180 = vld [vmem:[%s2 + $0x190] sm:$0xff]
      %v1181 = vld [vmem:[%s2 + $0x198] sm:$0xff]
      %v1182 = vld [vmem:[%s2 + $0x1a0] sm:$0xff]
      %v1183 = vld [vmem:[%s2 + $0x1a8] sm:$0xff]
      %v1184 = vld [vmem:[%s2 + $0x1b0] sm:$0xff]
      %v1185 = vld [vmem:[%s2 + $0x1b8] sm:$0xff]
      %v1186 = vld [vmem:[%s2 + $0x1c0] sm:$0xff]
      %v1187 = vld [vmem:[%s2 + $0x1c8] sm:$0xff]
      %v1188 = vld [vmem:[%s2 + $0x1d0] sm:$0xff]
      %v1189 = vld [vmem:[%s2 + $0x1d8] sm:$0xff]
      %v1190 = vld [vmem:[%s2 + $0x1e0] sm:$0xff]
      %v1191 = vld [vmem:[%s2 + $0x1e8] sm:$0xff]
      %v1192 = vld [vmem:[%s2 + $0x1f0] sm:$0xff]
      %v1193 = vld [vmem:[%s2 + $0x1f8] sm:$0xff]
      %s1194 = scalar_lea.vmem %s3, 2
      %v1195 = vld [vmem:[%s1194] sm:$0x3]
      %v1197 = vlaneseq
      %v1198 = vshrl.u32 %v1197, 7
      %v1199 = vsub.s32 0, %v1198
      %v1200 = vrot.slane %v1195, %v1199
      %v1201 = vlaneseq
      %v1202 = vshrl.u32 %v1201, 7
      %v1203 = vsub.s32 1, %v1202
      %v1204 = vrot.slane %v1195, %v1203
      %1207 = vmatprep.subr.mxu0 %v1131
      %1208 = vmatpush1.msra.mxu0 %v1130
      %1209 = vmatprep.subr.mxu0 %v1133
      %1210 = vmatpush1.msra.mxu0 %v1132
      %1211 = vmatprep.subr.mxu0 %v1135
      %1212 = vmatpush1.msra.mxu0 %v1134
      %1213 = vmatprep.subr.mxu0 %v1137
      %1214 = vmatpush1.msra.mxu0 %v1136
      %1215 = vmatprep.subr.mxu0 %v1139
      %1216 = vmatpush1.msra.mxu0 %v1138
      %1217 = vmatprep.subr.mxu0 %v1141
      %1218 = vmatpush1.msra.mxu0 %v1140
      %1219 = vmatprep.subr.mxu0 %v1143
      %1220 = vmatpush1.msra.mxu0 %v1142
      %1221 = vmatprep.subr.mxu0 %v1145
      %1222 = vmatpush1.msra.mxu0 %v1144
      %1223 = vmatprep.subr.mxu0 %v1147
      %1224 = vmatpush1.msra.mxu0 %v1146
      %1225 = vmatprep.subr.mxu0 %v1149
      %1226 = vmatpush1.msra.mxu0 %v1148
      %1227 = vmatprep.subr.mxu0 %v1151
      %1228 = vmatpush1.msra.mxu0 %v1150
      %1229 = vmatprep.subr.mxu0 %v1153
      %1230 = vmatpush1.msra.mxu0 %v1152
      %1231 = vmatprep.subr.mxu0 %v1155
      %1232 = vmatpush1.msra.mxu0 %v1154
      %1233 = vmatprep.subr.mxu0 %v1157
      %1234 = vmatpush1.msra.mxu0 %v1156
      %1235 = vmatprep.subr.mxu0 %v1159
      %1236 = vmatpush1.msra.mxu0 %v1158
      %1237 = vmatprep.subr.mxu0 %v1161
      %1238 = vmatpush1.msra.mxu0 %v1160
      %1239 = vmatprep.subr.mxu0 %v1163
      %1240 = vmatpush1.msra.mxu0 %v1162
      %1241 = vmatprep.subr.mxu0 %v1165
      %1242 = vmatpush1.msra.mxu0 %v1164
      %1243 = vmatprep.subr.mxu0 %v1167
      %1244 = vmatpush1.msra.mxu0 %v1166
      %1245 = vmatprep.subr.mxu0 %v1169
      %1246 = vmatpush1.msra.mxu0 %v1168
      %1247 = vmatprep.subr.mxu0 %v1171
      %1248 = vmatpush1.msra.mxu0 %v1170
      %1249 = vmatprep.subr.mxu0 %v1173
      %1250 = vmatpush1.msra.mxu0 %v1172
      %1251 = vmatprep.subr.mxu0 %v1175
      %1252 = vmatpush1.msra.mxu0 %v1174
      %1253 = vmatprep.subr.mxu0 %v1177
      %1254 = vmatpush1.msra.mxu0 %v1176
      %1255 = vmatprep.subr.mxu0 %v1179
      %1256 = vmatpush1.msra.mxu0 %v1178
      %1257 = vmatprep.subr.mxu0 %v1181
      %1258 = vmatpush1.msra.mxu0 %v1180
      %1259 = vmatprep.subr.mxu0 %v1183
      %1260 = vmatpush1.msra.mxu0 %v1182
      %1261 = vmatprep.subr.mxu0 %v1185
      %1262 = vmatpush1.msra.mxu0 %v1184
      %1263 = vmatprep.subr.mxu0 %v1187
      %1264 = vmatpush1.msra.mxu0 %v1186
      %1265 = vmatprep.subr.mxu0 %v1189
      %1266 = vmatpush1.msra.mxu0 %v1188
      %1267 = vmatprep.subr.mxu0 %v1191
      %1268 = vmatpush1.msra.mxu0 %v1190
      %1269 = vmatprep.subr.mxu0 %v1193
      %1270 = vmatpush1.msra.mxu0 %v1192
      %1271 = vmatprep.mubr.f32.mxu0 %v1129
      %1272 = vmatmul.mubr.f32.gmra.mrb[0].mxu0 %v1128
      %v1273 = vpop.f32.mrb[0].mxu0
      %v1274 = vadd.f32 %v1200, %v1273
      %v1275 = vpop.f32.mrb[0].mxu0
      %v1276 = vadd.f32 %v1204, %v1275
      %1277 = vdwg.mxu0
      %v1278 = vmax.f32 %v1274, 0.0
      %v1279 = vmax.f32 %v1276, 0.0
      %s1280 = scalar_lea.vmem %s2, 512
      %v1281 = vld [vmem:[%s1280] sm:$0xff]
      %v1282 = vld [vmem:[%s1280 + $0x8] sm:$0xff]
      %v1283 = vld [vmem:[%s1280 + $0x10] sm:$0xff]
      %v1284 = vld [vmem:[%s1280 + $0x18] sm:$0xff]
      %v1285 = vld [vmem:[%s1280 + $0x20] sm:$0xff]
      %v1286 = vld [vmem:[%s1280 + $0x28] sm:$0xff]
      %v1287 = vld [vmem:[%s1280 + $0x30] sm:$0xff]
      %v1288 = vld [vmem:[%s1280 + $0x38] sm:$0xff]
      %v1289 = vld [vmem:[%s1280 + $0x40] sm:$0xff]
      %v1290 = vld [vmem:[%s1280 + $0x48] sm:$0xff]
      %v1291 = vld [vmem:[%s1280 + $0x50] sm:$0xff]
      %v1292 = vld [vmem:[%s1280 + $0x58] sm:$0xff]
      %v1293 = vld [vmem:[%s1280 + $0x60] sm:$0xff]
      %v1294 = vld [vmem:[%s1280 + $0x68] sm:$0xff]
      %v1295 = vld [vmem:[%s1280 + $0x70] sm:$0xff]
      %v1296 = vld [vmem:[%s1280 + $0x78] sm:$0xff]
      %v1297 = vld [vmem:[%s1280 + $0x80] sm:$0xff]
      %v1298 = vld [vmem:[%s1280 + $0x88] sm:$0xff]
      %v1299 = vld [vmem:[%s1280 + $0x90] sm:$0xff]
      %v1300 = vld [vmem:[%s1280 + $0x98] sm:$0xff]
      %v1301 = vld [vmem:[%s1280 + $0xa0] sm:$0xff]
      %v1302 = vld [vmem:[%s1280 + $0xa8] sm:$0xff]
      %v1303 = vld [vmem:[%s1280 + $0xb0] sm:$0xff]
      %v1304 = vld [vmem:[%s1280 + $0xb8] sm:$0xff]
      %v1305 = vld [vmem:[%s1280 + $0xc0] sm:$0xff]
      %v1306 = vld [vmem:[%s1280 + $0xc8] sm:$0xff]
      %v1307 = vld [vmem:[%s1280 + $0xd0] sm:$0xff]
      %v1308 = vld [vmem:[%s1280 + $0xd8] sm:$0xff]
      %v1309 = vld [vmem:[%s1280 + $0xe0] sm:$0xff]
      %v1310 = vld [vmem:[%s1280 + $0xe8] sm:$0xff]
      %v1311 = vld [vmem:[%s1280 + $0xf0] sm:$0xff]
      %v1312 = vld [vmem:[%s1280 + $0xf8] sm:$0xff]
      %v1313 = vld [vmem:[%s1280 + $0x100] sm:$0xff]
      %v1314 = vld [vmem:[%s1280 + $0x108] sm:$0xff]
      %v1315 = vld [vmem:[%s1280 + $0x110] sm:$0xff]
      %v1316 = vld [vmem:[%s1280 + $0x118] sm:$0xff]
      %v1317 = vld [vmem:[%s1280 + $0x120] sm:$0xff]
      %v1318 = vld [vmem:[%s1280 + $0x128] sm:$0xff]
      %v1319 = vld [vmem:[%s1280 + $0x130] sm:$0xff]
      %v1320 = vld [vmem:[%s1280 + $0x138] sm:$0xff]
      %v1321 = vld [vmem:[%s1280 + $0x140] sm:$0xff]
      %v1322 = vld [vmem:[%s1280 + $0x148] sm:$0xff]
      %v1323 = vld [vmem:[%s1280 + $0x150] sm:$0xff]
      %v1324 = vld [vmem:[%s1280 + $0x158] sm:$0xff]
      %v1325 = vld [vmem:[%s1280 + $0x160] sm:$0xff]
      %v1326 = vld [vmem:[%s1280 + $0x168] sm:$0xff]
      %v1327 = vld [vmem:[%s1280 + $0x170] sm:$0xff]
      %v1328 = vld [vmem:[%s1280 + $0x178] sm:$0xff]
      %v1329 = vld [vmem:[%s1280 + $0x180] sm:$0xff]
      %v1330 = vld [vmem:[%s1280 + $0x188] sm:$0xff]
      %v1331 = vld [vmem:[%s1280 + $0x190] sm:$0xff]
      %v1332 = vld [vmem:[%s1280 + $0x198] sm:$0xff]
      %v1333 = vld [vmem:[%s1280 + $0x1a0] sm:$0xff]
      %v1334 = vld [vmem:[%s1280 + $0x1a8] sm:$0xff]
      %v1335 = vld [vmem:[%s1280 + $0x1b0] sm:$0xff]
      %v1336 = vld [vmem:[%s1280 + $0x1b8] sm:$0xff]
      %v1337 = vld [vmem:[%s1280 + $0x1c0] sm:$0xff]
      %v1338 = vld [vmem:[%s1280 + $0x1c8] sm:$0xff]
      %v1339 = vld [vmem:[%s1280 + $0x1d0] sm:$0xff]
      %v1340 = vld [vmem:[%s1280 + $0x1d8] sm:$0xff]
      %v1341 = vld [vmem:[%s1280 + $0x1e0] sm:$0xff]
      %v1342 = vld [vmem:[%s1280 + $0x1e8] sm:$0xff]
      %v1343 = vld [vmem:[%s1280 + $0x1f0] sm:$0xff]
      %v1344 = vld [vmem:[%s1280 + $0x1f8] sm:$0xff]
      %s1345 = scalar_lea.vmem %s3, 4
      %v1346 = vld [vmem:[%s1345] sm:$0x3]
      %v1348 = vlaneseq
      %v1349 = vshrl.u32 %v1348, 7
      %v1350 = vsub.s32 0, %v1349
      %v1351 = vrot.slane %v1346, %v1350
      %v1352 = vlaneseq
      %v1353 = vshrl.u32 %v1352, 7
      %v1354 = vsub.s32 1, %v1353
      %v1355 = vrot.slane %v1346, %v1354
      %1358 = vmatprep.subr.mxu0 %v1282
      %1359 = vmatpush1.msra.mxu0 %v1281
      %1360 = vmatprep.subr.mxu0 %v1284
      %1361 = vmatpush1.msra.mxu0 %v1283
      %1362 = vmatprep.subr.mxu0 %v1286
      %1363 = vmatpush1.msra.mxu0 %v1285
      %1364 = vmatprep.subr.mxu0 %v1288
      %1365 = vmatpush1.msra.mxu0 %v1287
      %1366 = vmatprep.subr.mxu0 %v1290
      %1367 = vmatpush1.msra.mxu0 %v1289
      %1368 = vmatprep.subr.mxu0 %v1292
      %1369 = vmatpush1.msra.mxu0 %v1291
      %1370 = vmatprep.subr.mxu0 %v1294
      %1371 = vmatpush1.msra.mxu0 %v1293
      %1372 = vmatprep.subr.mxu0 %v1296
      %1373 = vmatpush1.msra.mxu0 %v1295
      %1374 = vmatprep.subr.mxu0 %v1298
      %1375 = vmatpush1.msra.mxu0 %v1297
      %1376 = vmatprep.subr.mxu0 %v1300
      %1377 = vmatpush1.msra.mxu0 %v1299
      %1378 = vmatprep.subr.mxu0 %v1302
      %1379 = vmatpush1.msra.mxu0 %v1301
      %1380 = vmatprep.subr.mxu0 %v1304
      %1381 = vmatpush1.msra.mxu0 %v1303
      %1382 = vmatprep.subr.mxu0 %v1306
      %1383 = vmatpush1.msra.mxu0 %v1305
      %1384 = vmatprep.subr.mxu0 %v1308
      %1385 = vmatpush1.msra.mxu0 %v1307
      %1386 = vmatprep.subr.mxu0 %v1310
      %1387 = vmatpush1.msra.mxu0 %v1309
      %1388 = vmatprep.subr.mxu0 %v1312
      %1389 = vmatpush1.msra.mxu0 %v1311
      %1390 = vmatprep.subr.mxu0 %v1314
      %1391 = vmatpush1.msra.mxu0 %v1313
      %1392 = vmatprep.subr.mxu0 %v1316
      %1393 = vmatpush1.msra.mxu0 %v1315
      %1394 = vmatprep.subr.mxu0 %v1318
      %1395 = vmatpush1.msra.mxu0 %v1317
      %1396 = vmatprep.subr.mxu0 %v1320
      %1397 = vmatpush1.msra.mxu0 %v1319
      %1398 = vmatprep.subr.mxu0 %v1322
      %1399 = vmatpush1.msra.mxu0 %v1321
      %1400 = vmatprep.subr.mxu0 %v1324
      %1401 = vmatpush1.msra.mxu0 %v1323
      %1402 = vmatprep.subr.mxu0 %v1326
      %1403 = vmatpush1.msra.mxu0 %v1325
      %1404 = vmatprep.subr.mxu0 %v1328
      %1405 = vmatpush1.msra.mxu0 %v1327
      %1406 = vmatprep.subr.mxu0 %v1330
      %1407 = vmatpush1.msra.mxu0 %v1329
      %1408 = vmatprep.subr.mxu0 %v1332
      %1409 = vmatpush1.msra.mxu0 %v1331
      %1410 = vmatprep.subr.mxu0 %v1334
      %1411 = vmatpush1.msra.mxu0 %v1333
      %1412 = vmatprep.subr.mxu0 %v1336
      %1413 = vmatpush1.msra.mxu0 %v1335
      %1414 = vmatprep.subr.mxu0 %v1338
      %1415 = vmatpush1.msra.mxu0 %v1337
      %1416 = vmatprep.subr.mxu0 %v1340
      %1417 = vmatpush1.msra.mxu0 %v1339
      %1418 = vmatprep.subr.mxu0 %v1342
      %1419 = vmatpush1.msra.mxu0 %v1341
      %1420 = vmatprep.subr.mxu0 %v1344
      %1421 = vmatpush1.msra.mxu0 %v1343
      %1422 = vmatprep.mubr.f32.mxu0 %v1279
      %1423 = vmatmul.mubr.f32.gmra.mrb[0].mxu0 %v1278
      %v1424 = vpop.f32.mrb[0].mxu0
      %v1425 = vadd.f32 %v1351, %v1424
      %v1426 = vpop.f32.mrb[0].mxu0
      %v1427 = vadd.f32 %v1355, %v1426
      %1428 = vdwg.mxu0
      %s1429 = scalar_lea.vmem %s2, 1024
      %v1430 = vld [vmem:[%s1429] sm:$0xff]
      %v1431 = vld [vmem:[%s1429 + $0x8] sm:$0xff]
      %v1432 = vld [vmem:[%s1429 + $0x10] sm:$0xff]
      %v1433 = vld [vmem:[%s1429 + $0x18] sm:$0xff]
      %v1434 = vld [vmem:[%s1429 + $0x20] sm:$0xff]
      %v1435 = vld [vmem:[%s1429 + $0x28] sm:$0xff]
      %v1436 = vld [vmem:[%s1429 + $0x30] sm:$0xff]
      %v1437 = vld [vmem:[%s1429 + $0x38] sm:$0xff]
      %v1438 = vld [vmem:[%s1429 + $0x40] sm:$0xff]
      %v1439 = vld [vmem:[%s1429 + $0x48] sm:$0xff]
      %v1440 = vld [vmem:[%s1429 + $0x50] sm:$0xff]
      %v1441 = vld [vmem:[%s1429 + $0x58] sm:$0xff]
      %v1442 = vld [vmem:[%s1429 + $0x60] sm:$0xff]
      %v1443 = vld [vmem:[%s1429 + $0x68] sm:$0xff]
      %v1444 = vld [vmem:[%s1429 + $0x70] sm:$0xff]
      %v1445 = vld [vmem:[%s1429 + $0x78] sm:$0xff]
      %v1446 = vld [vmem:[%s1429 + $0x80] sm:$0xff]
      %v1447 = vld [vmem:[%s1429 + $0x88] sm:$0xff]
      %v1448 = vld [vmem:[%s1429 + $0x90] sm:$0xff]
      %v1449 = vld [vmem:[%s1429 + $0x98] sm:$0xff]
      %v1450 = vld [vmem:[%s1429 + $0xa0] sm:$0xff]
      %v1451 = vld [vmem:[%s1429 + $0xa8] sm:$0xff]
      %v1452 = vld [vmem:[%s1429 + $0xb0] sm:$0xff]
      %v1453 = vld [vmem:[%s1429 + $0xb8] sm:$0xff]
      %v1454 = vld [vmem:[%s1429 + $0xc0] sm:$0xff]
      %v1455 = vld [vmem:[%s1429 + $0xc8] sm:$0xff]
      %v1456 = vld [vmem:[%s1429 + $0xd0] sm:$0xff]
      %v1457 = vld [vmem:[%s1429 + $0xd8] sm:$0xff]
      %v1458 = vld [vmem:[%s1429 + $0xe0] sm:$0xff]
      %v1459 = vld [vmem:[%s1429 + $0xe8] sm:$0xff]
      %v1460 = vld [vmem:[%s1429 + $0xf0] sm:$0xff]
      %v1461 = vld [vmem:[%s1429 + $0xf8] sm:$0xff]
      %v1462 = vld [vmem:[%s1429 + $0x100] sm:$0xff]
      %v1463 = vld [vmem:[%s1429 + $0x108] sm:$0xff]
      %v1464 = vld [vmem:[%s1429 + $0x110] sm:$0xff]
      %v1465 = vld [vmem:[%s1429 + $0x118] sm:$0xff]
      %v1466 = vld [vmem:[%s1429 + $0x120] sm:$0xff]
      %v1467 = vld [vmem:[%s1429 + $0x128] sm:$0xff]
      %v1468 = vld [vmem:[%s1429 + $0x130] sm:$0xff]
      %v1469 = vld [vmem:[%s1429 + $0x138] sm:$0xff]
      %v1470 = vld [vmem:[%s1429 + $0x140] sm:$0xff]
      %v1471 = vld [vmem:[%s1429 + $0x148] sm:$0xff]
      %v1472 = vld [vmem:[%s1429 + $0x150] sm:$0xff]
      %v1473 = vld [vmem:[%s1429 + $0x158] sm:$0xff]
      %v1474 = vld [vmem:[%s1429 + $0x160] sm:$0xff]
      %v1475 = vld [vmem:[%s1429 + $0x168] sm:$0xff]
      %v1476 = vld [vmem:[%s1429 + $0x170] sm:$0xff]
      %v1477 = vld [vmem:[%s1429 + $0x178] sm:$0xff]
      %v1478 = vld [vmem:[%s1429 + $0x180] sm:$0xff]
      %v1479 = vld [vmem:[%s1429 + $0x188] sm:$0xff]
      %v1480 = vld [vmem:[%s1429 + $0x190] sm:$0xff]
      %v1481 = vld [vmem:[%s1429 + $0x198] sm:$0xff]
      %v1482 = vld [vmem:[%s1429 + $0x1a0] sm:$0xff]
      %v1483 = vld [vmem:[%s1429 + $0x1a8] sm:$0xff]
      %v1484 = vld [vmem:[%s1429 + $0x1b0] sm:$0xff]
      %v1485 = vld [vmem:[%s1429 + $0x1b8] sm:$0xff]
      %v1486 = vld [vmem:[%s1429 + $0x1c0] sm:$0xff]
      %v1487 = vld [vmem:[%s1429 + $0x1c8] sm:$0xff]
      %v1488 = vld [vmem:[%s1429 + $0x1d0] sm:$0xff]
      %v1489 = vld [vmem:[%s1429 + $0x1d8] sm:$0xff]
      %v1490 = vld [vmem:[%s1429 + $0x1e0] sm:$0xff]
      %v1491 = vld [vmem:[%s1429 + $0x1e8] sm:$0xff]
      %v1492 = vld [vmem:[%s1429 + $0x1f0] sm:$0xff]
      %v1493 = vld [vmem:[%s1429 + $0x1f8] sm:$0xff]
      %s1494 = scalar_lea.vmem %s3, 6
      %v1495 = vld [vmem:[%s1494] sm:$0x3]
      %v1497 = vlaneseq
      %v1498 = vshrl.u32 %v1497, 7
      %v1499 = vsub.s32 0, %v1498
      %v1500 = vrot.slane %v1495, %v1499
      %v1501 = vlaneseq
      %v1502 = vshrl.u32 %v1501, 7
      %v1503 = vsub.s32 1, %v1502
      %v1504 = vrot.slane %v1495, %v1503
      %1507 = vmatprep.subr.mxu0 %v1431
      %1508 = vmatpush1.msra.mxu0 %v1430
      %1509 = vmatprep.subr.mxu0 %v1433
      %1510 = vmatpush1.msra.mxu0 %v1432
      %1511 = vmatprep.subr.mxu0 %v1435
      %1512 = vmatpush1.msra.mxu0 %v1434
      %1513 = vmatprep.subr.mxu0 %v1437
      %1514 = vmatpush1.msra.mxu0 %v1436
      %1515 = vmatprep.subr.mxu0 %v1439
      %1516 = vmatpush1.msra.mxu0 %v1438
      %1517 = vmatprep.subr.mxu0 %v1441
      %1518 = vmatpush1.msra.mxu0 %v1440
      %1519 = vmatprep.subr.mxu0 %v1443
      %1520 = vmatpush1.msra.mxu0 %v1442
      %1521 = vmatprep.subr.mxu0 %v1445
      %1522 = vmatpush1.msra.mxu0 %v1444
      %1523 = vmatprep.subr.mxu0 %v1447
      %1524 = vmatpush1.msra.mxu0 %v1446
      %1525 = vmatprep.subr.mxu0 %v1449
      %1526 = vmatpush1.msra.mxu0 %v1448
      %1527 = vmatprep.subr.mxu0 %v1451
      %1528 = vmatpush1.msra.mxu0 %v1450
      %1529 = vmatprep.subr.mxu0 %v1453
      %1530 = vmatpush1.msra.mxu0 %v1452
      %1531 = vmatprep.subr.mxu0 %v1455
      %1532 = vmatpush1.msra.mxu0 %v1454
      %1533 = vmatprep.subr.mxu0 %v1457
      %1534 = vmatpush1.msra.mxu0 %v1456
      %1535 = vmatprep.subr.mxu0 %v1459
      %1536 = vmatpush1.msra.mxu0 %v1458
      %1537 = vmatprep.subr.mxu0 %v1461
      %1538 = vmatpush1.msra.mxu0 %v1460
      %1539 = vmatprep.subr.mxu0 %v1463
      %1540 = vmatpush1.msra.mxu0 %v1462
      %1541 = vmatprep.subr.mxu0 %v1465
      %1542 = vmatpush1.msra.mxu0 %v1464
      %1543 = vmatprep.subr.mxu0 %v1467
      %1544 = vmatpush1.msra.mxu0 %v1466
      %1545 = vmatprep.subr.mxu0 %v1469
      %1546 = vmatpush1.msra.mxu0 %v1468
      %1547 = vmatprep.subr.mxu0 %v1471
      %1548 = vmatpush1.msra.mxu0 %v1470
      %1549 = vmatprep.subr.mxu0 %v1473
      %1550 = vmatpush1.msra.mxu0 %v1472
      %1551 = vmatprep.subr.mxu0 %v1475
      %1552 = vmatpush1.msra.mxu0 %v1474
      %1553 = vmatprep.subr.mxu0 %v1477
      %1554 = vmatpush1.msra.mxu0 %v1476
      %1555 = vmatprep.subr.mxu0 %v1479
      %1556 = vmatpush1.msra.mxu0 %v1478
      %1557 = vmatprep.subr.mxu0 %v1481
      %1558 = vmatpush1.msra.mxu0 %v1480
      %1559 = vmatprep.subr.mxu0 %v1483
      %1560 = vmatpush1.msra.mxu0 %v1482
      %1561 = vmatprep.subr.mxu0 %v1485
      %1562 = vmatpush1.msra.mxu0 %v1484
      %1563 = vmatprep.subr.mxu0 %v1487
      %1564 = vmatpush1.msra.mxu0 %v1486
      %1565 = vmatprep.subr.mxu0 %v1489
      %1566 = vmatpush1.msra.mxu0 %v1488
      %1567 = vmatprep.subr.mxu0 %v1491
      %1568 = vmatpush1.msra.mxu0 %v1490
      %1569 = vmatprep.subr.mxu0 %v1493
      %1570 = vmatpush1.msra.mxu0 %v1492
      %1571 = vmatprep.mubr.f32.mxu0 %v1427
      %1572 = vmatmul.mubr.f32.gmra.mrb[0].mxu0 %v1425
      %v1573 = vpop.f32.mrb[0].mxu0
      %v1574 = vadd.f32 %v1500, %v1573
      %v1575 = vpop.f32.mrb[0].mxu0
      %v1576 = vadd.f32 %v1504, %v1575
      %1577 = vdwg.mxu0
      %v1578 = vmax.f32 %v1574, 0.0
      %v1579 = vmax.f32 %v1576, 0.0
      %s1580 = scalar_lea.vmem %s2, 1536
      %v1581 = vld [vmem:[%s1580] sm:$0xff]
      %v1582 = vld [vmem:[%s1580 + $0x8] sm:$0xff]
      %v1583 = vld [vmem:[%s1580 + $0x10] sm:$0xff]
      %v1584 = vld [vmem:[%s1580 + $0x18] sm:$0xff]
      %v1585 = vld [vmem:[%s1580 + $0x20] sm:$0xff]
      %v1586 = vld [vmem:[%s1580 + $0x28] sm:$0xff]
      %v1587 = vld [vmem:[%s1580 + $0x30] sm:$0xff]
      %v1588 = vld [vmem:[%s1580 + $0x38] sm:$0xff]
      %v1589 = vld [vmem:[%s1580 + $0x40] sm:$0xff]
      %v1590 = vld [vmem:[%s1580 + $0x48] sm:$0xff]
      %v1591 = vld [vmem:[%s1580 + $0x50] sm:$0xff]
      %v1592 = vld [vmem:[%s1580 + $0x58] sm:$0xff]
      %v1593 = vld [vmem:[%s1580 + $0x60] sm:$0xff]
      %v1594 = vld [vmem:[%s1580 + $0x68] sm:$0xff]
      %v1595 = vld [vmem:[%s1580 + $0x70] sm:$0xff]
      %v1596 = vld [vmem:[%s1580 + $0x78] sm:$0xff]
      %v1597 = vld [vmem:[%s1580 + $0x80] sm:$0xff]
      %v1598 = vld [vmem:[%s1580 + $0x88] sm:$0xff]
      %v1599 = vld [vmem:[%s1580 + $0x90] sm:$0xff]
      %v1600 = vld [vmem:[%s1580 + $0x98] sm:$0xff]
      %v1601 = vld [vmem:[%s1580 + $0xa0] sm:$0xff]
      %v1602 = vld [vmem:[%s1580 + $0xa8] sm:$0xff]
      %v1603 = vld [vmem:[%s1580 + $0xb0] sm:$0xff]
      %v1604 = vld [vmem:[%s1580 + $0xb8] sm:$0xff]
      %v1605 = vld [vmem:[%s1580 + $0xc0] sm:$0xff]
      %v1606 = vld [vmem:[%s1580 + $0xc8] sm:$0xff]
      %v1607 = vld [vmem:[%s1580 + $0xd0] sm:$0xff]
      %v1608 = vld [vmem:[%s1580 + $0xd8] sm:$0xff]
      %v1609 = vld [vmem:[%s1580 + $0xe0] sm:$0xff]
      %v1610 = vld [vmem:[%s1580 + $0xe8] sm:$0xff]
      %v1611 = vld [vmem:[%s1580 + $0xf0] sm:$0xff]
      %v1612 = vld [vmem:[%s1580 + $0xf8] sm:$0xff]
      %v1613 = vld [vmem:[%s1580 + $0x100] sm:$0xff]
      %v1614 = vld [vmem:[%s1580 + $0x108] sm:$0xff]
      %v1615 = vld [vmem:[%s1580 + $0x110] sm:$0xff]
      %v1616 = vld [vmem:[%s1580 + $0x118] sm:$0xff]
      %v1617 = vld [vmem:[%s1580 + $0x120] sm:$0xff]
      %v1618 = vld [vmem:[%s1580 + $0x128] sm:$0xff]
      %v1619 = vld [vmem:[%s1580 + $0x130] sm:$0xff]
      %v1620 = vld [vmem:[%s1580 + $0x138] sm:$0xff]
      %v1621 = vld [vmem:[%s1580 + $0x140] sm:$0xff]
      %v1622 = vld [vmem:[%s1580 + $0x148] sm:$0xff]
      %v1623 = vld [vmem:[%s1580 + $0x150] sm:$0xff]
      %v1624 = vld [vmem:[%s1580 + $0x158] sm:$0xff]
      %v1625 = vld [vmem:[%s1580 + $0x160] sm:$0xff]
      %v1626 = vld [vmem:[%s1580 + $0x168] sm:$0xff]
      %v1627 = vld [vmem:[%s1580 + $0x170] sm:$0xff]
      %v1628 = vld [vmem:[%s1580 + $0x178] sm:$0xff]
      %v1629 = vld [vmem:[%s1580 + $0x180] sm:$0xff]
      %v1630 = vld [vmem:[%s1580 + $0x188] sm:$0xff]
      %v1631 = vld [vmem:[%s1580 + $0x190] sm:$0xff]
      %v1632 = vld [vmem:[%s1580 + $0x198] sm:$0xff]
      %v1633 = vld [vmem:[%s1580 + $0x1a0] sm:$0xff]
      %v1634 = vld [vmem:[%s1580 + $0x1a8] sm:$0xff]
      %v1635 = vld [vmem:[%s1580 + $0x1b0] sm:$0xff]
      %v1636 = vld [vmem:[%s1580 + $0x1b8] sm:$0xff]
      %v1637 = vld [vmem:[%s1580 + $0x1c0] sm:$0xff]
      %v1638 = vld [vmem:[%s1580 + $0x1c8] sm:$0xff]
      %v1639 = vld [vmem:[%s1580 + $0x1d0] sm:$0xff]
      %v1640 = vld [vmem:[%s1580 + $0x1d8] sm:$0xff]
      %v1641 = vld [vmem:[%s1580 + $0x1e0] sm:$0xff]
      %v1642 = vld [vmem:[%s1580 + $0x1e8] sm:$0xff]
      %v1643 = vld [vmem:[%s1580 + $0x1f0] sm:$0xff]
      %v1644 = vld [vmem:[%s1580 + $0x1f8] sm:$0xff]
      %s1645 = scalar_lea.vmem %s3, 8
      %v1646 = vld [vmem:[%s1645] sm:$0x3]
      %v1648 = vlaneseq
      %v1649 = vshrl.u32 %v1648, 7
      %v1650 = vsub.s32 0, %v1649
      %v1651 = vrot.slane %v1646, %v1650
      %v1652 = vlaneseq
      %v1653 = vshrl.u32 %v1652, 7
      %v1654 = vsub.s32 1, %v1653
      %v1655 = vrot.slane %v1646, %v1654
      %1658 = vmatprep.subr.mxu0 %v1582
      %1659 = vmatpush1.msra.mxu0 %v1581
      %1660 = vmatprep.subr.mxu0 %v1584
      %1661 = vmatpush1.msra.mxu0 %v1583
      %1662 = vmatprep.subr.mxu0 %v1586
      %1663 = vmatpush1.msra.mxu0 %v1585
      %1664 = vmatprep.subr.mxu0 %v1588
      %1665 = vmatpush1.msra.mxu0 %v1587
      %1666 = vmatprep.subr.mxu0 %v1590
      %1667 = vmatpush1.msra.mxu0 %v1589
      %1668 = vmatprep.subr.mxu0 %v1592
      %1669 = vmatpush1.msra.mxu0 %v1591
      %1670 = vmatprep.subr.mxu0 %v1594
      %1671 = vmatpush1.msra.mxu0 %v1593
      %1672 = vmatprep.subr.mxu0 %v1596
      %1673 = vmatpush1.msra.mxu0 %v1595
      %1674 = vmatprep.subr.mxu0 %v1598
      %1675 = vmatpush1.msra.mxu0 %v1597
      %1676 = vmatprep.subr.mxu0 %v1600
      %1677 = vmatpush1.msra.mxu0 %v1599
      %1678 = vmatprep.subr.mxu0 %v1602
      %1679 = vmatpush1.msra.mxu0 %v1601
      %1680 = vmatprep.subr.mxu0 %v1604
      %1681 = vmatpush1.msra.mxu0 %v1603
      %1682 = vmatprep.subr.mxu0 %v1606
      %1683 = vmatpush1.msra.mxu0 %v1605
      %1684 = vmatprep.subr.mxu0 %v1608
      %1685 = vmatpush1.msra.mxu0 %v1607
      %1686 = vmatprep.subr.mxu0 %v1610
      %1687 = vmatpush1.msra.mxu0 %v1609
      %1688 = vmatprep.subr.mxu0 %v1612
      %1689 = vmatpush1.msra.mxu0 %v1611
      %1690 = vmatprep.subr.mxu0 %v1614
      %1691 = vmatpush1.msra.mxu0 %v1613
      %1692 = vmatprep.subr.mxu0 %v1616
      %1693 = vmatpush1.msra.mxu0 %v1615
      %1694 = vmatprep.subr.mxu0 %v1618
      %1695 = vmatpush1.msra.mxu0 %v1617
      %1696 = vmatprep.subr.mxu0 %v1620
      %1697 = vmatpush1.msra.mxu0 %v1619
      %1698 = vmatprep.subr.mxu0 %v1622
      %1699 = vmatpush1.msra.mxu0 %v1621
      %1700 = vmatprep.subr.mxu0 %v1624
      %1701 = vmatpush1.msra.mxu0 %v1623
      %1702 = vmatprep.subr.mxu0 %v1626
      %1703 = vmatpush1.msra.mxu0 %v1625
      %1704 = vmatprep.subr.mxu0 %v1628
      %1705 = vmatpush1.msra.mxu0 %v1627
      %1706 = vmatprep.subr.mxu0 %v1630
      %1707 = vmatpush1.msra.mxu0 %v1629
      %1708 = vmatprep.subr.mxu0 %v1632
      %1709 = vmatpush1.msra.mxu0 %v1631
      %1710 = vmatprep.subr.mxu0 %v1634
      %1711 = vmatpush1.msra.mxu0 %v1633
      %1712 = vmatprep.subr.mxu0 %v1636
      %1713 = vmatpush1.msra.mxu0 %v1635
      %1714 = vmatprep.subr.mxu0 %v1638
      %1715 = vmatpush1.msra.mxu0 %v1637
      %1716 = vmatprep.subr.mxu0 %v1640
      %1717 = vmatpush1.msra.mxu0 %v1639
      %1718 = vmatprep.subr.mxu0 %v1642
      %1719 = vmatpush1.msra.mxu0 %v1641
      %1720 = vmatprep.subr.mxu0 %v1644
      %1721 = vmatpush1.msra.mxu0 %v1643
      %1722 = vmatprep.mubr.f32.mxu0 %v1579
      %1723 = vmatmul.mubr.f32.gmra.mrb[0].mxu0 %v1578
      %v1724 = vpop.f32.mrb[0].mxu0
      %v1725 = vadd.f32 %v1651, %v1724
      %v1726 = vpop.f32.mrb[0].mxu0
      %v1727 = vadd.f32 %v1655, %v1726
      %1728 = vdwg.mxu0
      %s1729 = scalar_lea.vmem %s2, 2048
      %v1730 = vld [vmem:[%s1729] sm:$0xff]
      %v1731 = vld [vmem:[%s1729 + $0x8] sm:$0xff]
      %v1732 = vld [vmem:[%s1729 + $0x10] sm:$0xff]
      %v1733 = vld [vmem:[%s1729 + $0x18] sm:$0xff]
      %v1734 = vld [vmem:[%s1729 + $0x20] sm:$0xff]
      %v1735 = vld [vmem:[%s1729 + $0x28] sm:$0xff]
      %v1736 = vld [vmem:[%s1729 + $0x30] sm:$0xff]
      %v1737 = vld [vmem:[%s1729 + $0x38] sm:$0xff]
      %v1738 = vld [vmem:[%s1729 + $0x40] sm:$0xff]
      %v1739 = vld [vmem:[%s1729 + $0x48] sm:$0xff]
      %v1740 = vld [vmem:[%s1729 + $0x50] sm:$0xff]
      %v1741 = vld [vmem:[%s1729 + $0x58] sm:$0xff]
      %v1742 = vld [vmem:[%s1729 + $0x60] sm:$0xff]
      %v1743 = vld [vmem:[%s1729 + $0x68] sm:$0xff]
      %v1744 = vld [vmem:[%s1729 + $0x70] sm:$0xff]
      %v1745 = vld [vmem:[%s1729 + $0x78] sm:$0xff]
      %v1746 = vld [vmem:[%s1729 + $0x80] sm:$0xff]
      %v1747 = vld [vmem:[%s1729 + $0x88] sm:$0xff]
      %v1748 = vld [vmem:[%s1729 + $0x90] sm:$0xff]
      %v1749 = vld [vmem:[%s1729 + $0x98] sm:$0xff]
      %v1750 = vld [vmem:[%s1729 + $0xa0] sm:$0xff]
      %v1751 = vld [vmem:[%s1729 + $0xa8] sm:$0xff]
      %v1752 = vld [vmem:[%s1729 + $0xb0] sm:$0xff]
      %v1753 = vld [vmem:[%s1729 + $0xb8] sm:$0xff]
      %v1754 = vld [vmem:[%s1729 + $0xc0] sm:$0xff]
      %v1755 = vld [vmem:[%s1729 + $0xc8] sm:$0xff]
      %v1756 = vld [vmem:[%s1729 + $0xd0] sm:$0xff]
      %v1757 = vld [vmem:[%s1729 + $0xd8] sm:$0xff]
      %v1758 = vld [vmem:[%s1729 + $0xe0] sm:$0xff]
      %v1759 = vld [vmem:[%s1729 + $0xe8] sm:$0xff]
      %v1760 = vld [vmem:[%s1729 + $0xf0] sm:$0xff]
      %v1761 = vld [vmem:[%s1729 + $0xf8] sm:$0xff]
      %v1762 = vld [vmem:[%s1729 + $0x100] sm:$0xff]
      %v1763 = vld [vmem:[%s1729 + $0x108] sm:$0xff]
      %v1764 = vld [vmem:[%s1729 + $0x110] sm:$0xff]
      %v1765 = vld [vmem:[%s1729 + $0x118] sm:$0xff]
      %v1766 = vld [vmem:[%s1729 + $0x120] sm:$0xff]
      %v1767 = vld [vmem:[%s1729 + $0x128] sm:$0xff]
      %v1768 = vld [vmem:[%s1729 + $0x130] sm:$0xff]
      %v1769 = vld [vmem:[%s1729 + $0x138] sm:$0xff]
      %v1770 = vld [vmem:[%s1729 + $0x140] sm:$0xff]
      %v1771 = vld [vmem:[%s1729 + $0x148] sm:$0xff]
      %v1772 = vld [vmem:[%s1729 + $0x150] sm:$0xff]
      %v1773 = vld [vmem:[%s1729 + $0x158] sm:$0xff]
      %v1774 = vld [vmem:[%s1729 + $0x160] sm:$0xff]
      %v1775 = vld [vmem:[%s1729 + $0x168] sm:$0xff]
      %v1776 = vld [vmem:[%s1729 + $0x170] sm:$0xff]
      %v1777 = vld [vmem:[%s1729 + $0x178] sm:$0xff]
      %v1778 = vld [vmem:[%s1729 + $0x180] sm:$0xff]
      %v1779 = vld [vmem:[%s1729 + $0x188] sm:$0xff]
      %v1780 = vld [vmem:[%s1729 + $0x190] sm:$0xff]
      %v1781 = vld [vmem:[%s1729 + $0x198] sm:$0xff]
      %v1782 = vld [vmem:[%s1729 + $0x1a0] sm:$0xff]
      %v1783 = vld [vmem:[%s1729 + $0x1a8] sm:$0xff]
      %v1784 = vld [vmem:[%s1729 + $0x1b0] sm:$0xff]
      %v1785 = vld [vmem:[%s1729 + $0x1b8] sm:$0xff]
      %v1786 = vld [vmem:[%s1729 + $0x1c0] sm:$0xff]
      %v1787 = vld [vmem:[%s1729 + $0x1c8] sm:$0xff]
      %v1788 = vld [vmem:[%s1729 + $0x1d0] sm:$0xff]
      %v1789 = vld [vmem:[%s1729 + $0x1d8] sm:$0xff]
      %v1790 = vld [vmem:[%s1729 + $0x1e0] sm:$0xff]
      %v1791 = vld [vmem:[%s1729 + $0x1e8] sm:$0xff]
      %v1792 = vld [vmem:[%s1729 + $0x1f0] sm:$0xff]
      %v1793 = vld [vmem:[%s1729 + $0x1f8] sm:$0xff]
      %s1794 = scalar_lea.vmem %s3, 10
      %v1795 = vld [vmem:[%s1794] sm:$0x3]
      %v1797 = vlaneseq
      %v1798 = vshrl.u32 %v1797, 7
      %v1799 = vsub.s32 0, %v1798
      %v1800 = vrot.slane %v1795, %v1799
      %v1801 = vlaneseq
      %v1802 = vshrl.u32 %v1801, 7
      %v1803 = vsub.s32 1, %v1802
      %v1804 = vrot.slane %v1795, %v1803
      %1807 = vmatprep.subr.mxu0 %v1731
      %1808 = vmatpush1.msra.mxu0 %v1730
      %1809 = vmatprep.subr.mxu0 %v1733
      %1810 = vmatpush1.msra.mxu0 %v1732
      %1811 = vmatprep.subr.mxu0 %v1735
      %1812 = vmatpush1.msra.mxu0 %v1734
      %1813 = vmatprep.subr.mxu0 %v1737
      %1814 = vmatpush1.msra.mxu0 %v1736
      %1815 = vmatprep.subr.mxu0 %v1739
      %1816 = vmatpush1.msra.mxu0 %v1738
      %1817 = vmatprep.subr.mxu0 %v1741
      %1818 = vmatpush1.msra.mxu0 %v1740
      %1819 = vmatprep.subr.mxu0 %v1743
      %1820 = vmatpush1.msra.mxu0 %v1742
      %1821 = vmatprep.subr.mxu0 %v1745
      %1822 = vmatpush1.msra.mxu0 %v1744
      %1823 = vmatprep.subr.mxu0 %v1747
      %1824 = vmatpush1.msra.mxu0 %v1746
      %1825 = vmatprep.subr.mxu0 %v1749
      %1826 = vmatpush1.msra.mxu0 %v1748
      %1827 = vmatprep.subr.mxu0 %v1751
      %1828 = vmatpush1.msra.mxu0 %v1750
      %1829 = vmatprep.subr.mxu0 %v1753
      %1830 = vmatpush1.msra.mxu0 %v1752
      %1831 = vmatprep.subr.mxu0 %v1755
      %1832 = vmatpush1.msra.mxu0 %v1754
      %1833 = vmatprep.subr.mxu0 %v1757
      %1834 = vmatpush1.msra.mxu0 %v1756
      %1835 = vmatprep.subr.mxu0 %v1759
      %1836 = vmatpush1.msra.mxu0 %v1758
      %1837 = vmatprep.subr.mxu0 %v1761
      %1838 = vmatpush1.msra.mxu0 %v1760
      %1839 = vmatprep.subr.mxu0 %v1763
      %1840 = vmatpush1.msra.mxu0 %v1762
      %1841 = vmatprep.subr.mxu0 %v1765
      %1842 = vmatpush1.msra.mxu0 %v1764
      %1843 = vmatprep.subr.mxu0 %v1767
      %1844 = vmatpush1.msra.mxu0 %v1766
      %1845 = vmatprep.subr.mxu0 %v1769
      %1846 = vmatpush1.msra.mxu0 %v1768
      %1847 = vmatprep.subr.mxu0 %v1771
      %1848 = vmatpush1.msra.mxu0 %v1770
      %1849 = vmatprep.subr.mxu0 %v1773
      %1850 = vmatpush1.msra.mxu0 %v1772
      %1851 = vmatprep.subr.mxu0 %v1775
      %1852 = vmatpush1.msra.mxu0 %v1774
      %1853 = vmatprep.subr.mxu0 %v1777
      %1854 = vmatpush1.msra.mxu0 %v1776
      %1855 = vmatprep.subr.mxu0 %v1779
      %1856 = vmatpush1.msra.mxu0 %v1778
      %1857 = vmatprep.subr.mxu0 %v1781
      %1858 = vmatpush1.msra.mxu0 %v1780
      %1859 = vmatprep.subr.mxu0 %v1783
      %1860 = vmatpush1.msra.mxu0 %v1782
      %1861 = vmatprep.subr.mxu0 %v1785
      %1862 = vmatpush1.msra.mxu0 %v1784
      %1863 = vmatprep.subr.mxu0 %v1787
      %1864 = vmatpush1.msra.mxu0 %v1786
      %1865 = vmatprep.subr.mxu0 %v1789
      %1866 = vmatpush1.msra.mxu0 %v1788
      %1867 = vmatprep.subr.mxu0 %v1791
      %1868 = vmatpush1.msra.mxu0 %v1790
      %1869 = vmatprep.subr.mxu0 %v1793
      %1870 = vmatpush1.msra.mxu0 %v1792
      %1871 = vmatprep.mubr.f32.mxu0 %v1727
      %1872 = vmatmul.mubr.f32.gmra.mrb[0].mxu0 %v1725
      %v1873 = vpop.f32.mrb[0].mxu0
      %v1874 = vadd.f32 %v1800, %v1873
      %v1875 = vpop.f32.mrb[0].mxu0
      %v1876 = vadd.f32 %v1804, %v1875
      %1877 = vdwg.mxu0
      %v1878 = vmax.f32 %v1874, 0.0
      %v1879 = vmax.f32 %v1876, 0.0
      %s1880 = scalar_lea.vmem %s2, 2560
      %v1881 = vld [vmem:[%s1880] sm:$0xff]
      %v1882 = vld [vmem:[%s1880 + $0x8] sm:$0xff]
      %v1883 = vld [vmem:[%s1880 + $0x10] sm:$0xff]
      %v1884 = vld [vmem:[%s1880 + $0x18] sm:$0xff]
      %v1885 = vld [vmem:[%s1880 + $0x20] sm:$0xff]
      %v1886 = vld [vmem:[%s1880 + $0x28] sm:$0xff]
      %v1887 = vld [vmem:[%s1880 + $0x30] sm:$0xff]
      %v1888 = vld [vmem:[%s1880 + $0x38] sm:$0xff]
      %v1889 = vld [vmem:[%s1880 + $0x40] sm:$0xff]
      %v1890 = vld [vmem:[%s1880 + $0x48] sm:$0xff]
      %v1891 = vld [vmem:[%s1880 + $0x50] sm:$0xff]
      %v1892 = vld [vmem:[%s1880 + $0x58] sm:$0xff]
      %v1893 = vld [vmem:[%s1880 + $0x60] sm:$0xff]
      %v1894 = vld [vmem:[%s1880 + $0x68] sm:$0xff]
      %v1895 = vld [vmem:[%s1880 + $0x70] sm:$0xff]
      %v1896 = vld [vmem:[%s1880 + $0x78] sm:$0xff]
      %v1897 = vld [vmem:[%s1880 + $0x80] sm:$0xff]
      %v1898 = vld [vmem:[%s1880 + $0x88] sm:$0xff]
      %v1899 = vld [vmem:[%s1880 + $0x90] sm:$0xff]
      %v1900 = vld [vmem:[%s1880 + $0x98] sm:$0xff]
      %v1901 = vld [vmem:[%s1880 + $0xa0] sm:$0xff]
      %v1902 = vld [vmem:[%s1880 + $0xa8] sm:$0xff]
      %v1903 = vld [vmem:[%s1880 + $0xb0] sm:$0xff]
      %v1904 = vld [vmem:[%s1880 + $0xb8] sm:$0xff]
      %v1905 = vld [vmem:[%s1880 + $0xc0] sm:$0xff]
      %v1906 = vld [vmem:[%s1880 + $0xc8] sm:$0xff]
      %v1907 = vld [vmem:[%s1880 + $0xd0] sm:$0xff]
      %v1908 = vld [vmem:[%s1880 + $0xd8] sm:$0xff]
      %v1909 = vld [vmem:[%s1880 + $0xe0] sm:$0xff]
      %v1910 = vld [vmem:[%s1880 + $0xe8] sm:$0xff]
      %v1911 = vld [vmem:[%s1880 + $0xf0] sm:$0xff]
      %v1912 = vld [vmem:[%s1880 + $0xf8] sm:$0xff]
      %v1913 = vld [vmem:[%s1880 + $0x100] sm:$0xff]
      %v1914 = vld [vmem:[%s1880 + $0x108] sm:$0xff]
      %v1915 = vld [vmem:[%s1880 + $0x110] sm:$0xff]
      %v1916 = vld [vmem:[%s1880 + $0x118] sm:$0xff]
      %v1917 = vld [vmem:[%s1880 + $0x120] sm:$0xff]
      %v1918 = vld [vmem:[%s1880 + $0x128] sm:$0xff]
      %v1919 = vld [vmem:[%s1880 + $0x130] sm:$0xff]
      %v1920 = vld [vmem:[%s1880 + $0x138] sm:$0xff]
      %v1921 = vld [vmem:[%s1880 + $0x140] sm:$0xff]
      %v1922 = vld [vmem:[%s1880 + $0x148] sm:$0xff]
      %v1923 = vld [vmem:[%s1880 + $0x150] sm:$0xff]
      %v1924 = vld [vmem:[%s1880 + $0x158] sm:$0xff]
      %v1925 = vld [vmem:[%s1880 + $0x160] sm:$0xff]
      %v1926 = vld [vmem:[%s1880 + $0x168] sm:$0xff]
      %v1927 = vld [vmem:[%s1880 + $0x170] sm:$0xff]
      %v1928 = vld [vmem:[%s1880 + $0x178] sm:$0xff]
      %v1929 = vld [vmem:[%s1880 + $0x180] sm:$0xff]
      %v1930 = vld [vmem:[%s1880 + $0x188] sm:$0xff]
      %v1931 = vld [vmem:[%s1880 + $0x190] sm:$0xff]
      %v1932 = vld [vmem:[%s1880 + $0x198] sm:$0xff]
      %v1933 = vld [vmem:[%s1880 + $0x1a0] sm:$0xff]
      %v1934 = vld [vmem:[%s1880 + $0x1a8] sm:$0xff]
      %v1935 = vld [vmem:[%s1880 + $0x1b0] sm:$0xff]
      %v1936 = vld [vmem:[%s1880 + $0x1b8] sm:$0xff]
      %v1937 = vld [vmem:[%s1880 + $0x1c0] sm:$0xff]
      %v1938 = vld [vmem:[%s1880 + $0x1c8] sm:$0xff]
      %v1939 = vld [vmem:[%s1880 + $0x1d0] sm:$0xff]
      %v1940 = vld [vmem:[%s1880 + $0x1d8] sm:$0xff]
      %v1941 = vld [vmem:[%s1880 + $0x1e0] sm:$0xff]
      %v1942 = vld [vmem:[%s1880 + $0x1e8] sm:$0xff]
      %v1943 = vld [vmem:[%s1880 + $0x1f0] sm:$0xff]
      %v1944 = vld [vmem:[%s1880 + $0x1f8] sm:$0xff]
      %s1945 = scalar_lea.vmem %s3, 12
      %v1946 = vld [vmem:[%s1945] sm:$0x3]
      %v1948 = vlaneseq
      %v1949 = vshrl.u32 %v1948, 7
      %v1950 = vsub.s32 0, %v1949
      %v1951 = vrot.slane %v1946, %v1950
      %v1952 = vlaneseq
      %v1953 = vshrl.u32 %v1952, 7
      %v1954 = vsub.s32 1, %v1953
      %v1955 = vrot.slane %v1946, %v1954
      %1958 = vmatprep.subr.mxu0 %v1882
      %1959 = vmatpush1.msra.mxu0 %v1881
      %1960 = vmatprep.subr.mxu0 %v1884
      %1961 = vmatpush1.msra.mxu0 %v1883
      %1962 = vmatprep.subr.mxu0 %v1886
      %1963 = vmatpush1.msra.mxu0 %v1885
      %1964 = vmatprep.subr.mxu0 %v1888
      %1965 = vmatpush1.msra.mxu0 %v1887
      %1966 = vmatprep.subr.mxu0 %v1890
      %1967 = vmatpush1.msra.mxu0 %v1889
      %1968 = vmatprep.subr.mxu0 %v1892
      %1969 = vmatpush1.msra.mxu0 %v1891
      %1970 = vmatprep.subr.mxu0 %v1894
      %1971 = vmatpush1.msra.mxu0 %v1893
      %1972 = vmatprep.subr.mxu0 %v1896
      %1973 = vmatpush1.msra.mxu0 %v1895
      %1974 = vmatprep.subr.mxu0 %v1898
      %1975 = vmatpush1.msra.mxu0 %v1897
      %1976 = vmatprep.subr.mxu0 %v1900
      %1977 = vmatpush1.msra.mxu0 %v1899
      %1978 = vmatprep.subr.mxu0 %v1902
      %1979 = vmatpush1.msra.mxu0 %v1901
      %1980 = vmatprep.subr.mxu0 %v1904
      %1981 = vmatpush1.msra.mxu0 %v1903
      %1982 = vmatprep.subr.mxu0 %v1906
      %1983 = vmatpush1.msra.mxu0 %v1905
      %1984 = vmatprep.subr.mxu0 %v1908
      %1985 = vmatpush1.msra.mxu0 %v1907
      %1986 = vmatprep.subr.mxu0 %v1910
      %1987 = vmatpush1.msra.mxu0 %v1909
      %1988 = vmatprep.subr.mxu0 %v1912
      %1989 = vmatpush1.msra.mxu0 %v1911
      %1990 = vmatprep.subr.mxu0 %v1914
      %1991 = vmatpush1.msra.mxu0 %v1913
      %1992 = vmatprep.subr.mxu0 %v1916
      %1993 = vmatpush1.msra.mxu0 %v1915
      %1994 = vmatprep.subr.mxu0 %v1918
      %1995 = vmatpush1.msra.mxu0 %v1917
      %1996 = vmatprep.subr.mxu0 %v1920
      %1997 = vmatpush1.msra.mxu0 %v1919
      %1998 = vmatprep.subr.mxu0 %v1922
      %1999 = vmatpush1.msra.mxu0 %v1921
      %2000 = vmatprep.subr.mxu0 %v1924
      %2001 = vmatpush1.msra.mxu0 %v1923
      %2002 = vmatprep.subr.mxu0 %v1926
      %2003 = vmatpush1.msra.mxu0 %v1925
      %2004 = vmatprep.subr.mxu0 %v1928
      %2005 = vmatpush1.msra.mxu0 %v1927
      %2006 = vmatprep.subr.mxu0 %v1930
      %2007 = vmatpush1.msra.mxu0 %v1929
      %2008 = vmatprep.subr.mxu0 %v1932
      %2009 = vmatpush1.msra.mxu0 %v1931
      %2010 = vmatprep.subr.mxu0 %v1934
      %2011 = vmatpush1.msra.mxu0 %v1933
      %2012 = vmatprep.subr.mxu0 %v1936
      %2013 = vmatpush1.msra.mxu0 %v1935
      %2014 = vmatprep.subr.mxu0 %v1938
      %2015 = vmatpush1.msra.mxu0 %v1937
      %2016 = vmatprep.subr.mxu0 %v1940
      %2017 = vmatpush1.msra.mxu0 %v1939
      %2018 = vmatprep.subr.mxu0 %v1942
      %2019 = vmatpush1.msra.mxu0 %v1941
      %2020 = vmatprep.subr.mxu0 %v1944
      %2021 = vmatpush1.msra.mxu0 %v1943
      %2022 = vmatprep.mubr.f32.mxu0 %v1879
      %2023 = vmatmul.mubr.f32.gmra.mrb[0].mxu0 %v1878
      %v2024 = vpop.f32.mrb[0].mxu0
      %v2025 = vadd.f32 %v1951, %v2024
      %v2026 = vpop.f32.mrb[0].mxu0
      %v2027 = vadd.f32 %v1955, %v2026
      %2028 = vdwg.mxu0
      %v2029 = vmax.f32 %v2025, 0.0
      %v2030 = vmax.f32 %v2027, 0.0
      %s2031 = scalar_lea.vmem %s2, 3072
      %v2032 = vld [vmem:[%s2031] sm:$0xff]
      %v2033 = vld [vmem:[%s2031 + $0x8] sm:$0xff]
      %v2034 = vld [vmem:[%s2031 + $0x10] sm:$0xff]
      %v2035 = vld [vmem:[%s2031 + $0x18] sm:$0xff]
      %v2036 = vld [vmem:[%s2031 + $0x20] sm:$0xff]
      %v2037 = vld [vmem:[%s2031 + $0x28] sm:$0xff]
      %v2038 = vld [vmem:[%s2031 + $0x30] sm:$0xff]
      %v2039 = vld [vmem:[%s2031 + $0x38] sm:$0xff]
      %v2040 = vld [vmem:[%s2031 + $0x40] sm:$0xff]
      %v2041 = vld [vmem:[%s2031 + $0x48] sm:$0xff]
      %v2042 = vld [vmem:[%s2031 + $0x50] sm:$0xff]
      %v2043 = vld [vmem:[%s2031 + $0x58] sm:$0xff]
      %v2044 = vld [vmem:[%s2031 + $0x60] sm:$0xff]
      %v2045 = vld [vmem:[%s2031 + $0x68] sm:$0xff]
      %v2046 = vld [vmem:[%s2031 + $0x70] sm:$0xff]
      %v2047 = vld [vmem:[%s2031 + $0x78] sm:$0xff]
      %v2048 = vld [vmem:[%s2031 + $0x80] sm:$0xff]
      %v2049 = vld [vmem:[%s2031 + $0x88] sm:$0xff]
      %v2050 = vld [vmem:[%s2031 + $0x90] sm:$0xff]
      %v2051 = vld [vmem:[%s2031 + $0x98] sm:$0xff]
      %v2052 = vld [vmem:[%s2031 + $0xa0] sm:$0xff]
      %v2053 = vld [vmem:[%s2031 + $0xa8] sm:$0xff]
      %v2054 = vld [vmem:[%s2031 + $0xb0] sm:$0xff]
      %v2055 = vld [vmem:[%s2031 + $0xb8] sm:$0xff]
      %v2056 = vld [vmem:[%s2031 + $0xc0] sm:$0xff]
      %v2057 = vld [vmem:[%s2031 + $0xc8] sm:$0xff]
      %v2058 = vld [vmem:[%s2031 + $0xd0] sm:$0xff]
      %v2059 = vld [vmem:[%s2031 + $0xd8] sm:$0xff]
      %v2060 = vld [vmem:[%s2031 + $0xe0] sm:$0xff]
      %v2061 = vld [vmem:[%s2031 + $0xe8] sm:$0xff]
      %v2062 = vld [vmem:[%s2031 + $0xf0] sm:$0xff]
      %v2063 = vld [vmem:[%s2031 + $0xf8] sm:$0xff]
      %v2064 = vld [vmem:[%s2031 + $0x100] sm:$0xff]
      %v2065 = vld [vmem:[%s2031 + $0x108] sm:$0xff]
      %v2066 = vld [vmem:[%s2031 + $0x110] sm:$0xff]
      %v2067 = vld [vmem:[%s2031 + $0x118] sm:$0xff]
      %v2068 = vld [vmem:[%s2031 + $0x120] sm:$0xff]
      %v2069 = vld [vmem:[%s2031 + $0x128] sm:$0xff]
      %v2070 = vld [vmem:[%s2031 + $0x130] sm:$0xff]
      %v2071 = vld [vmem:[%s2031 + $0x138] sm:$0xff]
      %v2072 = vld [vmem:[%s2031 + $0x140] sm:$0xff]
      %v2073 = vld [vmem:[%s2031 + $0x148] sm:$0xff]
      %v2074 = vld [vmem:[%s2031 + $0x150] sm:$0xff]
      %v2075 = vld [vmem:[%s2031 + $0x158] sm:$0xff]
      %v2076 = vld [vmem:[%s2031 + $0x160] sm:$0xff]
      %v2077 = vld [vmem:[%s2031 + $0x168] sm:$0xff]
      %v2078 = vld [vmem:[%s2031 + $0x170] sm:$0xff]
      %v2079 = vld [vmem:[%s2031 + $0x178] sm:$0xff]
      %v2080 = vld [vmem:[%s2031 + $0x180] sm:$0xff]
      %v2081 = vld [vmem:[%s2031 + $0x188] sm:$0xff]
      %v2082 = vld [vmem:[%s2031 + $0x190] sm:$0xff]
      %v2083 = vld [vmem:[%s2031 + $0x198] sm:$0xff]
      %v2084 = vld [vmem:[%s2031 + $0x1a0] sm:$0xff]
      %v2085 = vld [vmem:[%s2031 + $0x1a8] sm:$0xff]
      %v2086 = vld [vmem:[%s2031 + $0x1b0] sm:$0xff]
      %v2087 = vld [vmem:[%s2031 + $0x1b8] sm:$0xff]
      %v2088 = vld [vmem:[%s2031 + $0x1c0] sm:$0xff]
      %v2089 = vld [vmem:[%s2031 + $0x1c8] sm:$0xff]
      %v2090 = vld [vmem:[%s2031 + $0x1d0] sm:$0xff]
      %v2091 = vld [vmem:[%s2031 + $0x1d8] sm:$0xff]
      %v2092 = vld [vmem:[%s2031 + $0x1e0] sm:$0xff]
      %v2093 = vld [vmem:[%s2031 + $0x1e8] sm:$0xff]
      %v2094 = vld [vmem:[%s2031 + $0x1f0] sm:$0xff]
      %v2095 = vld [vmem:[%s2031 + $0x1f8] sm:$0xff]
      %s2096 = scalar_lea.vmem %s3, 14
      %v2097 = vld [vmem:[%s2096] sm:$0x3]
      %v2099 = vlaneseq
      %v2100 = vshrl.u32 %v2099, 7
      %v2101 = vsub.s32 0, %v2100
      %v2102 = vrot.slane %v2097, %v2101
      %v2103 = vlaneseq
      %v2104 = vshrl.u32 %v2103, 7
      %v2105 = vsub.s32 1, %v2104
      %v2106 = vrot.slane %v2097, %v2105
      %2109 = vmatprep.subr.mxu0 %v2033
      %2110 = vmatpush1.msra.mxu0 %v2032
      %2111 = vmatprep.subr.mxu0 %v2035
      %2112 = vmatpush1.msra.mxu0 %v2034
      %2113 = vmatprep.subr.mxu0 %v2037
      %2114 = vmatpush1.msra.mxu0 %v2036
      %2115 = vmatprep.subr.mxu0 %v2039
      %2116 = vmatpush1.msra.mxu0 %v2038
      %2117 = vmatprep.subr.mxu0 %v2041
      %2118 = vmatpush1.msra.mxu0 %v2040
      %2119 = vmatprep.subr.mxu0 %v2043
      %2120 = vmatpush1.msra.mxu0 %v2042
      %2121 = vmatprep.subr.mxu0 %v2045
      %2122 = vmatpush1.msra.mxu0 %v2044
      %2123 = vmatprep.subr.mxu0 %v2047
      %2124 = vmatpush1.msra.mxu0 %v2046
      %2125 = vmatprep.subr.mxu0 %v2049
      %2126 = vmatpush1.msra.mxu0 %v2048
      %2127 = vmatprep.subr.mxu0 %v2051
      %2128 = vmatpush1.msra.mxu0 %v2050
      %2129 = vmatprep.subr.mxu0 %v2053
      %2130 = vmatpush1.msra.mxu0 %v2052
      %2131 = vmatprep.subr.mxu0 %v2055
      %2132 = vmatpush1.msra.mxu0 %v2054
      %2133 = vmatprep.subr.mxu0 %v2057
      %2134 = vmatpush1.msra.mxu0 %v2056
      %2135 = vmatprep.subr.mxu0 %v2059
      %2136 = vmatpush1.msra.mxu0 %v2058
      %2137 = vmatprep.subr.mxu0 %v2061
      %2138 = vmatpush1.msra.mxu0 %v2060
      %2139 = vmatprep.subr.mxu0 %v2063
      %2140 = vmatpush1.msra.mxu0 %v2062
      %2141 = vmatprep.subr.mxu0 %v2065
      %2142 = vmatpush1.msra.mxu0 %v2064
      %2143 = vmatprep.subr.mxu0 %v2067
      %2144 = vmatpush1.msra.mxu0 %v2066
      %2145 = vmatprep.subr.mxu0 %v2069
      %2146 = vmatpush1.msra.mxu0 %v2068
      %2147 = vmatprep.subr.mxu0 %v2071
      %2148 = vmatpush1.msra.mxu0 %v2070
      %2149 = vmatprep.subr.mxu0 %v2073
      %2150 = vmatpush1.msra.mxu0 %v2072
      %2151 = vmatprep.subr.mxu0 %v2075
      %2152 = vmatpush1.msra.mxu0 %v2074
      %2153 = vmatprep.subr.mxu0 %v2077
      %2154 = vmatpush1.msra.mxu0 %v2076
      %2155 = vmatprep.subr.mxu0 %v2079
      %2156 = vmatpush1.msra.mxu0 %v2078
      %2157 = vmatprep.subr.mxu0 %v2081
      %2158 = vmatpush1.msra.mxu0 %v2080
      %2159 = vmatprep.subr.mxu0 %v2083
      %2160 = vmatpush1.msra.mxu0 %v2082
      %2161 = vmatprep.subr.mxu0 %v2085
      %2162 = vmatpush1.msra.mxu0 %v2084
      %2163 = vmatprep.subr.mxu0 %v2087
      %2164 = vmatpush1.msra.mxu0 %v2086
      %2165 = vmatprep.subr.mxu0 %v2089
      %2166 = vmatpush1.msra.mxu0 %v2088
      %2167 = vmatprep.subr.mxu0 %v2091
      %2168 = vmatpush1.msra.mxu0 %v2090
      %2169 = vmatprep.subr.mxu0 %v2093
      %2170 = vmatpush1.msra.mxu0 %v2092
      %2171 = vmatprep.subr.mxu0 %v2095
      %2172 = vmatpush1.msra.mxu0 %v2094
      %2173 = vmatprep.mubr.f32.mxu0 %v2030
      %2174 = vmatmul.mubr.f32.gmra.mrb[0].mxu0 %v2029
      %v2175 = vpop.f32.mrb[0].mxu0
      %v2176 = vadd.f32 %v2102, %v2175
      %v2177 = vpop.f32.mrb[0].mxu0
      %v2178 = vadd.f32 %v2106, %v2177
      %2179 = vdwg.mxu0
      %v2180 = vmax.f32 %v2176, 0.0
      %v2181 = vmax.f32 %v2178, 0.0
      %s2182 = scalar_lea.vmem %s2, 3584
      %v2183 = vld [vmem:[%s2182] sm:$0xff]
      %v2184 = vld [vmem:[%s2182 + $0x8] sm:$0xff]
      %v2185 = vld [vmem:[%s2182 + $0x10] sm:$0xff]
      %v2186 = vld [vmem:[%s2182 + $0x18] sm:$0xff]
      %v2187 = vld [vmem:[%s2182 + $0x20] sm:$0xff]
      %v2188 = vld [vmem:[%s2182 + $0x28] sm:$0xff]
      %v2189 = vld [vmem:[%s2182 + $0x30] sm:$0xff]
      %v2190 = vld [vmem:[%s2182 + $0x38] sm:$0xff]
      %v2191 = vld [vmem:[%s2182 + $0x40] sm:$0xff]
      %v2192 = vld [vmem:[%s2182 + $0x48] sm:$0xff]
      %v2193 = vld [vmem:[%s2182 + $0x50] sm:$0xff]
      %v2194 = vld [vmem:[%s2182 + $0x58] sm:$0xff]
      %v2195 = vld [vmem:[%s2182 + $0x60] sm:$0xff]
      %v2196 = vld [vmem:[%s2182 + $0x68] sm:$0xff]
      %v2197 = vld [vmem:[%s2182 + $0x70] sm:$0xff]
      %v2198 = vld [vmem:[%s2182 + $0x78] sm:$0xff]
      %v2199 = vld [vmem:[%s2182 + $0x80] sm:$0xff]
      %v2200 = vld [vmem:[%s2182 + $0x88] sm:$0xff]
      %v2201 = vld [vmem:[%s2182 + $0x90] sm:$0xff]
      %v2202 = vld [vmem:[%s2182 + $0x98] sm:$0xff]
      %v2203 = vld [vmem:[%s2182 + $0xa0] sm:$0xff]
      %v2204 = vld [vmem:[%s2182 + $0xa8] sm:$0xff]
      %v2205 = vld [vmem:[%s2182 + $0xb0] sm:$0xff]
      %v2206 = vld [vmem:[%s2182 + $0xb8] sm:$0xff]
      %v2207 = vld [vmem:[%s2182 + $0xc0] sm:$0xff]
      %v2208 = vld [vmem:[%s2182 + $0xc8] sm:$0xff]
      %v2209 = vld [vmem:[%s2182 + $0xd0] sm:$0xff]
      %v2210 = vld [vmem:[%s2182 + $0xd8] sm:$0xff]
      %v2211 = vld [vmem:[%s2182 + $0xe0] sm:$0xff]
      %v2212 = vld [vmem:[%s2182 + $0xe8] sm:$0xff]
      %v2213 = vld [vmem:[%s2182 + $0xf0] sm:$0xff]
      %v2214 = vld [vmem:[%s2182 + $0xf8] sm:$0xff]
      %v2215 = vld [vmem:[%s2182 + $0x100] sm:$0xff]
      %v2216 = vld [vmem:[%s2182 + $0x108] sm:$0xff]
      %v2217 = vld [vmem:[%s2182 + $0x110] sm:$0xff]
      %v2218 = vld [vmem:[%s2182 + $0x118] sm:$0xff]
      %v2219 = vld [vmem:[%s2182 + $0x120] sm:$0xff]
      %v2220 = vld [vmem:[%s2182 + $0x128] sm:$0xff]
      %v2221 = vld [vmem:[%s2182 + $0x130] sm:$0xff]
      %v2222 = vld [vmem:[%s2182 + $0x138] sm:$0xff]
      %v2223 = vld [vmem:[%s2182 + $0x140] sm:$0xff]
      %v2224 = vld [vmem:[%s2182 + $0x148] sm:$0xff]
      %v2225 = vld [vmem:[%s2182 + $0x150] sm:$0xff]
      %v2226 = vld [vmem:[%s2182 + $0x158] sm:$0xff]
      %v2227 = vld [vmem:[%s2182 + $0x160] sm:$0xff]
      %v2228 = vld [vmem:[%s2182 + $0x168] sm:$0xff]
      %v2229 = vld [vmem:[%s2182 + $0x170] sm:$0xff]
      %v2230 = vld [vmem:[%s2182 + $0x178] sm:$0xff]
      %v2231 = vld [vmem:[%s2182 + $0x180] sm:$0xff]
      %v2232 = vld [vmem:[%s2182 + $0x188] sm:$0xff]
      %v2233 = vld [vmem:[%s2182 + $0x190] sm:$0xff]
      %v2234 = vld [vmem:[%s2182 + $0x198] sm:$0xff]
      %v2235 = vld [vmem:[%s2182 + $0x1a0] sm:$0xff]
      %v2236 = vld [vmem:[%s2182 + $0x1a8] sm:$0xff]
      %v2237 = vld [vmem:[%s2182 + $0x1b0] sm:$0xff]
      %v2238 = vld [vmem:[%s2182 + $0x1b8] sm:$0xff]
      %v2239 = vld [vmem:[%s2182 + $0x1c0] sm:$0xff]
      %v2240 = vld [vmem:[%s2182 + $0x1c8] sm:$0xff]
      %v2241 = vld [vmem:[%s2182 + $0x1d0] sm:$0xff]
      %v2242 = vld [vmem:[%s2182 + $0x1d8] sm:$0xff]
      %v2243 = vld [vmem:[%s2182 + $0x1e0] sm:$0xff]
      %v2244 = vld [vmem:[%s2182 + $0x1e8] sm:$0xff]
      %v2245 = vld [vmem:[%s2182 + $0x1f0] sm:$0xff]
      %v2246 = vld [vmem:[%s2182 + $0x1f8] sm:$0xff]
      %s2247 = scalar_lea.vmem %s3, 16
      %v2248 = vld [vmem:[%s2247] sm:$0x3]
      %v2250 = vlaneseq
      %v2251 = vshrl.u32 %v2250, 7
      %v2252 = vsub.s32 0, %v2251
      %v2253 = vrot.slane %v2248, %v2252
      %v2254 = vlaneseq
      %v2255 = vshrl.u32 %v2254, 7
      %v2256 = vsub.s32 1, %v2255
      %v2257 = vrot.slane %v2248, %v2256
      %2260 = vmatprep.subr.mxu0 %v2184
      %2261 = vmatpush1.msra.mxu0 %v2183
      %2262 = vmatprep.subr.mxu0 %v2186
      %2263 = vmatpush1.msra.mxu0 %v2185
      %2264 = vmatprep.subr.mxu0 %v2188
      %2265 = vmatpush1.msra.mxu0 %v2187
      %2266 = vmatprep.subr.mxu0 %v2190
      %2267 = vmatpush1.msra.mxu0 %v2189
      %2268 = vmatprep.subr.mxu0 %v2192
      %2269 = vmatpush1.msra.mxu0 %v2191
      %2270 = vmatprep.subr.mxu0 %v2194
      %2271 = vmatpush1.msra.mxu0 %v2193
      %2272 = vmatprep.subr.mxu0 %v2196
      %2273 = vmatpush1.msra.mxu0 %v2195
      %2274 = vmatprep.subr.mxu0 %v2198
      %2275 = vmatpush1.msra.mxu0 %v2197
      %2276 = vmatprep.subr.mxu0 %v2200
      %2277 = vmatpush1.msra.mxu0 %v2199
      %2278 = vmatprep.subr.mxu0 %v2202
      %2279 = vmatpush1.msra.mxu0 %v2201
      %2280 = vmatprep.subr.mxu0 %v2204
      %2281 = vmatpush1.msra.mxu0 %v2203
      %2282 = vmatprep.subr.mxu0 %v2206
      %2283 = vmatpush1.msra.mxu0 %v2205
      %2284 = vmatprep.subr.mxu0 %v2208
      %2285 = vmatpush1.msra.mxu0 %v2207
      %2286 = vmatprep.subr.mxu0 %v2210
      %2287 = vmatpush1.msra.mxu0 %v2209
      %2288 = vmatprep.subr.mxu0 %v2212
      %2289 = vmatpush1.msra.mxu0 %v2211
      %2290 = vmatprep.subr.mxu0 %v2214
      %2291 = vmatpush1.msra.mxu0 %v2213
      %2292 = vmatprep.subr.mxu0 %v2216
      %2293 = vmatpush1.msra.mxu0 %v2215
      %2294 = vmatprep.subr.mxu0 %v2218
      %2295 = vmatpush1.msra.mxu0 %v2217
      %2296 = vmatprep.subr.mxu0 %v2220
      %2297 = vmatpush1.msra.mxu0 %v2219
      %2298 = vmatprep.subr.mxu0 %v2222
      %2299 = vmatpush1.msra.mxu0 %v2221
      %2300 = vmatprep.subr.mxu0 %v2224
      %2301 = vmatpush1.msra.mxu0 %v2223
      %2302 = vmatprep.subr.mxu0 %v2226
      %2303 = vmatpush1.msra.mxu0 %v2225
      %2304 = vmatprep.subr.mxu0 %v2228
      %2305 = vmatpush1.msra.mxu0 %v2227
      %2306 = vmatprep.subr.mxu0 %v2230
      %2307 = vmatpush1.msra.mxu0 %v2229
      %2308 = vmatprep.subr.mxu0 %v2232
      %2309 = vmatpush1.msra.mxu0 %v2231
      %2310 = vmatprep.subr.mxu0 %v2234
      %2311 = vmatpush1.msra.mxu0 %v2233
      %2312 = vmatprep.subr.mxu0 %v2236
      %2313 = vmatpush1.msra.mxu0 %v2235
      %2314 = vmatprep.subr.mxu0 %v2238
      %2315 = vmatpush1.msra.mxu0 %v2237
      %2316 = vmatprep.subr.mxu0 %v2240
      %2317 = vmatpush1.msra.mxu0 %v2239
      %2318 = vmatprep.subr.mxu0 %v2242
      %2319 = vmatpush1.msra.mxu0 %v2241
      %2320 = vmatprep.subr.mxu0 %v2244
      %2321 = vmatpush1.msra.mxu0 %v2243
      %2322 = vmatprep.subr.mxu0 %v2246
      %2323 = vmatpush1.msra.mxu0 %v2245
      %2324 = vmatprep.mubr.f32.mxu0 %v2181
      %2325 = vmatmul.mubr.f32.gmra.mrb[0].mxu0 %v2180
      %v2326 = vpop.f32.mrb[0].mxu0
      %v2327 = vadd.f32 %v2253, %v2326
      %v2328 = vpop.f32.mrb[0].mxu0
      %v2329 = vadd.f32 %v2257, %v2328
      %2330 = vdwg.mxu0
      %v2331 = vadd.f32 %v1425, %v2327
      %v2332 = vadd.f32 %v1427, %v2329
      %s2333 = scalar_lea.vmem %s2, 4096
      %v2334 = vld [vmem:[%s2333] sm:$0xff]
      %v2335 = vld [vmem:[%s2333 + $0x8] sm:$0xff]
      %v2336 = vld [vmem:[%s2333 + $0x10] sm:$0xff]
      %v2337 = vld [vmem:[%s2333 + $0x18] sm:$0xff]
      %v2338 = vld [vmem:[%s2333 + $0x20] sm:$0xff]
      %v2339 = vld [vmem:[%s2333 + $0x28] sm:$0xff]
      %v2340 = vld [vmem:[%s2333 + $0x30] sm:$0xff]
      %v2341 = vld [vmem:[%s2333 + $0x38] sm:$0xff]
      %v2342 = vld [vmem:[%s2333 + $0x40] sm:$0xff]
      %v2343 = vld [vmem:[%s2333 + $0x48] sm:$0xff]
      %v2344 = vld [vmem:[%s2333 + $0x50] sm:$0xff]
      %v2345 = vld [vmem:[%s2333 + $0x58] sm:$0xff]
      %v2346 = vld [vmem:[%s2333 + $0x60] sm:$0xff]
      %v2347 = vld [vmem:[%s2333 + $0x68] sm:$0xff]
      %v2348 = vld [vmem:[%s2333 + $0x70] sm:$0xff]
      %v2349 = vld [vmem:[%s2333 + $0x78] sm:$0xff]
      %v2350 = vld [vmem:[%s2333 + $0x80] sm:$0xff]
      %v2351 = vld [vmem:[%s2333 + $0x88] sm:$0xff]
      %v2352 = vld [vmem:[%s2333 + $0x90] sm:$0xff]
      %v2353 = vld [vmem:[%s2333 + $0x98] sm:$0xff]
      %v2354 = vld [vmem:[%s2333 + $0xa0] sm:$0xff]
      %v2355 = vld [vmem:[%s2333 + $0xa8] sm:$0xff]
      %v2356 = vld [vmem:[%s2333 + $0xb0] sm:$0xff]
      %v2357 = vld [vmem:[%s2333 + $0xb8] sm:$0xff]
      %v2358 = vld [vmem:[%s2333 + $0xc0] sm:$0xff]
      %v2359 = vld [vmem:[%s2333 + $0xc8] sm:$0xff]
      %v2360 = vld [vmem:[%s2333 + $0xd0] sm:$0xff]
      %v2361 = vld [vmem:[%s2333 + $0xd8] sm:$0xff]
      %v2362 = vld [vmem:[%s2333 + $0xe0] sm:$0xff]
      %v2363 = vld [vmem:[%s2333 + $0xe8] sm:$0xff]
      %v2364 = vld [vmem:[%s2333 + $0xf0] sm:$0xff]
      %v2365 = vld [vmem:[%s2333 + $0xf8] sm:$0xff]
      %v2366 = vld [vmem:[%s2333 + $0x100] sm:$0xff]
      %v2367 = vld [vmem:[%s2333 + $0x108] sm:$0xff]
      %v2368 = vld [vmem:[%s2333 + $0x110] sm:$0xff]
      %v2369 = vld [vmem:[%s2333 + $0x118] sm:$0xff]
      %v2370 = vld [vmem:[%s2333 + $0x120] sm:$0xff]
      %v2371 = vld [vmem:[%s2333 + $0x128] sm:$0xff]
      %v2372 = vld [vmem:[%s2333 + $0x130] sm:$0xff]
      %v2373 = vld [vmem:[%s2333 + $0x138] sm:$0xff]
      %v2374 = vld [vmem:[%s2333 + $0x140] sm:$0xff]
      %v2375 = vld [vmem:[%s2333 + $0x148] sm:$0xff]
      %v2376 = vld [vmem:[%s2333 + $0x150] sm:$0xff]
      %v2377 = vld [vmem:[%s2333 + $0x158] sm:$0xff]
      %v2378 = vld [vmem:[%s2333 + $0x160] sm:$0xff]
      %v2379 = vld [vmem:[%s2333 + $0x168] sm:$0xff]
      %v2380 = vld [vmem:[%s2333 + $0x170] sm:$0xff]
      %v2381 = vld [vmem:[%s2333 + $0x178] sm:$0xff]
      %v2382 = vld [vmem:[%s2333 + $0x180] sm:$0xff]
      %v2383 = vld [vmem:[%s2333 + $0x188] sm:$0xff]
      %v2384 = vld [vmem:[%s2333 + $0x190] sm:$0xff]
      %v2385 = vld [vmem:[%s2333 + $0x198] sm:$0xff]
      %v2386 = vld [vmem:[%s2333 + $0x1a0] sm:$0xff]
      %v2387 = vld [vmem:[%s2333 + $0x1a8] sm:$0xff]
      %v2388 = vld [vmem:[%s2333 + $0x1b0] sm:$0xff]
      %v2389 = vld [vmem:[%s2333 + $0x1b8] sm:$0xff]
      %v2390 = vld [vmem:[%s2333 + $0x1c0] sm:$0xff]
      %v2391 = vld [vmem:[%s2333 + $0x1c8] sm:$0xff]
      %v2392 = vld [vmem:[%s2333 + $0x1d0] sm:$0xff]
      %v2393 = vld [vmem:[%s2333 + $0x1d8] sm:$0xff]
      %v2394 = vld [vmem:[%s2333 + $0x1e0] sm:$0xff]
      %v2395 = vld [vmem:[%s2333 + $0x1e8] sm:$0xff]
      %v2396 = vld [vmem:[%s2333 + $0x1f0] sm:$0xff]
      %v2397 = vld [vmem:[%s2333 + $0x1f8] sm:$0xff]
      %s2398 = scalar_lea.vmem %s3, 18
      %v2399 = vld [vmem:[%s2398] sm:$0x3]
      %v2401 = vlaneseq
      %v2402 = vshrl.u32 %v2401, 7
      %v2403 = vsub.s32 0, %v2402
      %v2404 = vrot.slane %v2399, %v2403
      %2406 = vmatprep.subr.mxu0 %v2335
      %2407 = vmatpush1.msra.mxu0 %v2334
      %2408 = vmatprep.subr.mxu0 %v2337
      %2409 = vmatpush1.msra.mxu0 %v2336
      %2410 = vmatprep.subr.mxu0 %v2339
      %2411 = vmatpush1.msra.mxu0 %v2338
      %2412 = vmatprep.subr.mxu0 %v2341
      %2413 = vmatpush1.msra.mxu0 %v2340
      %2414 = vmatprep.subr.mxu0 %v2343
      %2415 = vmatpush1.msra.mxu0 %v2342
      %2416 = vmatprep.subr.mxu0 %v2345
      %2417 = vmatpush1.msra.mxu0 %v2344
      %2418 = vmatprep.subr.mxu0 %v2347
      %2419 = vmatpush1.msra.mxu0 %v2346
      %2420 = vmatprep.subr.mxu0 %v2349
      %2421 = vmatpush1.msra.mxu0 %v2348
      %2422 = vmatprep.subr.mxu0 %v2351
      %2423 = vmatpush1.msra.mxu0 %v2350
      %2424 = vmatprep.subr.mxu0 %v2353
      %2425 = vmatpush1.msra.mxu0 %v2352
      %2426 = vmatprep.subr.mxu0 %v2355
      %2427 = vmatpush1.msra.mxu0 %v2354
      %2428 = vmatprep.subr.mxu0 %v2357
      %2429 = vmatpush1.msra.mxu0 %v2356
      %2430 = vmatprep.subr.mxu0 %v2359
      %2431 = vmatpush1.msra.mxu0 %v2358
      %2432 = vmatprep.subr.mxu0 %v2361
      %2433 = vmatpush1.msra.mxu0 %v2360
      %2434 = vmatprep.subr.mxu0 %v2363
      %2435 = vmatpush1.msra.mxu0 %v2362
      %2436 = vmatprep.subr.mxu0 %v2365
      %2437 = vmatpush1.msra.mxu0 %v2364
      %2438 = vmatprep.subr.mxu0 %v2367
      %2439 = vmatpush1.msra.mxu0 %v2366
      %2440 = vmatprep.subr.mxu0 %v2369
      %2441 = vmatpush1.msra.mxu0 %v2368
      %2442 = vmatprep.subr.mxu0 %v2371
      %2443 = vmatpush1.msra.mxu0 %v2370
      %2444 = vmatprep.subr.mxu0 %v2373
      %2445 = vmatpush1.msra.mxu0 %v2372
      %2446 = vmatprep.subr.mxu0 %v2375
      %2447 = vmatpush1.msra.mxu0 %v2374
      %2448 = vmatprep.subr.mxu0 %v2377
      %2449 = vmatpush1.msra.mxu0 %v2376
      %2450 = vmatprep.subr.mxu0 %v2379
      %2451 = vmatpush1.msra.mxu0 %v2378
      %2452 = vmatprep.subr.mxu0 %v2381
      %2453 = vmatpush1.msra.mxu0 %v2380
      %2454 = vmatprep.subr.mxu0 %v2383
      %2455 = vmatpush1.msra.mxu0 %v2382
      %2456 = vmatprep.subr.mxu0 %v2385
      %2457 = vmatpush1.msra.mxu0 %v2384
      %2458 = vmatprep.subr.mxu0 %v2387
      %2459 = vmatpush1.msra.mxu0 %v2386
      %2460 = vmatprep.subr.mxu0 %v2389
      %2461 = vmatpush1.msra.mxu0 %v2388
      %2462 = vmatprep.subr.mxu0 %v2391
      %2463 = vmatpush1.msra.mxu0 %v2390
      %2464 = vmatprep.subr.mxu0 %v2393
      %2465 = vmatpush1.msra.mxu0 %v2392
      %2466 = vmatprep.subr.mxu0 %v2395
      %2467 = vmatpush1.msra.mxu0 %v2394
      %2468 = vmatprep.subr.mxu0 %v2397
      %2469 = vmatpush1.msra.mxu0 %v2396
      %2470 = vmatprep.mubr.f32.mxu0 %v2332
      %2471 = vmatmul.mubr.f32.gmra.mrb[0].mxu0 %v2331
      %v2472 = vpop.f32.mrb[0].mxu0
      %v2473 = vadd.f32 %v2404, %v2472
      %v2474 = vpop.f32.mrb[0].mxu0
      %2475 = vdwg.mxu0
      %2476 = vst [vmem:[#allocation9] sm:$0x3] %v2473
      %2477 = vst [vmem:[#allocation11] sm:$0x3] %v1128
      %2478 = vst [vmem:[#allocation13] sm:$0x3] %v1725
      %v2479 = vpack.c.bf16 %v1128, %v1128
      %s2480 = smul.u32 1, 8
      %s2481 = sshll.u32 %s2480, 4
      %2482 = dma.done [#allocation8], %s2481
      %s2483 = smul.u32 4, 8
      %s2484 = smul.u32 %s2483, 8
      %s2485 = sshll.u32 %s2484, 4
      %2486 = dma.done [#allocation6], %s2485
      %v2487 = vld [vmem:[#allocation3] sm:$0xff]
      %v2488 = vld [vmem:[#allocation3 + $0x8] sm:$0xff]
      %v2489 = vld [vmem:[#allocation3 + $0x10] sm:$0xff]
      %v2490 = vld [vmem:[#allocation3 + $0x18] sm:$0xff]
      %v2491 = vld [vmem:[#allocation3 + $0x20] sm:$0xff]
      %v2492 = vld [vmem:[#allocation3 + $0x28] sm:$0xff]
      %v2493 = vld [vmem:[#allocation3 + $0x30] sm:$0xff]
      %v2494 = vld [vmem:[#allocation3 + $0x38] sm:$0xff]
      %v2495 = vld [vmem:[#allocation3 + $0x40] sm:$0xff]
      %v2496 = vld [vmem:[#allocation3 + $0x48] sm:$0xff]
      %v2497 = vld [vmem:[#allocation3 + $0x50] sm:$0xff]
      %v2498 = vld [vmem:[#allocation3 + $0x58] sm:$0xff]
      %v2499 = vld [vmem:[#allocation3 + $0x60] sm:$0xff]
      %v2500 = vld [vmem:[#allocation3 + $0x68] sm:$0xff]
      %v2501 = vld [vmem:[#allocation3 + $0x70] sm:$0xff]
      %v2502 = vld [vmem:[#allocation3 + $0x78] sm:$0xff]
      %v2503 = vld [vmem:[#allocation3 + $0x80] sm:$0xff]
      %v2504 = vld [vmem:[#allocation3 + $0x88] sm:$0xff]
      %v2505 = vld [vmem:[#allocation3 + $0x90] sm:$0xff]
      %v2506 = vld [vmem:[#allocation3 + $0x98] sm:$0xff]
      %v2507 = vld [vmem:[#allocation3 + $0xa0] sm:$0xff]
      %v2508 = vld [vmem:[#allocation3 + $0xa8] sm:$0xff]
      %v2509 = vld [vmem:[#allocation3 + $0xb0] sm:$0xff]
      %v2510 = vld [vmem:[#allocation3 + $0xb8] sm:$0xff]
      %v2511 = vld [vmem:[#allocation3 + $0xc0] sm:$0xff]
      %v2512 = vld [vmem:[#allocation3 + $0xc8] sm:$0xff]
      %v2513 = vld [vmem:[#allocation3 + $0xd0] sm:$0xff]
      %v2514 = vld [vmem:[#allocation3 + $0xd8] sm:$0xff]
      %v2515 = vld [vmem:[#allocation3 + $0xe0] sm:$0xff]
      %v2516 = vld [vmem:[#allocation3 + $0xe8] sm:$0xff]
      %v2517 = vld [vmem:[#allocation3 + $0xf0] sm:$0xff]
      %v2518 = vld [vmem:[#allocation3 + $0xf8] sm:$0xff]
      %v2519 = vld [vmem:[#allocation5] sm:$0xff]
      %v2521 = vlaneseq
      %v2522 = vshrl.u32 %v2521, 7
      %v2523 = vsub.s32 0, %v2522
      %v2524 = vrot.slane %v2519, %v2523
      %v2525 = vlaneseq
      %v2526 = vshrl.u32 %v2525, 7
      %v2527 = vsub.s32 1, %v2526
      %v2528 = vrot.slane %v2519, %v2527
      %v2529 = vlaneseq
      %v2530 = vshrl.u32 %v2529, 7
      %v2531 = vsub.s32 2, %v2530
      %v2532 = vrot.slane %v2519, %v2531
      %v2533 = vlaneseq
      %v2534 = vshrl.u32 %v2533, 7
      %v2535 = vsub.s32 3, %v2534
      %v2536 = vrot.slane %v2519, %v2535
      %v2537 = vlaneseq
      %v2538 = vshrl.u32 %v2537, 7
      %v2539 = vsub.s32 4, %v2538
      %v2540 = vrot.slane %v2519, %v2539
      %v2541 = vlaneseq
      %v2542 = vshrl.u32 %v2541, 7
      %v2543 = vsub.s32 5, %v2542
      %v2544 = vrot.slane %v2519, %v2543
      %v2545 = vlaneseq
      %v2546 = vshrl.u32 %v2545, 7
      %v2547 = vsub.s32 6, %v2546
      %v2548 = vrot.slane %v2519, %v2547
      %v2549 = vlaneseq
      %v2550 = vshrl.u32 %v2549, 7
      %v2551 = vsub.s32 7, %v2550
      %v2552 = vrot.slane %v2519, %v2551
      %v2562 = vsel %vm1112, %v2479, 0
      %2564 = vmatprep.subr.bf16.mxu0 %v2488
      %2565 = vmatpush1.bf16.msra.mxu0 %v2487
      %2566 = vmatprep.subr.bf16.mxu0 %v2496
      %2567 = vmatpush1.bf16.msra.mxu0 %v2495
      %2568 = vmatprep.subr.bf16.mxu0 %v2504
      %2569 = vmatpush1.bf16.msra.mxu0 %v2503
      %2570 = vmatprep.subr.bf16.mxu0 %v2512
      %2571 = vmatpush1.bf16.msra.mxu0 %v2511
      %2572 = vmatprep.subr.bf16.mxu0 0
      %2573 = vmatpush1.bf16.msra.mxu0 0
      %2574 = vmatprep.subr.bf16.mxu0 0
      %2575 = vmatpush1.bf16.msra.mxu0 0
      %2576 = vmatprep.subr.bf16.mxu0 0
      %2577 = vmatpush1.bf16.msra.mxu0 0
      %2578 = vmatprep.subr.bf16.mxu0 0
      %2579 = vmatpush1.bf16.msra.mxu0 0
      %2580 = vmatprep.subr.bf16.mxu0 0
      %2581 = vmatpush1.bf16.msra.mxu0 0
      %2582 = vmatprep.subr.bf16.mxu0 0
      %2583 = vmatpush1.bf16.msra.mxu0 0
      %2584 = vmatprep.subr.bf16.mxu0 0
      %2585 = vmatpush1.bf16.msra.mxu0 0
      %2586 = vmatprep.subr.bf16.mxu0 0
      %2587 = vmatpush1.bf16.msra.mxu0 0
      %2588 = vmatprep.subr.bf16.mxu0 0
      %2589 = vmatpush1.bf16.msra.mxu0 0
      %2590 = vmatprep.subr.bf16.mxu0 0
      %2591 = vmatpush1.bf16.msra.mxu0 0
      %2592 = vmatprep.subr.bf16.mxu0 0
      %2593 = vmatpush1.bf16.msra.mxu0 0
      %2594 = vmatprep.subr.bf16.mxu0 0
      %2595 = vmatpush1.bf16.msra.mxu0 0
      %2596 = vmatprep.mubr.bf16.mxu0 0
      %2597 = vmatmul.mubr.bf16.gmra.mrb[0].mxu0 %v2562
      %v2598 = vpop.f32.mrb[0].mxu0
      %v2599 = vadd.f32 %v2524, %v2598
      %v2600 = vpop.f32.mrb[0].mxu0
      %v2601 = vadd.f32 %v2528, %v2600
      %v2602 = vpop.f32.mrb[0].mxu0
      %v2603 = vpop.f32.mrb[0].mxu0
      %2604 = vdwg.mxu0
      %2605 = vmatprep.subr.bf16.mxu0 %v2490
      %2606 = vmatpush1.bf16.msra.mxu0 %v2489
      %2607 = vmatprep.subr.bf16.mxu0 %v2498
      %2608 = vmatpush1.bf16.msra.mxu0 %v2497
      %2609 = vmatprep.subr.bf16.mxu0 %v2506
      %2610 = vmatpush1.bf16.msra.mxu0 %v2505
      %2611 = vmatprep.subr.bf16.mxu0 %v2514
      %2612 = vmatpush1.bf16.msra.mxu0 %v2513
      %2613 = vmatprep.subr.bf16.mxu0 0
      %2614 = vmatpush1.bf16.msra.mxu0 0
      %2615 = vmatprep.subr.bf16.mxu0 0
      %2616 = vmatpush1.bf16.msra.mxu0 0
      %2617 = vmatprep.subr.bf16.mxu0 0
      %2618 = vmatpush1.bf16.msra.mxu0 0
      %2619 = vmatprep.subr.bf16.mxu0 0
      %2620 = vmatpush1.bf16.msra.mxu0 0
      %2621 = vmatprep.subr.bf16.mxu0 0
      %2622 = vmatpush1.bf16.msra.mxu0 0
      %2623 = vmatprep.subr.bf16.mxu0 0
      %2624 = vmatpush1.bf16.msra.mxu0 0
      %2625 = vmatprep.subr.bf16.mxu0 0
      %2626 = vmatpush1.bf16.msra.mxu0 0
      %2627 = vmatprep.subr.bf16.mxu0 0
      %2628 = vmatpush1.bf16.msra.mxu0 0
      %2629 = vmatprep.subr.bf16.mxu0 0
      %2630 = vmatpush1.bf16.msra.mxu0 0
      %2631 = vmatprep.subr.bf16.mxu0 0
      %2632 = vmatpush1.bf16.msra.mxu0 0
      %2633 = vmatprep.subr.bf16.mxu0 0
      %2634 = vmatpush1.bf16.msra.mxu0 0
      %2635 = vmatprep.subr.bf16.mxu0 0
      %2636 = vmatpush1.bf16.msra.mxu0 0
      %2637 = vmatprep.mubr.bf16.mxu0 0
      %2638 = vmatmul.mubr.bf16.gmra.mrb[0].mxu0 %v2562
      %v2639 = vpop.f32.mrb[0].mxu0
      %v2640 = vadd.f32 %v2532, %v2639
      %v2641 = vpop.f32.mrb[0].mxu0
      %v2642 = vadd.f32 %v2536, %v2641
      %v2643 = vpop.f32.mrb[0].mxu0
      %v2644 = vpop.f32.mrb[0].mxu0
      %2645 = vdwg.mxu0
      %2646 = vmatprep.subr.bf16.mxu0 %v2492
      %2647 = vmatpush1.bf16.msra.mxu0 %v2491
      %2648 = vmatprep.subr.bf16.mxu0 %v2500
      %2649 = vmatpush1.bf16.msra.mxu0 %v2499
      %2650 = vmatprep.subr.bf16.mxu0 %v2508
      %2651 = vmatpush1.bf16.msra.mxu0 %v2507
      %2652 = vmatprep.subr.bf16.mxu0 %v2516
      %2653 = vmatpush1.bf16.msra.mxu0 %v2515
      %2654 = vmatprep.subr.bf16.mxu0 0
      %2655 = vmatpush1.bf16.msra.mxu0 0
      %2656 = vmatprep.subr.bf16.mxu0 0
      %2657 = vmatpush1.bf16.msra.mxu0 0
      %2658 = vmatprep.subr.bf16.mxu0 0
      %2659 = vmatpush1.bf16.msra.mxu0 0
      %2660 = vmatprep.subr.bf16.mxu0 0
      %2661 = vmatpush1.bf16.msra.mxu0 0
      %2662 = vmatprep.subr.bf16.mxu0 0
      %2663 = vmatpush1.bf16.msra.mxu0 0
      %2664 = vmatprep.subr.bf16.mxu0 0
      %2665 = vmatpush1.bf16.msra.mxu0 0
      %2666 = vmatprep.subr.bf16.mxu0 0
      %2667 = vmatpush1.bf16.msra.mxu0 0
      %2668 = vmatprep.subr.bf16.mxu0 0
      %2669 = vmatpush1.bf16.msra.mxu0 0
      %2670 = vmatprep.subr.bf16.mxu0 0
      %2671 = vmatpush1.bf16.msra.mxu0 0
      %2672 = vmatprep.subr.bf16.mxu0 0
      %2673 = vmatpush1.bf16.msra.mxu0 0
      %2674 = vmatprep.subr.bf16.mxu0 0
      %2675 = vmatpush1.bf16.msra.mxu0 0
      %2676 = vmatprep.subr.bf16.mxu0 0
      %2677 = vmatpush1.bf16.msra.mxu0 0
      %2678 = vmatprep.mubr.bf16.mxu0 0
      %2679 = vmatmul.mubr.bf16.gmra.mrb[0].mxu0 %v2562
      %v2680 = vpop.f32.mrb[0].mxu0
      %v2681 = vadd.f32 %v2540, %v2680
      %v2682 = vpop.f32.mrb[0].mxu0
      %v2683 = vadd.f32 %v2544, %v2682
      %v2684 = vpop.f32.mrb[0].mxu0
      %v2685 = vpop.f32.mrb[0].mxu0
      %2686 = vdwg.mxu0
      %2687 = vmatprep.subr.bf16.mxu0 %v2494
      %2688 = vmatpush1.bf16.msra.mxu0 %v2493
      %2689 = vmatprep.subr.bf16.mxu0 %v2502
      %2690 = vmatpush1.bf16.msra.mxu0 %v2501
      %2691 = vmatprep.subr.bf16.mxu0 %v2510
      %2692 = vmatpush1.bf16.msra.mxu0 %v2509
      %2693 = vmatprep.subr.bf16.mxu0 %v2518
      %2694 = vmatpush1.bf16.msra.mxu0 %v2517
      %2695 = vmatprep.subr.bf16.mxu0 0
      %2696 = vmatpush1.bf16.msra.mxu0 0
      %2697 = vmatprep.subr.bf16.mxu0 0
      %2698 = vmatpush1.bf16.msra.mxu0 0
      %2699 = vmatprep.subr.bf16.mxu0 0
      %2700 = vmatpush1.bf16.msra.mxu0 0
      %2701 = vmatprep.subr.bf16.mxu0 0
      %2702 = vmatpush1.bf16.msra.mxu0 0
      %2703 = vmatprep.subr.bf16.mxu0 0
      %2704 = vmatpush1.bf16.msra.mxu0 0
      %2705 = vmatprep.subr.bf16.mxu0 0
      %2706 = vmatpush1.bf16.msra.mxu0 0
      %2707 = vmatprep.subr.bf16.mxu0 0
      %2708 = vmatpush1.bf16.msra.mxu0 0
      %2709 = vmatprep.subr.bf16.mxu0 0
      %2710 = vmatpush1.bf16.msra.mxu0 0
      %2711 = vmatprep.subr.bf16.mxu0 0
      %2712 = vmatpush1.bf16.msra.mxu0 0
      %2713 = vmatprep.subr.bf16.mxu0 0
      %2714 = vmatpush1.bf16.msra.mxu0 0
      %2715 = vmatprep.subr.bf16.mxu0 0
      %2716 = vmatpush1.bf16.msra.mxu0 0
      %2717 = vmatprep.subr.bf16.mxu0 0
      %2718 = vmatpush1.bf16.msra.mxu0 0
      %2719 = vmatprep.mubr.bf16.mxu0 0
      %2720 = vmatmul.mubr.bf16.gmra.mrb[0].mxu0 %v2562
      %v2721 = vpop.f32.mrb[0].mxu0
      %v2722 = vadd.f32 %v2548, %v2721
      %v2723 = vpop.f32.mrb[0].mxu0
      %v2724 = vadd.f32 %v2552, %v2723
      %v2725 = vpop.f32.mrb[0].mxu0
      %v2726 = vpop.f32.mrb[0].mxu0
      %2727 = vdwg.mxu0
      %v2736 = vcombine.low %v2599, %v2601
      %v2737 = vcombine.low %v2640, %v2642
      %v2739 = vunpack.c.l.s4 1983009808
      %v2740 = vunpack.c.0.s8 %v2739
      %v2741 = vlaneseq
      %v2742 = vshrl.u32 %v2741, 7
      %v2743 = vsub.s32 %v2740, %v2742
      %v2744 = vrot.slane %v2736, %v2743
      %v2746 = vunpack.c.l.s4 1983009808
      %v2747 = vunpack.c.0.s8 %v2746
      %v2748 = vlaneseq
      %v2749 = vshrl.u32 %v2748, 7
      %v2750 = vsub.s32 %v2747, %v2749
      %v2751 = vrot.slane %v2737, %v2750
      %v2752 = vcombine.low %v2744, %v2751
      %v2753 = vcombine.low %v2681, %v2683
      %v2754 = vcombine.low %v2722, %v2724
      %v2756 = vunpack.c.l.s4 1983009808
      %v2757 = vunpack.c.0.s8 %v2756
      %v2758 = vlaneseq
      %v2759 = vshrl.u32 %v2758, 7
      %v2760 = vsub.s32 %v2757, %v2759
      %v2761 = vrot.slane %v2753, %v2760
      %v2763 = vunpack.c.l.s4 1983009808
      %v2764 = vunpack.c.0.s8 %v2763
      %v2765 = vlaneseq
      %v2766 = vshrl.u32 %v2765, 7
      %v2767 = vsub.s32 %v2764, %v2766
      %v2768 = vrot.slane %v2754, %v2767
      %v2769 = vcombine.low %v2761, %v2768
      %2772 = vst [vmem:[#allocation4] sm:$0xff] %v2752
      %2773 = vst [vmem:[#allocation4 + $0x8] sm:$0xff] %v2769
      %p2775 = scmp.lt.u32.totalorder 16, 8
      %p2776 = pneg %p2775
      // Predicated region
      $region97: #{pose_adjust_forward.1} parent=95 // pred_check
        _
      $region98: #{pose_adjust_forward.1} parent=95 // pred_check_branch
        %2778 = sbr.rel (%p2775) target = $region100
      $region99: #{pose_adjust_forward.1} parent=95 // pred_region
        %s2793 = sand.u32 16, 7
        %p2794 = scmp.eq.s32.totalorder %s2793, 0
        // Predicated region
        $region112: #{pose_adjust_forward.1} parent=99 // pred_check
          %p2795 = pneg %p2794
        $region113: #{pose_adjust_forward.1} parent=99 // pred_check_branch
          %2797 = sbr.rel (%p2795) target = $region115
        $region114: #{pose_adjust_forward.1} parent=99 // pred_region
          loop: start=0, step=1, limit=1
          $region116: #{pose_adjust_forward.1} parent=114 // loop_pre_header
            _
          $region117: #{pose_adjust_forward.1} parent=114 // loop_header
            %s2799 = sphi 0, %s2803
            %p2800 = scmp.ge.s32.totalorder %s2799, 1
            %s2804 = sphi [#allocation4], [#allocation4]
            %s2805 = sphi %s9, %s9
          $region118: #{pose_adjust_forward.1} parent=114 // loop_header_branch
            %2802 = sbr.rel (%p2800) target = $region122
          $region119: #{pose_adjust_forward.1} parent=114 // loop_body
            %v2806 = vld [vmem:[%s2804] sm:$0xff]
            %2807 = vst [vmem:[%s2805] sm:$0xff] %v2806
            %v2808 = vld [vmem:[%s2804 + $0x8] sm:$0xff]
            %2809 = vst [vmem:[%s2805 + $0x8] sm:$0xff] %v2808
          $region120: #{pose_adjust_forward.1} parent=114 // loop_footer
            %s2803 = sadd.s32 1, %s2799
          $region121: #{pose_adjust_forward.1} parent=114 // loop_footer_branch
            %2798 = sbr.rel target = $region117
          $region122: #{pose_adjust_forward.1} parent=114 // loop_exit
            _
        $region115: #{pose_adjust_forward.1} parent=99 // pred_fallthru
          _
        %p2810 = pneg %p2794
        // Predicated region
        $region123: #{pose_adjust_forward.1} parent=99 // pred_check
          _
        $region124: #{pose_adjust_forward.1} parent=99 // pred_check_branch
          %2812 = sbr.rel (%p2794) target = $region126
        $region125: #{pose_adjust_forward.1} parent=99 // pred_region
          %s2813 = sand.u32 16, 7
        $region126: #{pose_adjust_forward.1} parent=99 // pred_fallthru
          _
      $region100: #{pose_adjust_forward.1} parent=95 // pred_fallthru
        _
      // Predicated region
      $region101: #{pose_adjust_forward.1} parent=95 // pred_check
        %p2779 = pneg %p2775
      $region102: #{pose_adjust_forward.1} parent=95 // pred_check_branch
        %2781 = sbr.rel (%p2779) target = $region104
      $region103: #{pose_adjust_forward.1} parent=95 // pred_region
        %s2782 = sshllo.u32 0, 16
        loop: start=0, step=1, limit=1
        $region105: #{pose_adjust_forward.1} parent=103 // loop_pre_header
          _
        $region106: #{pose_adjust_forward.1} parent=103 // loop_header
          %s2784 = sphi 0, %s2788
          %p2785 = scmp.ge.s32.totalorder %s2784, 1
          %s2789 = sphi [#allocation4], [#allocation4]
          %s2790 = sphi %s9, %s9
        $region107: #{pose_adjust_forward.1} parent=103 // loop_header_branch
          %2787 = sbr.rel (%p2785) target = $region111
        $region108: #{pose_adjust_forward.1} parent=103 // loop_body
          %v2791 = vld [vmem:[%s2789] sm:%s2782]
          %2792 = vst [vmem:[%s2790] sm:%s2782] %v2791
        $region109: #{pose_adjust_forward.1} parent=103 // loop_footer
          %s2788 = sadd.s32 1, %s2784
        $region110: #{pose_adjust_forward.1} parent=103 // loop_footer_branch
          %2783 = sbr.rel target = $region106
        $region111: #{pose_adjust_forward.1} parent=103 // loop_exit
          _
      $region104: #{pose_adjust_forward.1} parent=95 // pred_fallthru
        _
      // Predicated region
      $region127: #{pose_adjust_forward.1} parent=95 // pred_check
        _
      $region128: #{pose_adjust_forward.1} parent=95 // pred_check_branch
        %2816 = sbr.rel (0) target = $region130
      $region129: #{pose_adjust_forward.1} parent=95 // pred_region
        %2817 = vsyncadd [#allocation7], 256
      $region130: #{pose_adjust_forward.1} parent=95 // pred_fallthru
        _
      %s2818 = smul.u32 2, 1
      %s2819 = smul.u32 %s2818, 8
      %s2820 = sshll.u32 %s2819, 4
      %2821 = dma.done [#allocation7], %s2820
    $region96: #{pose_adjust_forward.1} parent=1 // pred_fallthru
      _
    // Predicated region
    $region131: #{pose_adjust_forward.1} parent=1 // pred_check
      _
    $region132: #{pose_adjust_forward.1} parent=1 // pred_check_branch
      %2823 = sbr.rel (0) target = $region134
    $region133: #{pose_adjust_forward.1} parent=1 // pred_region
      %s2825 = ssub.s32 32, 32
      %2826 = vsyncadd [#allocation10], %s2825
      %s2828 = sshll.u32 [#allocation9], 4
      %s2829 = int_to_ptr.vmem [resolvable:$true] %s2828
      %2831 = dma.vmem_to_hbm [thread:$0]  %s2829, 32, %s6, [#allocation10]
    $region134: #{pose_adjust_forward.1} parent=1 // pred_fallthru
      _
    // Predicated region
    $region135: #{pose_adjust_forward.1} parent=1 // pred_check
      _
    $region136: #{pose_adjust_forward.1} parent=1 // pred_check_branch
      %2833 = sbr.rel (0) target = $region138
    $region137: #{pose_adjust_forward.1} parent=1 // pred_region
      %s2835 = ssub.s32 32, 32
      %2836 = vsyncadd [#allocation12], %s2835
      %s2838 = sshll.u32 [#allocation11], 4
      %s2839 = int_to_ptr.vmem [resolvable:$true] %s2838
      %2841 = dma.vmem_to_hbm [thread:$0]  %s2839, 32, %s7, [#allocation12]
    $region138: #{pose_adjust_forward.1} parent=1 // pred_fallthru
      _
    // Predicated region
    $region139: #{pose_adjust_forward.1} parent=1 // pred_check
      _
    $region140: #{pose_adjust_forward.1} parent=1 // pred_check_branch
      %2843 = sbr.rel (0) target = $region142
    $region141: #{pose_adjust_forward.1} parent=1 // pred_region
      %s2845 = ssub.s32 32, 32
      %2846 = vsyncadd [#allocation12], %s2845
      %s2848 = sshll.u32 [#allocation13], 4
      %s2849 = int_to_ptr.vmem [resolvable:$true] %s2848
      %2851 = dma.vmem_to_hbm [thread:$0]  %s2849, 32, %s8, [#allocation12]
    $region142: #{pose_adjust_forward.1} parent=1 // pred_fallthru
      _
    // Predicated region
    $region143: #{pose_adjust_forward.1} parent=1 // pred_check
      _
    $region144: #{pose_adjust_forward.1} parent=1 // pred_check_branch
      %2853 = sbr.rel (0) target = $region146
    $region145: #{pose_adjust_forward.1} parent=1 // pred_region
      %2854 = dma.done [#allocation10], 32
    $region146: #{pose_adjust_forward.1} parent=1 // pred_fallthru
      _
    // Predicated region
    $region147: #{pose_adjust_forward.1} parent=1 // pred_check
      _
    $region148: #{pose_adjust_forward.1} parent=1 // pred_check_branch
      %2856 = sbr.rel (0) target = $region150
    $region149: #{pose_adjust_forward.1} parent=1 // pred_region
      %2857 = dma.done [#allocation12], 32
    $region150: #{pose_adjust_forward.1} parent=1 // pred_fallthru
      _
    // Predicated region
    $region151: #{pose_adjust_forward.1} parent=1 // pred_check
      _
    $region152: #{pose_adjust_forward.1} parent=1 // pred_check_branch
      %2859 = sbr.rel (0) target = $region154
    $region153: #{pose_adjust_forward.1} parent=1 // pred_region
      %2860 = dma.done [#allocation12], 32
    $region154: #{pose_adjust_forward.1} parent=1 // pred_fallthru
      _
    %2861 = vsyncpa [#allocation10], 1
    %2862 = vsyncpa [#allocation12], 1
  %2863 = vsyncmov [#allocation6]
  %s2864 = vpop.sfrf %2863
  %p2865 = scmp.eq.s32.totalorder %s2864, 0
  %p2866 = pneg %p2865
  %2868 = shalt.err (%p2866)
  %2869 = vsyncmov [#allocation7]
  %s2870 = vpop.sfrf %2869
  %p2871 = scmp.eq.s32.totalorder %s2870, 0
  %p2872 = pneg %p2871
  %2874 = shalt.err (%p2872)
  %2875 = vsyncmov [#allocation8]
  %s2876 = vpop.sfrf %2875
  %p2877 = scmp.eq.s32.totalorder %s2876, 0
  %p2878 = pneg %p2877
  %2880 = shalt.err (%p2878)

</llo_original>
